<compile_context>
chip_gen: v7x
topology: tpu7x:2x2x1
jax: 0.10.0
libtpu: 0.0.40
codegen_flags: <defaults>
</compile_context>

<pallas_src>
import functools

import jax
import jax.numpy as jnp
import numpy as np
from jax.experimental import pallas as pl
from jax.experimental.pallas import tpu as pltpu


# ------------------------------ VMEM budget -------------------------------- #

def _vmem_limit_bytes():
    """Generation-aware scoped-VMEM budget (~3/4 of physical, capped at 100 MiB)."""
    try:
        cap = int(pltpu.get_tpu_info().vmem_capacity_bytes)
    except Exception:
        cap = 64 * 1024 * 1024          # conservative (v7x-sized) fallback
    return min((cap * 3) // 4, 100 * 1024 * 1024)


def _estimate_vmem_bytes(nc, n_body, S, in_nc, out_nc):
    """Rough upper bound on per-grid-step VMEM use of the fused kernel."""
    act = nc * S * 2                                      # one bf16 activation plane
    scratch = 2 * act                                     # ping-pong buffers
    temps = 3 * act + 2 * nc * S * 4                      # K-folded slab + f32 accumulators
    io = 2 * (in_nc * S * 2) + 2 * (out_nc * S * 4)       # double-buffered in/out blocks
    wts = 2 * ((n_body * 3 * nc * 3 * nc) + (3 * nc * 3 * in_nc) + (3 * out_nc * 3 * nc)) * 2
    return scratch + temps + io + wts + (1 << 20)


# ----------------------------- Pallas kernel -------------------------------- #

def _shift_lanes(x, off, size):
    """y[:, p] = x[:, (p + off) mod size].

    Exact for every interior position's 3x3 stencil (|off| <= Wp+1 never wraps there);
    wrapped values land only on border positions, which are re-zeroed by the mask.
    """
    k = off % size
    if k == 0:
        return x
    return jnp.concatenate([x[:, k:], x[:, :k]], axis=1)


def _conv3x3_flat(x, get_w, wp):
    """3x3 conv on a flattened padded image, spatial on the MXU lane axis.

    x:      (Cin, S) bf16, S = Hp*Wp, zero border rows/cols.
    get_w:  dy -> (Cout, 3*Cin) bf16 weights, K index = dx*Cin + ci.
    Returns (Cout, S) f32; valid at interior positions (borders must be masked).
    """
    _, s = x.shape
    acc = None
    for dy in range(3):                                   # 3 MXU matmuls, K = 3*Cin
        taps = [_shift_lanes(x, (dy - 1) * wp + (dx - 1), s) for dx in range(3)]
        xk = jnp.concatenate(taps, axis=0)                # (3*Cin, S)
        term = jnp.dot(get_w(dy), xk, preferred_element_type=jnp.float32)
        acc = term if acc is None else acc + term
    return acc


def _dncnn_kernel(x_ref, mask_ref, wh_ref, sh_ref, wb_ref, sb_ref, wt_ref, st_ref,
                  o_ref, h_ref, *, wp, n_body):
    """Whole DnCNN for one image: head, (nb-2) body layers, tail + residual, in VMEM."""
    mask = mask_ref[...]                                  # (1, S) f32: 1 interior / 0 border
    x = x_ref[0]                                          # (in_nc, S) bf16, padded image

    # Head: Conv + ReLU.
    y = _conv3x3_flat(x, lambda dy: wh_ref[dy], wp)
    y = jnp.maximum(y + sh_ref[...], 0.0) * mask
    h_ref[0] = y.astype(h_ref.dtype)

    # Body: (nb-2) x Conv + folded-BN + ReLU, ping-pong between VMEM scratch slabs.
    for l in range(n_body):
        cur = h_ref[l % 2]                                # (nc, S) bf16
        y = _conv3x3_flat(cur, lambda dy, l=l: wb_ref[l, dy], wp)
        y = jnp.maximum(y + sb_ref[l], 0.0) * mask
        h_ref[(l + 1) % 2] = y.astype(h_ref.dtype)

    # Tail conv (no BN / ReLU) fused with the DnCNN residual: out = x - n.
    noise = _conv3x3_flat(h_ref[n_body % 2], lambda dy: wt_ref[dy], wp) + st_ref[...]
    o_ref[0] = (x_ref[0].astype(jnp.float32) - noise).astype(o_ref.dtype)


# ------------------------------ forward wrapper ------------------------------ #

def dncnn_forward(x_nchw, kparams):
    """DnCNN forward: n = model(x); return x - n.  Input/output are NCHW (PyTorch layout)."""
    N, in_nc, H, W = x_nchw.shape
    nc = kparams[0]["w"].shape[1]
    out_nc = kparams[-1]["w"].shape[1]
    n_body = len(kparams) - 2
    assert in_nc == out_nc, "residual x - n requires in_nc == out_nc"
    assert n_body >= 1, "need nb >= 3"

    hp, wp = H + 2, W + 2
    S = hp * wp

    vmem_cap = _vmem_limit_bytes()
    need = _estimate_vmem_bytes(nc, n_body, S, in_nc, out_nc)
    # TODO(synk): spatial tiling + halo recompute for images that overflow this budget.
    assert need < vmem_cap, (
        f"padded image {H}x{W} too large for fused VMEM-resident DnCNN kernel: "
        f"need ~{need >> 20} MiB, budget {vmem_cap >> 20} MiB")

    # Pad H and W once (bf16); borders stay exactly zero through every layer (mask).
    x_pad = jnp.pad(x_nchw.astype(jnp.bfloat16),
                    ((0, 0), (0, 0), (1, 1), (1, 1))).reshape(N, in_nc, S)
    mask = jnp.zeros((hp, wp), jnp.float32).at[1:H + 1, 1:W + 1].set(1.0).reshape(1, S)

    wh, sh = kparams[0]["w"], kparams[0]["shift"]
    wt, st = kparams[-1]["w"], kparams[-1]["shift"]
    wb = jnp.stack([p["w"] for p in kparams[1:-1]])       # (n_body, 3, nc, 3*nc) bf16
    sb = jnp.stack([p["shift"] for p in kparams[1:-1]])   # (n_body, nc, 1)       f32

    out_flat = pl.pallas_call(
        functools.partial(_dncnn_kernel, wp=wp, n_body=n_body),
        out_shape=jax.ShapeDtypeStruct((N, out_nc, S), jnp.float32),
        grid=(N,),
        in_specs=[
            pl.BlockSpec((1, in_nc, S), lambda n: (n, 0, 0)),   # padded input (per image)
            pl.BlockSpec((1, S), lambda n: (0, 0)),             # interior mask (resident)
            pl.BlockSpec(wh.shape, lambda n: (0, 0, 0)),        # head weights
            pl.BlockSpec(sh.shape, lambda n: (0, 0)),           # head shift
            pl.BlockSpec(wb.shape, lambda n: (0, 0, 0, 0)),     # stacked body weights
            pl.BlockSpec(sb.shape, lambda n: (0, 0, 0)),        # stacked body shifts
            pl.BlockSpec(wt.shape, lambda n: (0, 0, 0)),        # tail weights
            pl.BlockSpec(st.shape, lambda n: (0, 0)),           # tail shift
        ],
        out_specs=pl.BlockSpec((1, out_nc, S), lambda n: (n, 0, 0)),
        scratch_shapes=[pltpu.VMEM((2, nc, S), jnp.bfloat16)],  # inter-layer ping-pong
        compiler_params=pltpu.CompilerParams(
            dimension_semantics=("parallel",),
            vmem_limit_bytes=vmem_cap),
    )(x_pad, mask, wh, sh, wb, sb, wt, st)

    return out_flat.reshape(N, out_nc, hp, wp)[:, :, 1:H + 1, 1:W + 1]


# ------------------------------ model setup -------------------------------- #

def init_dncnn_params(key, in_nc=1, out_nc=1, nc=64, nb=17):
    """Deterministic synthetic parameters in PyTorch layout (Cout, Cin, 3, 3) + BN stats."""
    chans = [(in_nc, nc)] + [(nc, nc)] * (nb - 2) + [(nc, out_nc)]
    layers = []
    for li, (cin, cout) in enumerate(chans):
        key, kw, kb, kg, kbeta, km = jax.random.split(key, 6)
        std = 1.0 / np.sqrt(9.0 * cin)
        w = jax.random.normal(kw, (cout, cin, 3, 3), jnp.float32) * std
        b = jax.random.normal(kb, (cout,), jnp.float32) * 0.01
        bn = None
        if 0 < li < len(chans) - 1:                        # 'BR' body layers only
            bn = dict(
                gamma=1.0 + 0.1 * jax.random.normal(kg, (cout,), jnp.float32),
                beta=0.1 * jax.random.normal(kbeta, (cout,), jnp.float32),
                mean=0.05 * jax.random.normal(km, (cout,), jnp.float32),
                var=jnp.ones((cout,), jnp.float32),
                eps=1e-4)
        layers.append(dict(w=w, b=b, bn=bn))
    return layers


def prepare_kernel_params(raw_layers):
    """Fold bias + inference-form BN into weights/shift and pack to kernel layout.

    Per layer: w -> (3, Cout, 3*Cin) bf16 (leading axis = dy, K index = dx*Cin + ci);
               shift -> (Cout, 1) f32.
    """
    out = []
    for layer in raw_layers:
        w, b, bn = layer["w"], layer["b"], layer["bn"]
        cout, cin = w.shape[0], w.shape[1]
        if bn is not None:
            s = bn["gamma"] / jnp.sqrt(bn["var"] + bn["eps"])
            shift = b * s + bn["beta"] - bn["mean"] * s
        else:
            s = jnp.ones((cout,), jnp.float32)
            shift = b
        w_k = jnp.transpose(w * s[:, None, None, None], (2, 0, 3, 1))   # (ky, co, kx, ci)
        w_k = w_k.reshape(3, cout, 3 * cin).astype(jnp.bfloat16)
        out.append(dict(w=w_k, shift=shift.reshape(cout, 1).astype(jnp.float32)))
    return out


# --------------------------- pure-JAX reference ----------------------------- #

def dncnn_forward_ref(x_nchw, kparams):
    """Pure-JAX reference with the same mixed-precision policy (bf16 storage, f32 accum;
    the residual input is also the bf16-stored image, matching the kernel)."""
    x_bf = x_nchw.astype(jnp.bfloat16)
    h = x_bf
    n = None
    for i, p in enumerate(kparams):
        w_k = p["w"]
        cout, cin = w_k.shape[1], w_k.shape[2] // 3
        w_oihw = jnp.transpose(w_k.reshape(3, cout, 3, cin), (1, 3, 0, 2))
        y = jax.lax.conv_general_dilated(
            h, w_oihw, window_strides=(1, 1), padding=((1, 1), (1, 1)),
            dimension_numbers=("NCHW", "OIHW", "NCHW"),
            preferred_element_type=jnp.float32)
        y = y + p["shift"].reshape(1, cout, 1, 1)
        if i < len(kparams) - 1:
            h = jnp.maximum(y, 0.0).astype(jnp.bfloat16)
        else:
            n = y
    return x_bf.astype(jnp.float32) - n


# ---------------------------------- main ------------------------------------ #

if __name__ == "__main__":
    # Small but structurally faithful config: in_nc=out_nc=1, nc=64, nb=5, 16x16 images.
    N, in_nc, out_nc, nc, nb, H, W = 2, 1, 1, 64, 5, 16, 16

    key = jax.random.PRNGKey(0)
    kx, kp = jax.random.split(key)
    x = jax.random.normal(kx, (N, in_nc, H, W), jnp.float32)          # NCHW like PyTorch
    raw = init_dncnn_params(kp, in_nc=in_nc, out_nc=out_nc, nc=nc, nb=nb)
    kparams = prepare_kernel_params(raw)

    fwd = jax.jit(dncnn_forward)
    out = jax.block_until_ready(fwd(x, kparams))
    assert out.shape == (N, out_nc, H, W), out.shape

    ref = jax.block_until_ready(dncnn_forward_ref(x, kparams))
    # Tolerance sized for bf16 weight/activation/residual storage with f32 accumulation.
    np.testing.assert_allclose(np.asarray(out), np.asarray(ref), atol=3e-2, rtol=3e-2)

    print("KERNEL_OK")
</pallas_src>

<mosaic_0001>
module attributes {stable_mosaic.version = 11 : i64} {
  func.func @_dncnn_kernel(%arg0: i32, %arg1: memref<1x1x324xbf16, #tpu.memory_space<vmem>>, %arg2: memref<1x324xf32, #tpu.memory_space<vmem>>, %arg3: memref<3x64x3xbf16, #tpu.memory_space<vmem>>, %arg4: memref<64x1xf32, #tpu.memory_space<vmem>>, %arg5: memref<3x3x64x192xbf16, #tpu.memory_space<vmem>>, %arg6: memref<3x64x1xf32, #tpu.memory_space<vmem>>, %arg7: memref<3x1x192xbf16, #tpu.memory_space<vmem>>, %arg8: memref<1x1xf32, #tpu.memory_space<vmem>>, %arg9: memref<1x1x324xf32, #tpu.memory_space<vmem>>, %arg10: memref<2x64x324xbf16, #tpu.memory_space<vmem>>) attributes {dimension_semantics = [#tpu.dimension_semantics<parallel>], iteration_bounds = array<i64: 2>, scalar_prefetch = 0 : i64, scratch_operands = 1 : i64, tpu.core_type = #tpu.core_type<tc>, window_params = [{transform_indices = @transform_0, window_bounds = array<i64: 1, 1, 324>}, {pipeline_mode = #tpu.pipeline_mode<synchronous>, transform_indices = @transform_1, window_bounds = array<i64: 1, 324>}, {pipeline_mode = #tpu.pipeline_mode<synchronous>, transform_indices = @transform_2, window_bounds = array<i64: 3, 64, 3>}, {pipeline_mode = #tpu.pipeline_mode<synchronous>, transform_indices = @transform_3, window_bounds = array<i64: 64, 1>}, {pipeline_mode = #tpu.pipeline_mode<synchronous>, transform_indices = @transform_4, window_bounds = array<i64: 3, 3, 64, 192>}, {pipeline_mode = #tpu.pipeline_mode<synchronous>, transform_indices = @transform_5, window_bounds = array<i64: 3, 64, 1>}, {pipeline_mode = #tpu.pipeline_mode<synchronous>, transform_indices = @transform_6, window_bounds = array<i64: 3, 1, 192>}, {pipeline_mode = #tpu.pipeline_mode<synchronous>, transform_indices = @transform_7, window_bounds = array<i64: 1, 1>}, {transform_indices = @transform_8, window_bounds = array<i64: 1, 1, 324>}]} {
    %c0 = arith.constant 0 : index
    %c0_0 = arith.constant 0 : index
    %0 = vector.load %arg2[%c0, %c0_0] : memref<1x324xf32, #tpu.memory_space<vmem>>, vector<1x324xf32>
    %c0_1 = arith.constant 0 : index
    %c0_2 = arith.constant 0 : index
    %c0_3 = arith.constant 0 : index
    %1 = vector.load %arg1[%c0_1, %c0_2, %c0_3] : memref<1x1x324xbf16, #tpu.memory_space<vmem>>, vector<1x1x324xbf16>
    %2 = vector.shape_cast %1 : vector<1x1x324xbf16> to vector<1x324xbf16>
    %3 = vector.extract_strided_slice %2 {offsets = [0, 305], sizes = [1, 19], strides = [1, 1]} : vector<1x324xbf16> to vector<1x19xbf16>
    %4 = vector.extract_strided_slice %2 {offsets = [0, 0], sizes = [1, 305], strides = [1, 1]} : vector<1x324xbf16> to vector<1x305xbf16>
    %5 = tpu.concatenate %3, %4 in 1 : vector<1x19xbf16>, vector<1x305xbf16> -> vector<1x324xbf16>
    %6 = vector.extract_strided_slice %2 {offsets = [0, 306], sizes = [1, 18], strides = [1, 1]} : vector<1x324xbf16> to vector<1x18xbf16>
    %7 = vector.extract_strided_slice %2 {offsets = [0, 0], sizes = [1, 306], strides = [1, 1]} : vector<1x324xbf16> to vector<1x306xbf16>
    %8 = tpu.concatenate %6, %7 in 1 : vector<1x18xbf16>, vector<1x306xbf16> -> vector<1x324xbf16>
    %9 = vector.extract_strided_slice %2 {offsets = [0, 307], sizes = [1, 17], strides = [1, 1]} : vector<1x324xbf16> to vector<1x17xbf16>
    %10 = vector.extract_strided_slice %2 {offsets = [0, 0], sizes = [1, 307], strides = [1, 1]} : vector<1x324xbf16> to vector<1x307xbf16>
    %11 = tpu.concatenate %9, %10 in 1 : vector<1x17xbf16>, vector<1x307xbf16> -> vector<1x324xbf16>
    %12 = tpu.concatenate %5, %8, %11 in 0 : vector<1x324xbf16>, vector<1x324xbf16>, vector<1x324xbf16> -> vector<3x324xbf16>
    %c0_4 = arith.constant 0 : index
    %c0_5 = arith.constant 0 : index
    %c0_6 = arith.constant 0 : index
    %13 = vector.load %arg3[%c0_4, %c0_5, %c0_6] : memref<3x64x3xbf16, #tpu.memory_space<vmem>>, vector<1x64x3xbf16>
    %14 = vector.shape_cast %13 : vector<1x64x3xbf16> to vector<64x3xbf16>
    %cst = arith.constant dense<0.000000e+00> : vector<64x324xf32>
    %15 = tpu.matmul %14, %12, %cst {dimension_numbers = #tpu.dot_dimension_numbers<[1], [0], [0], [1], [0, 0, 1, 1], [], []>} : vector<64x3xbf16>, vector<3x324xbf16>, vector<64x324xf32> -> vector<64x324xf32>
    %16 = vector.extract_strided_slice %2 {offsets = [0, 323], sizes = [1, 1], strides = [1, 1]} : vector<1x324xbf16> to vector<1x1xbf16>
    %17 = vector.extract_strided_slice %2 {offsets = [0, 0], sizes = [1, 323], strides = [1, 1]} : vector<1x324xbf16> to vector<1x323xbf16>
    %18 = tpu.concatenate %16, %17 in 1 : vector<1x1xbf16>, vector<1x323xbf16> -> vector<1x324xbf16>
    %19 = vector.extract_strided_slice %2 {offsets = [0, 1], sizes = [1, 323], strides = [1, 1]} : vector<1x324xbf16> to vector<1x323xbf16>
    %20 = vector.extract_strided_slice %2 {offsets = [0, 0], sizes = [1, 1], strides = [1, 1]} : vector<1x324xbf16> to vector<1x1xbf16>
    %21 = tpu.concatenate %19, %20 in 1 : vector<1x323xbf16>, vector<1x1xbf16> -> vector<1x324xbf16>
    %22 = tpu.concatenate %18, %2, %21 in 0 : vector<1x324xbf16>, vector<1x324xbf16>, vector<1x324xbf16> -> vector<3x324xbf16>
    %c1 = arith.constant 1 : index
    %c0_7 = arith.constant 0 : index
    %c0_8 = arith.constant 0 : index
    %23 = vector.load %arg3[%c1, %c0_7, %c0_8] : memref<3x64x3xbf16, #tpu.memory_space<vmem>>, vector<1x64x3xbf16>
    %24 = vector.shape_cast %23 : vector<1x64x3xbf16> to vector<64x3xbf16>
    %cst_9 = arith.constant dense<0.000000e+00> : vector<64x324xf32>
    %25 = tpu.matmul %24, %22, %cst_9 {dimension_numbers = #tpu.dot_dimension_numbers<[1], [0], [0], [1], [0, 0, 1, 1], [], []>} : vector<64x3xbf16>, vector<3x324xbf16>, vector<64x324xf32> -> vector<64x324xf32>
    %26 = arith.addf %15, %25 : vector<64x324xf32>
    %27 = vector.extract_strided_slice %2 {offsets = [0, 17], sizes = [1, 307], strides = [1, 1]} : vector<1x324xbf16> to vector<1x307xbf16>
    %28 = vector.extract_strided_slice %2 {offsets = [0, 0], sizes = [1, 17], strides = [1, 1]} : vector<1x324xbf16> to vector<1x17xbf16>
    %29 = tpu.concatenate %27, %28 in 1 : vector<1x307xbf16>, vector<1x17xbf16> -> vector<1x324xbf16>
    %30 = vector.extract_strided_slice %2 {offsets = [0, 18], sizes = [1, 306], strides = [1, 1]} : vector<1x324xbf16> to vector<1x306xbf16>
    %31 = vector.extract_strided_slice %2 {offsets = [0, 0], sizes = [1, 18], strides = [1, 1]} : vector<1x324xbf16> to vector<1x18xbf16>
    %32 = tpu.concatenate %30, %31 in 1 : vector<1x306xbf16>, vector<1x18xbf16> -> vector<1x324xbf16>
    %33 = vector.extract_strided_slice %2 {offsets = [0, 19], sizes = [1, 305], strides = [1, 1]} : vector<1x324xbf16> to vector<1x305xbf16>
    %34 = vector.extract_strided_slice %2 {offsets = [0, 0], sizes = [1, 19], strides = [1, 1]} : vector<1x324xbf16> to vector<1x19xbf16>
    %35 = tpu.concatenate %33, %34 in 1 : vector<1x305xbf16>, vector<1x19xbf16> -> vector<1x324xbf16>
    %36 = tpu.concatenate %29, %32, %35 in 0 : vector<1x324xbf16>, vector<1x324xbf16>, vector<1x324xbf16> -> vector<3x324xbf16>
    %c2 = arith.constant 2 : index
    %c0_10 = arith.constant 0 : index
    %c0_11 = arith.constant 0 : index
    %37 = vector.load %arg3[%c2, %c0_10, %c0_11] : memref<3x64x3xbf16, #tpu.memory_space<vmem>>, vector<1x64x3xbf16>
    %38 = vector.shape_cast %37 : vector<1x64x3xbf16> to vector<64x3xbf16>
    %cst_12 = arith.constant dense<0.000000e+00> : vector<64x324xf32>
    %39 = tpu.matmul %38, %36, %cst_12 {dimension_numbers = #tpu.dot_dimension_numbers<[1], [0], [0], [1], [0, 0, 1, 1], [], []>} : vector<64x3xbf16>, vector<3x324xbf16>, vector<64x324xf32> -> vector<64x324xf32>
    %40 = arith.addf %26, %39 : vector<64x324xf32>
    %c0_13 = arith.constant 0 : index
    %c0_14 = arith.constant 0 : index
    %41 = vector.load %arg4[%c0_13, %c0_14] : memref<64x1xf32, #tpu.memory_space<vmem>>, vector<64x1xf32>
    %42 = vector.broadcast %41 : vector<64x1xf32> to vector<64x324xf32>
    %43 = arith.addf %40, %42 : vector<64x324xf32>
    %cst_15 = arith.constant 0.000000e+00 : f32
    %44 = vector.broadcast %cst_15 : f32 to vector<64x324xf32>
    %45 = arith.maximumf %43, %44 : vector<64x324xf32>
    %46 = vector.broadcast %0 : vector<1x324xf32> to vector<64x324xf32>
    %47 = arith.mulf %45, %46 : vector<64x324xf32>
    %48 = arith.truncf %47 : vector<64x324xf32> to vector<64x324xbf16>
    %c0_16 = arith.constant 0 : index
    %c0_17 = arith.constant 0 : index
    %c0_18 = arith.constant 0 : index
    %49 = vector.load %arg10[%c0_16, %c0_17, %c0_18] : memref<2x64x324xbf16, #tpu.memory_space<vmem>>, vector<1x64x324xbf16>
    %50 = vector.shape_cast %49 : vector<1x64x324xbf16> to vector<64x324xbf16>
    %51 = vector.shape_cast %48 : vector<64x324xbf16> to vector<1x64x324xbf16>
    tpu.vector_store %arg10[%c0_16, %c0_17, %c0_18], %51 {strides = array<i32>} : memref<2x64x324xbf16, #tpu.memory_space<vmem>>, vector<1x64x324xbf16>,
    %c0_19 = arith.constant 0 : index
    %c0_20 = arith.constant 0 : index
    %c0_21 = arith.constant 0 : index
    %52 = vector.load %arg10[%c0_19, %c0_20, %c0_21] : memref<2x64x324xbf16, #tpu.memory_space<vmem>>, vector<1x64x324xbf16>
    %53 = vector.shape_cast %52 : vector<1x64x324xbf16> to vector<64x324xbf16>
    %54 = vector.extract_strided_slice %53 {offsets = [0, 305], sizes = [64, 19], strides = [1, 1]} : vector<64x324xbf16> to vector<64x19xbf16>
    %55 = vector.extract_strided_slice %53 {offsets = [0, 0], sizes = [64, 305], strides = [1, 1]} : vector<64x324xbf16> to vector<64x305xbf16>
    %56 = tpu.concatenate %54, %55 in 1 : vector<64x19xbf16>, vector<64x305xbf16> -> vector<64x324xbf16>
    %57 = vector.extract_strided_slice %53 {offsets = [0, 306], sizes = [64, 18], strides = [1, 1]} : vector<64x324xbf16> to vector<64x18xbf16>
    %58 = vector.extract_strided_slice %53 {offsets = [0, 0], sizes = [64, 306], strides = [1, 1]} : vector<64x324xbf16> to vector<64x306xbf16>
    %59 = tpu.concatenate %57, %58 in 1 : vector<64x18xbf16>, vector<64x306xbf16> -> vector<64x324xbf16>
    %60 = vector.extract_strided_slice %53 {offsets = [0, 307], sizes = [64, 17], strides = [1, 1]} : vector<64x324xbf16> to vector<64x17xbf16>
    %61 = vector.extract_strided_slice %53 {offsets = [0, 0], sizes = [64, 307], strides = [1, 1]} : vector<64x324xbf16> to vector<64x307xbf16>
    %62 = tpu.concatenate %60, %61 in 1 : vector<64x17xbf16>, vector<64x307xbf16> -> vector<64x324xbf16>
    %63 = tpu.concatenate %56, %59, %62 in 0 : vector<64x324xbf16>, vector<64x324xbf16>, vector<64x324xbf16> -> vector<192x324xbf16>
    %c0_22 = arith.constant 0 : index
    %c0_23 = arith.constant 0 : index
    %c0_24 = arith.constant 0 : index
    %c0_25 = arith.constant 0 : index
    %64 = vector.load %arg5[%c0_22, %c0_23, %c0_24, %c0_25] : memref<3x3x64x192xbf16, #tpu.memory_space<vmem>>, vector<1x1x64x192xbf16>
    %65 = vector.shape_cast %64 : vector<1x1x64x192xbf16> to vector<64x192xbf16>
    %cst_26 = arith.constant dense<0.000000e+00> : vector<64x324xf32>
    %66 = tpu.matmul %65, %63, %cst_26 {dimension_numbers = #tpu.dot_dimension_numbers<[1], [0], [0], [1], [0, 0, 1, 1], [], []>} : vector<64x192xbf16>, vector<192x324xbf16>, vector<64x324xf32> -> vector<64x324xf32>
    %67 = vector.extract_strided_slice %53 {offsets = [0, 323], sizes = [64, 1], strides = [1, 1]} : vector<64x324xbf16> to vector<64x1xbf16>
    %68 = vector.extract_strided_slice %53 {offsets = [0, 0], sizes = [64, 323], strides = [1, 1]} : vector<64x324xbf16> to vector<64x323xbf16>
    %69 = tpu.concatenate %67, %68 in 1 : vector<64x1xbf16>, vector<64x323xbf16> -> vector<64x324xbf16>
    %70 = vector.extract_strided_slice %53 {offsets = [0, 1], sizes = [64, 323], strides = [1, 1]} : vector<64x324xbf16> to vector<64x323xbf16>
    %71 = vector.extract_strided_slice %53 {offsets = [0, 0], sizes = [64, 1], strides = [1, 1]} : vector<64x324xbf16> to vector<64x1xbf16>
    %72 = tpu.concatenate %70, %71 in 1 : vector<64x323xbf16>, vector<64x1xbf16> -> vector<64x324xbf16>
    %73 = tpu.concatenate %69, %53, %72 in 0 : vector<64x324xbf16>, vector<64x324xbf16>, vector<64x324xbf16> -> vector<192x324xbf16>
    %c0_27 = arith.constant 0 : index
    %c1_28 = arith.constant 1 : index
    %c0_29 = arith.constant 0 : index
    %c0_30 = arith.constant 0 : index
    %74 = vector.load %arg5[%c0_27, %c1_28, %c0_29, %c0_30] : memref<3x3x64x192xbf16, #tpu.memory_space<vmem>>, vector<1x1x64x192xbf16>
    %75 = vector.shape_cast %74 : vector<1x1x64x192xbf16> to vector<64x192xbf16>
    %cst_31 = arith.constant dense<0.000000e+00> : vector<64x324xf32>
    %76 = tpu.matmul %75, %73, %cst_31 {dimension_numbers = #tpu.dot_dimension_numbers<[1], [0], [0], [1], [0, 0, 1, 1], [], []>} : vector<64x192xbf16>, vector<192x324xbf16>, vector<64x324xf32> -> vector<64x324xf32>
    %77 = arith.addf %66, %76 : vector<64x324xf32>
    %78 = vector.extract_strided_slice %53 {offsets = [0, 17], sizes = [64, 307], strides = [1, 1]} : vector<64x324xbf16> to vector<64x307xbf16>
    %79 = vector.extract_strided_slice %53 {offsets = [0, 0], sizes = [64, 17], strides = [1, 1]} : vector<64x324xbf16> to vector<64x17xbf16>
    %80 = tpu.concatenate %78, %79 in 1 : vector<64x307xbf16>, vector<64x17xbf16> -> vector<64x324xbf16>
    %81 = vector.extract_strided_slice %53 {offsets = [0, 18], sizes = [64, 306], strides = [1, 1]} : vector<64x324xbf16> to vector<64x306xbf16>
    %82 = vector.extract_strided_slice %53 {offsets = [0, 0], sizes = [64, 18], strides = [1, 1]} : vector<64x324xbf16> to vector<64x18xbf16>
    %83 = tpu.concatenate %81, %82 in 1 : vector<64x306xbf16>, vector<64x18xbf16> -> vector<64x324xbf16>
    %84 = vector.extract_strided_slice %53 {offsets = [0, 19], sizes = [64, 305], strides = [1, 1]} : vector<64x324xbf16> to vector<64x305xbf16>
    %85 = vector.extract_strided_slice %53 {offsets = [0, 0], sizes = [64, 19], strides = [1, 1]} : vector<64x324xbf16> to vector<64x19xbf16>
    %86 = tpu.concatenate %84, %85 in 1 : vector<64x305xbf16>, vector<64x19xbf16> -> vector<64x324xbf16>
    %87 = tpu.concatenate %80, %83, %86 in 0 : vector<64x324xbf16>, vector<64x324xbf16>, vector<64x324xbf16> -> vector<192x324xbf16>
    %c0_32 = arith.constant 0 : index
    %c2_33 = arith.constant 2 : index
    %c0_34 = arith.constant 0 : index
    %c0_35 = arith.constant 0 : index
    %88 = vector.load %arg5[%c0_32, %c2_33, %c0_34, %c0_35] : memref<3x3x64x192xbf16, #tpu.memory_space<vmem>>, vector<1x1x64x192xbf16>
    %89 = vector.shape_cast %88 : vector<1x1x64x192xbf16> to vector<64x192xbf16>
    %cst_36 = arith.constant dense<0.000000e+00> : vector<64x324xf32>
    %90 = tpu.matmul %89, %87, %cst_36 {dimension_numbers = #tpu.dot_dimension_numbers<[1], [0], [0], [1], [0, 0, 1, 1], [], []>} : vector<64x192xbf16>, vector<192x324xbf16>, vector<64x324xf32> -> vector<64x324xf32>
    %91 = arith.addf %77, %90 : vector<64x324xf32>
    %c0_37 = arith.constant 0 : index
    %c0_38 = arith.constant 0 : index
    %c0_39 = arith.constant 0 : index
    %92 = vector.load %arg6[%c0_37, %c0_38, %c0_39] : memref<3x64x1xf32, #tpu.memory_space<vmem>>, vector<1x64x1xf32>
    %93 = vector.shape_cast %92 : vector<1x64x1xf32> to vector<64x1xf32>
    %94 = vector.broadcast %93 : vector<64x1xf32> to vector<64x324xf32>
    %95 = arith.addf %91, %94 : vector<64x324xf32>
    %cst_40 = arith.constant 0.000000e+00 : f32
    %96 = vector.broadcast %cst_40 : f32 to vector<64x324xf32>
    %97 = arith.maximumf %95, %96 : vector<64x324xf32>
    %98 = vector.broadcast %0 : vector<1x324xf32> to vector<64x324xf32>
    %99 = arith.mulf %97, %98 : vector<64x324xf32>
    %100 = arith.truncf %99 : vector<64x324xf32> to vector<64x324xbf16>
    %c1_41 = arith.constant 1 : index
    %c0_42 = arith.constant 0 : index
    %c0_43 = arith.constant 0 : index
    %101 = vector.load %arg10[%c1_41, %c0_42, %c0_43] : memref<2x64x324xbf16, #tpu.memory_space<vmem>>, vector<1x64x324xbf16>
    %102 = vector.shape_cast %101 : vector<1x64x324xbf16> to vector<64x324xbf16>
    %103 = vector.shape_cast %100 : vector<64x324xbf16> to vector<1x64x324xbf16>
    tpu.vector_store %arg10[%c1_41, %c0_42, %c0_43], %103 {strides = array<i32>} : memref<2x64x324xbf16, #tpu.memory_space<vmem>>, vector<1x64x324xbf16>,
    %c1_44 = arith.constant 1 : index
    %c0_45 = arith.constant 0 : index
    %c0_46 = arith.constant 0 : index
    %104 = vector.load %arg10[%c1_44, %c0_45, %c0_46] : memref<2x64x324xbf16, #tpu.memory_space<vmem>>, vector<1x64x324xbf16>
    %105 = vector.shape_cast %104 : vector<1x64x324xbf16> to vector<64x324xbf16>
    %106 = vector.extract_strided_slice %105 {offsets = [0, 305], sizes = [64, 19], strides = [1, 1]} : vector<64x324xbf16> to vector<64x19xbf16>
    %107 = vector.extract_strided_slice %105 {offsets = [0, 0], sizes = [64, 305], strides = [1, 1]} : vector<64x324xbf16> to vector<64x305xbf16>
    %108 = tpu.concatenate %106, %107 in 1 : vector<64x19xbf16>, vector<64x305xbf16> -> vector<64x324xbf16>
    %109 = vector.extract_strided_slice %105 {offsets = [0, 306], sizes = [64, 18], strides = [1, 1]} : vector<64x324xbf16> to vector<64x18xbf16>
    %110 = vector.extract_strided_slice %105 {offsets = [0, 0], sizes = [64, 306], strides = [1, 1]} : vector<64x324xbf16> to vector<64x306xbf16>
    %111 = tpu.concatenate %109, %110 in 1 : vector<64x18xbf16>, vector<64x306xbf16> -> vector<64x324xbf16>
    %112 = vector.extract_strided_slice %105 {offsets = [0, 307], sizes = [64, 17], strides = [1, 1]} : vector<64x324xbf16> to vector<64x17xbf16>
    %113 = vector.extract_strided_slice %105 {offsets = [0, 0], sizes = [64, 307], strides = [1, 1]} : vector<64x324xbf16> to vector<64x307xbf16>
    %114 = tpu.concatenate %112, %113 in 1 : vector<64x17xbf16>, vector<64x307xbf16> -> vector<64x324xbf16>
    %115 = tpu.concatenate %108, %111, %114 in 0 : vector<64x324xbf16>, vector<64x324xbf16>, vector<64x324xbf16> -> vector<192x324xbf16>
    %c1_47 = arith.constant 1 : index
    %c0_48 = arith.constant 0 : index
    %c0_49 = arith.constant 0 : index
    %c0_50 = arith.constant 0 : index
    %116 = vector.load %arg5[%c1_47, %c0_48, %c0_49, %c0_50] : memref<3x3x64x192xbf16, #tpu.memory_space<vmem>>, vector<1x1x64x192xbf16>
    %117 = vector.shape_cast %116 : vector<1x1x64x192xbf16> to vector<64x192xbf16>
    %cst_51 = arith.constant dense<0.000000e+00> : vector<64x324xf32>
    %118 = tpu.matmul %117, %115, %cst_51 {dimension_numbers = #tpu.dot_dimension_numbers<[1], [0], [0], [1], [0, 0, 1, 1], [], []>} : vector<64x192xbf16>, vector<192x324xbf16>, vector<64x324xf32> -> vector<64x324xf32>
    %119 = vector.extract_strided_slice %105 {offsets = [0, 323], sizes = [64, 1], strides = [1, 1]} : vector<64x324xbf16> to vector<64x1xbf16>
    %120 = vector.extract_strided_slice %105 {offsets = [0, 0], sizes = [64, 323], strides = [1, 1]} : vector<64x324xbf16> to vector<64x323xbf16>
    %121 = tpu.concatenate %119, %120 in 1 : vector<64x1xbf16>, vector<64x323xbf16> -> vector<64x324xbf16>
    %122 = vector.extract_strided_slice %105 {offsets = [0, 1], sizes = [64, 323], strides = [1, 1]} : vector<64x324xbf16> to vector<64x323xbf16>
    %123 = vector.extract_strided_slice %105 {offsets = [0, 0], sizes = [64, 1], strides = [1, 1]} : vector<64x324xbf16> to vector<64x1xbf16>
    %124 = tpu.concatenate %122, %123 in 1 : vector<64x323xbf16>, vector<64x1xbf16> -> vector<64x324xbf16>
    %125 = tpu.concatenate %121, %105, %124 in 0 : vector<64x324xbf16>, vector<64x324xbf16>, vector<64x324xbf16> -> vector<192x324xbf16>
    %c1_52 = arith.constant 1 : index
    %c1_53 = arith.constant 1 : index
    %c0_54 = arith.constant 0 : index
    %c0_55 = arith.constant 0 : index
    %126 = vector.load %arg5[%c1_52, %c1_53, %c0_54, %c0_55] : memref<3x3x64x192xbf16, #tpu.memory_space<vmem>>, vector<1x1x64x192xbf16>
    %127 = vector.shape_cast %126 : vector<1x1x64x192xbf16> to vector<64x192xbf16>
    %cst_56 = arith.constant dense<0.000000e+00> : vector<64x324xf32>
    %128 = tpu.matmul %127, %125, %cst_56 {dimension_numbers = #tpu.dot_dimension_numbers<[1], [0], [0], [1], [0, 0, 1, 1], [], []>} : vector<64x192xbf16>, vector<192x324xbf16>, vector<64x324xf32> -> vector<64x324xf32>
    %129 = arith.addf %118, %128 : vector<64x324xf32>
    %130 = vector.extract_strided_slice %105 {offsets = [0, 17], sizes = [64, 307], strides = [1, 1]} : vector<64x324xbf16> to vector<64x307xbf16>
    %131 = vector.extract_strided_slice %105 {offsets = [0, 0], sizes = [64, 17], strides = [1, 1]} : vector<64x324xbf16> to vector<64x17xbf16>
    %132 = tpu.concatenate %130, %131 in 1 : vector<64x307xbf16>, vector<64x17xbf16> -> vector<64x324xbf16>
    %133 = vector.extract_strided_slice %105 {offsets = [0, 18], sizes = [64, 306], strides = [1, 1]} : vector<64x324xbf16> to vector<64x306xbf16>
    %134 = vector.extract_strided_slice %105 {offsets = [0, 0], sizes = [64, 18], strides = [1, 1]} : vector<64x324xbf16> to vector<64x18xbf16>
    %135 = tpu.concatenate %133, %134 in 1 : vector<64x306xbf16>, vector<64x18xbf16> -> vector<64x324xbf16>
    %136 = vector.extract_strided_slice %105 {offsets = [0, 19], sizes = [64, 305], strides = [1, 1]} : vector<64x324xbf16> to vector<64x305xbf16>
    %137 = vector.extract_strided_slice %105 {offsets = [0, 0], sizes = [64, 19], strides = [1, 1]} : vector<64x324xbf16> to vector<64x19xbf16>
    %138 = tpu.concatenate %136, %137 in 1 : vector<64x305xbf16>, vector<64x19xbf16> -> vector<64x324xbf16>
    %139 = tpu.concatenate %132, %135, %138 in 0 : vector<64x324xbf16>, vector<64x324xbf16>, vector<64x324xbf16> -> vector<192x324xbf16>
    %c1_57 = arith.constant 1 : index
    %c2_58 = arith.constant 2 : index
    %c0_59 = arith.constant 0 : index
    %c0_60 = arith.constant 0 : index
    %140 = vector.load %arg5[%c1_57, %c2_58, %c0_59, %c0_60] : memref<3x3x64x192xbf16, #tpu.memory_space<vmem>>, vector<1x1x64x192xbf16>
    %141 = vector.shape_cast %140 : vector<1x1x64x192xbf16> to vector<64x192xbf16>
    %cst_61 = arith.constant dense<0.000000e+00> : vector<64x324xf32>
    %142 = tpu.matmul %141, %139, %cst_61 {dimension_numbers = #tpu.dot_dimension_numbers<[1], [0], [0], [1], [0, 0, 1, 1], [], []>} : vector<64x192xbf16>, vector<192x324xbf16>, vector<64x324xf32> -> vector<64x324xf32>
    %143 = arith.addf %129, %142 : vector<64x324xf32>
    %c1_62 = arith.constant 1 : index
    %c0_63 = arith.constant 0 : index
    %c0_64 = arith.constant 0 : index
    %144 = vector.load %arg6[%c1_62, %c0_63, %c0_64] : memref<3x64x1xf32, #tpu.memory_space<vmem>>, vector<1x64x1xf32>
    %145 = vector.shape_cast %144 : vector<1x64x1xf32> to vector<64x1xf32>
    %146 = vector.broadcast %145 : vector<64x1xf32> to vector<64x324xf32>
    %147 = arith.addf %143, %146 : vector<64x324xf32>
    %cst_65 = arith.constant 0.000000e+00 : f32
    %148 = vector.broadcast %cst_65 : f32 to vector<64x324xf32>
    %149 = arith.maximumf %147, %148 : vector<64x324xf32>
    %150 = vector.broadcast %0 : vector<1x324xf32> to vector<64x324xf32>
    %151 = arith.mulf %149, %150 : vector<64x324xf32>
    %152 = arith.truncf %151 : vector<64x324xf32> to vector<64x324xbf16>
    %c0_66 = arith.constant 0 : index
    %c0_67 = arith.constant 0 : index
    %c0_68 = arith.constant 0 : index
    %153 = vector.load %arg10[%c0_66, %c0_67, %c0_68] : memref<2x64x324xbf16, #tpu.memory_space<vmem>>, vector<1x64x324xbf16>
    %154 = vector.shape_cast %153 : vector<1x64x324xbf16> to vector<64x324xbf16>
    %155 = vector.shape_cast %152 : vector<64x324xbf16> to vector<1x64x324xbf16>
    tpu.vector_store %arg10[%c0_66, %c0_67, %c0_68], %155 {strides = array<i32>} : memref<2x64x324xbf16, #tpu.memory_space<vmem>>, vector<1x64x324xbf16>,
    %c0_69 = arith.constant 0 : index
    %c0_70 = arith.constant 0 : index
    %c0_71 = arith.constant 0 : index
    %156 = vector.load %arg10[%c0_69, %c0_70, %c0_71] : memref<2x64x324xbf16, #tpu.memory_space<vmem>>, vector<1x64x324xbf16>
    %157 = vector.shape_cast %156 : vector<1x64x324xbf16> to vector<64x324xbf16>
    %158 = vector.extract_strided_slice %157 {offsets = [0, 305], sizes = [64, 19], strides = [1, 1]} : vector<64x324xbf16> to vector<64x19xbf16>
    %159 = vector.extract_strided_slice %157 {offsets = [0, 0], sizes = [64, 305], strides = [1, 1]} : vector<64x324xbf16> to vector<64x305xbf16>
    %160 = tpu.concatenate %158, %159 in 1 : vector<64x19xbf16>, vector<64x305xbf16> -> vector<64x324xbf16>
    %161 = vector.extract_strided_slice %157 {offsets = [0, 306], sizes = [64, 18], strides = [1, 1]} : vector<64x324xbf16> to vector<64x18xbf16>
    %162 = vector.extract_strided_slice %157 {offsets = [0, 0], sizes = [64, 306], strides = [1, 1]} : vector<64x324xbf16> to vector<64x306xbf16>
    %163 = tpu.concatenate %161, %162 in 1 : vector<64x18xbf16>, vector<64x306xbf16> -> vector<64x324xbf16>
    %164 = vector.extract_strided_slice %157 {offsets = [0, 307], sizes = [64, 17], strides = [1, 1]} : vector<64x324xbf16> to vector<64x17xbf16>
    %165 = vector.extract_strided_slice %157 {offsets = [0, 0], sizes = [64, 307], strides = [1, 1]} : vector<64x324xbf16> to vector<64x307xbf16>
    %166 = tpu.concatenate %164, %165 in 1 : vector<64x17xbf16>, vector<64x307xbf16> -> vector<64x324xbf16>
    %167 = tpu.concatenate %160, %163, %166 in 0 : vector<64x324xbf16>, vector<64x324xbf16>, vector<64x324xbf16> -> vector<192x324xbf16>
    %c2_72 = arith.constant 2 : index
    %c0_73 = arith.constant 0 : index
    %c0_74 = arith.constant 0 : index
    %c0_75 = arith.constant 0 : index
    %168 = vector.load %arg5[%c2_72, %c0_73, %c0_74, %c0_75] : memref<3x3x64x192xbf16, #tpu.memory_space<vmem>>, vector<1x1x64x192xbf16>
    %169 = vector.shape_cast %168 : vector<1x1x64x192xbf16> to vector<64x192xbf16>
    %cst_76 = arith.constant dense<0.000000e+00> : vector<64x324xf32>
    %170 = tpu.matmul %169, %167, %cst_76 {dimension_numbers = #tpu.dot_dimension_numbers<[1], [0], [0], [1], [0, 0, 1, 1], [], []>} : vector<64x192xbf16>, vector<192x324xbf16>, vector<64x324xf32> -> vector<64x324xf32>
    %171 = vector.extract_strided_slice %157 {offsets = [0, 323], sizes = [64, 1], strides = [1, 1]} : vector<64x324xbf16> to vector<64x1xbf16>
    %172 = vector.extract_strided_slice %157 {offsets = [0, 0], sizes = [64, 323], strides = [1, 1]} : vector<64x324xbf16> to vector<64x323xbf16>
    %173 = tpu.concatenate %171, %172 in 1 : vector<64x1xbf16>, vector<64x323xbf16> -> vector<64x324xbf16>
    %174 = vector.extract_strided_slice %157 {offsets = [0, 1], sizes = [64, 323], strides = [1, 1]} : vector<64x324xbf16> to vector<64x323xbf16>
    %175 = vector.extract_strided_slice %157 {offsets = [0, 0], sizes = [64, 1], strides = [1, 1]} : vector<64x324xbf16> to vector<64x1xbf16>
    %176 = tpu.concatenate %174, %175 in 1 : vector<64x323xbf16>, vector<64x1xbf16> -> vector<64x324xbf16>
    %177 = tpu.concatenate %173, %157, %176 in 0 : vector<64x324xbf16>, vector<64x324xbf16>, vector<64x324xbf16> -> vector<192x324xbf16>
    %c2_77 = arith.constant 2 : index
    %c1_78 = arith.constant 1 : index
    %c0_79 = arith.constant 0 : index
    %c0_80 = arith.constant 0 : index
    %178 = vector.load %arg5[%c2_77, %c1_78, %c0_79, %c0_80] : memref<3x3x64x192xbf16, #tpu.memory_space<vmem>>, vector<1x1x64x192xbf16>
    %179 = vector.shape_cast %178 : vector<1x1x64x192xbf16> to vector<64x192xbf16>
    %cst_81 = arith.constant dense<0.000000e+00> : vector<64x324xf32>
    %180 = tpu.matmul %179, %177, %cst_81 {dimension_numbers = #tpu.dot_dimension_numbers<[1], [0], [0], [1], [0, 0, 1, 1], [], []>} : vector<64x192xbf16>, vector<192x324xbf16>, vector<64x324xf32> -> vector<64x324xf32>
    %181 = arith.addf %170, %180 : vector<64x324xf32>
    %182 = vector.extract_strided_slice %157 {offsets = [0, 17], sizes = [64, 307], strides = [1, 1]} : vector<64x324xbf16> to vector<64x307xbf16>
    %183 = vector.extract_strided_slice %157 {offsets = [0, 0], sizes = [64, 17], strides = [1, 1]} : vector<64x324xbf16> to vector<64x17xbf16>
    %184 = tpu.concatenate %182, %183 in 1 : vector<64x307xbf16>, vector<64x17xbf16> -> vector<64x324xbf16>
    %185 = vector.extract_strided_slice %157 {offsets = [0, 18], sizes = [64, 306], strides = [1, 1]} : vector<64x324xbf16> to vector<64x306xbf16>
    %186 = vector.extract_strided_slice %157 {offsets = [0, 0], sizes = [64, 18], strides = [1, 1]} : vector<64x324xbf16> to vector<64x18xbf16>
    %187 = tpu.concatenate %185, %186 in 1 : vector<64x306xbf16>, vector<64x18xbf16> -> vector<64x324xbf16>
    %188 = vector.extract_strided_slice %157 {offsets = [0, 19], sizes = [64, 305], strides = [1, 1]} : vector<64x324xbf16> to vector<64x305xbf16>
    %189 = vector.extract_strided_slice %157 {offsets = [0, 0], sizes = [64, 19], strides = [1, 1]} : vector<64x324xbf16> to vector<64x19xbf16>
    %190 = tpu.concatenate %188, %189 in 1 : vector<64x305xbf16>, vector<64x19xbf16> -> vector<64x324xbf16>
    %191 = tpu.concatenate %184, %187, %190 in 0 : vector<64x324xbf16>, vector<64x324xbf16>, vector<64x324xbf16> -> vector<192x324xbf16>
    %c2_82 = arith.constant 2 : index
    %c2_83 = arith.constant 2 : index
    %c0_84 = arith.constant 0 : index
    %c0_85 = arith.constant 0 : index
    %192 = vector.load %arg5[%c2_82, %c2_83, %c0_84, %c0_85] : memref<3x3x64x192xbf16, #tpu.memory_space<vmem>>, vector<1x1x64x192xbf16>
    %193 = vector.shape_cast %192 : vector<1x1x64x192xbf16> to vector<64x192xbf16>
    %cst_86 = arith.constant dense<0.000000e+00> : vector<64x324xf32>
    %194 = tpu.matmul %193, %191, %cst_86 {dimension_numbers = #tpu.dot_dimension_numbers<[1], [0], [0], [1], [0, 0, 1, 1], [], []>} : vector<64x192xbf16>, vector<192x324xbf16>, vector<64x324xf32> -> vector<64x324xf32>
    %195 = arith.addf %181, %194 : vector<64x324xf32>
    %c2_87 = arith.constant 2 : index
    %c0_88 = arith.constant 0 : index
    %c0_89 = arith.constant 0 : index
    %196 = vector.load %arg6[%c2_87, %c0_88, %c0_89] : memref<3x64x1xf32, #tpu.memory_space<vmem>>, vector<1x64x1xf32>
    %197 = vector.shape_cast %196 : vector<1x64x1xf32> to vector<64x1xf32>
    %198 = vector.broadcast %197 : vector<64x1xf32> to vector<64x324xf32>
    %199 = arith.addf %195, %198 : vector<64x324xf32>
    %cst_90 = arith.constant 0.000000e+00 : f32
    %200 = vector.broadcast %cst_90 : f32 to vector<64x324xf32>
    %201 = arith.maximumf %199, %200 : vector<64x324xf32>
    %202 = vector.broadcast %0 : vector<1x324xf32> to vector<64x324xf32>
    %203 = arith.mulf %201, %202 : vector<64x324xf32>
    %204 = arith.truncf %203 : vector<64x324xf32> to vector<64x324xbf16>
    %c1_91 = arith.constant 1 : index
    %c0_92 = arith.constant 0 : index
    %c0_93 = arith.constant 0 : index
    %205 = vector.load %arg10[%c1_91, %c0_92, %c0_93] : memref<2x64x324xbf16, #tpu.memory_space<vmem>>, vector<1x64x324xbf16>
    %206 = vector.shape_cast %205 : vector<1x64x324xbf16> to vector<64x324xbf16>
    %207 = vector.shape_cast %204 : vector<64x324xbf16> to vector<1x64x324xbf16>
    tpu.vector_store %arg10[%c1_91, %c0_92, %c0_93], %207 {strides = array<i32>} : memref<2x64x324xbf16, #tpu.memory_space<vmem>>, vector<1x64x324xbf16>,
    %c1_94 = arith.constant 1 : index
    %c0_95 = arith.constant 0 : index
    %c0_96 = arith.constant 0 : index
    %208 = vector.load %arg10[%c1_94, %c0_95, %c0_96] : memref<2x64x324xbf16, #tpu.memory_space<vmem>>, vector<1x64x324xbf16>
    %209 = vector.shape_cast %208 : vector<1x64x324xbf16> to vector<64x324xbf16>
    %210 = vector.extract_strided_slice %209 {offsets = [0, 305], sizes = [64, 19], strides = [1, 1]} : vector<64x324xbf16> to vector<64x19xbf16>
    %211 = vector.extract_strided_slice %209 {offsets = [0, 0], sizes = [64, 305], strides = [1, 1]} : vector<64x324xbf16> to vector<64x305xbf16>
    %212 = tpu.concatenate %210, %211 in 1 : vector<64x19xbf16>, vector<64x305xbf16> -> vector<64x324xbf16>
    %213 = vector.extract_strided_slice %209 {offsets = [0, 306], sizes = [64, 18], strides = [1, 1]} : vector<64x324xbf16> to vector<64x18xbf16>
    %214 = vector.extract_strided_slice %209 {offsets = [0, 0], sizes = [64, 306], strides = [1, 1]} : vector<64x324xbf16> to vector<64x306xbf16>
    %215 = tpu.concatenate %213, %214 in 1 : vector<64x18xbf16>, vector<64x306xbf16> -> vector<64x324xbf16>
    %216 = vector.extract_strided_slice %209 {offsets = [0, 307], sizes = [64, 17], strides = [1, 1]} : vector<64x324xbf16> to vector<64x17xbf16>
    %217 = vector.extract_strided_slice %209 {offsets = [0, 0], sizes = [64, 307], strides = [1, 1]} : vector<64x324xbf16> to vector<64x307xbf16>
    %218 = tpu.concatenate %216, %217 in 1 : vector<64x17xbf16>, vector<64x307xbf16> -> vector<64x324xbf16>
    %219 = tpu.concatenate %212, %215, %218 in 0 : vector<64x324xbf16>, vector<64x324xbf16>, vector<64x324xbf16> -> vector<192x324xbf16>
    %c0_97 = arith.constant 0 : index
    %c0_98 = arith.constant 0 : index
    %c0_99 = arith.constant 0 : index
    %220 = vector.load %arg7[%c0_97, %c0_98, %c0_99] : memref<3x1x192xbf16, #tpu.memory_space<vmem>>, vector<1x1x192xbf16>
    %221 = vector.shape_cast %220 : vector<1x1x192xbf16> to vector<1x192xbf16>
    %cst_100 = arith.constant dense<0.000000e+00> : vector<1x324xf32>
    %222 = tpu.matmul %221, %219, %cst_100 {dimension_numbers = #tpu.dot_dimension_numbers<[1], [0], [0], [1], [0, 0, 1, 1], [], []>} : vector<1x192xbf16>, vector<192x324xbf16>, vector<1x324xf32> -> vector<1x324xf32>
    %223 = vector.extract_strided_slice %209 {offsets = [0, 323], sizes = [64, 1], strides = [1, 1]} : vector<64x324xbf16> to vector<64x1xbf16>
    %224 = vector.extract_strided_slice %209 {offsets = [0, 0], sizes = [64, 323], strides = [1, 1]} : vector<64x324xbf16> to vector<64x323xbf16>
    %225 = tpu.concatenate %223, %224 in 1 : vector<64x1xbf16>, vector<64x323xbf16> -> vector<64x324xbf16>
    %226 = vector.extract_strided_slice %209 {offsets = [0, 1], sizes = [64, 323], strides = [1, 1]} : vector<64x324xbf16> to vector<64x323xbf16>
    %227 = vector.extract_strided_slice %209 {offsets = [0, 0], sizes = [64, 1], strides = [1, 1]} : vector<64x324xbf16> to vector<64x1xbf16>
    %228 = tpu.concatenate %226, %227 in 1 : vector<64x323xbf16>, vector<64x1xbf16> -> vector<64x324xbf16>
    %229 = tpu.concatenate %225, %209, %228 in 0 : vector<64x324xbf16>, vector<64x324xbf16>, vector<64x324xbf16> -> vector<192x324xbf16>
    %c1_101 = arith.constant 1 : index
    %c0_102 = arith.constant 0 : index
    %c0_103 = arith.constant 0 : index
    %230 = vector.load %arg7[%c1_101, %c0_102, %c0_103] : memref<3x1x192xbf16, #tpu.memory_space<vmem>>, vector<1x1x192xbf16>
    %231 = vector.shape_cast %230 : vector<1x1x192xbf16> to vector<1x192xbf16>
    %cst_104 = arith.constant dense<0.000000e+00> : vector<1x324xf32>
    %232 = tpu.matmul %231, %229, %cst_104 {dimension_numbers = #tpu.dot_dimension_numbers<[1], [0], [0], [1], [0, 0, 1, 1], [], []>} : vector<1x192xbf16>, vector<192x324xbf16>, vector<1x324xf32> -> vector<1x324xf32>
    %233 = arith.addf %222, %232 : vector<1x324xf32>
    %234 = vector.extract_strided_slice %209 {offsets = [0, 17], sizes = [64, 307], strides = [1, 1]} : vector<64x324xbf16> to vector<64x307xbf16>
    %235 = vector.extract_strided_slice %209 {offsets = [0, 0], sizes = [64, 17], strides = [1, 1]} : vector<64x324xbf16> to vector<64x17xbf16>
    %236 = tpu.concatenate %234, %235 in 1 : vector<64x307xbf16>, vector<64x17xbf16> -> vector<64x324xbf16>
    %237 = vector.extract_strided_slice %209 {offsets = [0, 18], sizes = [64, 306], strides = [1, 1]} : vector<64x324xbf16> to vector<64x306xbf16>
    %238 = vector.extract_strided_slice %209 {offsets = [0, 0], sizes = [64, 18], strides = [1, 1]} : vector<64x324xbf16> to vector<64x18xbf16>
    %239 = tpu.concatenate %237, %238 in 1 : vector<64x306xbf16>, vector<64x18xbf16> -> vector<64x324xbf16>
    %240 = vector.extract_strided_slice %209 {offsets = [0, 19], sizes = [64, 305], strides = [1, 1]} : vector<64x324xbf16> to vector<64x305xbf16>
    %241 = vector.extract_strided_slice %209 {offsets = [0, 0], sizes = [64, 19], strides = [1, 1]} : vector<64x324xbf16> to vector<64x19xbf16>
    %242 = tpu.concatenate %240, %241 in 1 : vector<64x305xbf16>, vector<64x19xbf16> -> vector<64x324xbf16>
    %243 = tpu.concatenate %236, %239, %242 in 0 : vector<64x324xbf16>, vector<64x324xbf16>, vector<64x324xbf16> -> vector<192x324xbf16>
    %c2_105 = arith.constant 2 : index
    %c0_106 = arith.constant 0 : index
    %c0_107 = arith.constant 0 : index
    %244 = vector.load %arg7[%c2_105, %c0_106, %c0_107] : memref<3x1x192xbf16, #tpu.memory_space<vmem>>, vector<1x1x192xbf16>
    %245 = vector.shape_cast %244 : vector<1x1x192xbf16> to vector<1x192xbf16>
    %cst_108 = arith.constant dense<0.000000e+00> : vector<1x324xf32>
    %246 = tpu.matmul %245, %243, %cst_108 {dimension_numbers = #tpu.dot_dimension_numbers<[1], [0], [0], [1], [0, 0, 1, 1], [], []>} : vector<1x192xbf16>, vector<192x324xbf16>, vector<1x324xf32> -> vector<1x324xf32>
    %247 = arith.addf %233, %246 : vector<1x324xf32>
    %c0_109 = arith.constant 0 : index
    %c0_110 = arith.constant 0 : index
    %248 = vector.load %arg8[%c0_109, %c0_110] : memref<1x1xf32, #tpu.memory_space<vmem>>, vector<1x1xf32>
    %249 = vector.broadcast %248 : vector<1x1xf32> to vector<1x324xf32>
    %250 = arith.addf %247, %249 : vector<1x324xf32>
    %c0_111 = arith.constant 0 : index
    %c0_112 = arith.constant 0 : index
    %c0_113 = arith.constant 0 : index
    %251 = vector.load %arg1[%c0_111, %c0_112, %c0_113] : memref<1x1x324xbf16, #tpu.memory_space<vmem>>, vector<1x1x324xbf16>
    %252 = vector.shape_cast %251 : vector<1x1x324xbf16> to vector<1x324xbf16>
    %253 = arith.extf %252 : vector<1x324xbf16> to vector<1x324xf32>
    %254 = arith.subf %253, %250 : vector<1x324xf32>
    %c0_114 = arith.constant 0 : index
    %c0_115 = arith.constant 0 : index
    %c0_116 = arith.constant 0 : index
    %255 = vector.load %arg9[%c0_114, %c0_115, %c0_116] : memref<1x1x324xf32, #tpu.memory_space<vmem>>, vector<1x1x324xf32>
    %256 = vector.shape_cast %255 : vector<1x1x324xf32> to vector<1x324xf32>
    %257 = vector.shape_cast %254 : vector<1x324xf32> to vector<1x1x324xf32>
    tpu.vector_store %arg9[%c0_114, %c0_115, %c0_116], %257 {strides = array<i32>} : memref<1x1x324xf32, #tpu.memory_space<vmem>>, vector<1x1x324xf32>,
    return
  }
  func.func @transform_0(%arg0: i32) -> (i32, i32, i32) {
    %c0_i32 = arith.constant 0 : i32
    %c0_i32_0 = arith.constant 0 : i32
    %c0_i32_1 = arith.constant 0 : i32
    return %arg0, %c0_i32, %c0_i32_0 : i32, i32, i32
  }
  func.func @transform_1(%arg0: i32) -> (i32, i32) {
    %c0_i32 = arith.constant 0 : i32
    %c0_i32_0 = arith.constant 0 : i32
    %c0_i32_1 = arith.constant 0 : i32
    return %c0_i32, %c0_i32_0 : i32, i32
  }
  func.func @transform_2(%arg0: i32) -> (i32, i32, i32) {
    %c0_i32 = arith.constant 0 : i32
    %c0_i32_0 = arith.constant 0 : i32
    %c0_i32_1 = arith.constant 0 : i32
    %c0_i32_2 = arith.constant 0 : i32
    return %c0_i32, %c0_i32_0, %c0_i32_1 : i32, i32, i32
  }
  func.func @transform_3(%arg0: i32) -> (i32, i32) {
    %c0_i32 = arith.constant 0 : i32
    %c0_i32_0 = arith.constant 0 : i32
    %c0_i32_1 = arith.constant 0 : i32
    return %c0_i32, %c0_i32_0 : i32, i32
  }
  func.func @transform_4(%arg0: i32) -> (i32, i32, i32, i32) {
    %c0_i32 = arith.constant 0 : i32
    %c0_i32_0 = arith.constant 0 : i32
    %c0_i32_1 = arith.constant 0 : i32
    %c0_i32_2 = arith.constant 0 : i32
    %c0_i32_3 = arith.constant 0 : i32
    return %c0_i32, %c0_i32_0, %c0_i32_1, %c0_i32_2 : i32, i32, i32, i32
  }
  func.func @transform_5(%arg0: i32) -> (i32, i32, i32) {
    %c0_i32 = arith.constant 0 : i32
    %c0_i32_0 = arith.constant 0 : i32
    %c0_i32_1 = arith.constant 0 : i32
    %c0_i32_2 = arith.constant 0 : i32
    return %c0_i32, %c0_i32_0, %c0_i32_1 : i32, i32, i32
  }
  func.func @transform_6(%arg0: i32) -> (i32, i32, i32) {
    %c0_i32 = arith.constant 0 : i32
    %c0_i32_0 = arith.constant 0 : i32
    %c0_i32_1 = arith.constant 0 : i32
    %c0_i32_2 = arith.constant 0 : i32
    return %c0_i32, %c0_i32_0, %c0_i32_1 : i32, i32, i32
  }
  func.func @transform_7(%arg0: i32) -> (i32, i32) {
    %c0_i32 = arith.constant 0 : i32
    %c0_i32_0 = arith.constant 0 : i32
    %c0_i32_1 = arith.constant 0 : i32
    return %c0_i32, %c0_i32_0 : i32, i32
  }
  func.func @transform_8(%arg0: i32) -> (i32, i32, i32) {
    %c0_i32 = arith.constant 0 : i32
    %c0_i32_0 = arith.constant 0 : i32
    %c0_i32_1 = arith.constant 0 : i32
    return %arg0, %c0_i32, %c0_i32_0 : i32, i32, i32
  }
}

</mosaic_0001>

<llo_original>
// kernel: dncnn_forward.1
$region0: #{dncnn_forward.1}
  #allocation0 [shape = 'u32[]', space=smem, size = 0x4, offset = 0x4, fixed_abs, tag = 'smem constant byte address 0x4 - core index']
  #allocation1 [shape = 'u32[144,128]{1,0:T(1,128)}', space=vmem, size = 0x12000, scoped, tag = 'internal scratch']
  #allocation2 [shape = 'bf16[2,64,324]{2,1,0:T(16,128)(2,1)}', space=vmem, size = 0x18000, scoped, tag = 'scratch operand']
  #allocation3 [shape = 'f32[1,1]{1,0:T(1,128)S(1)}', space=vmem, size = 0x200, scoped, tag = 'scoped memory for dncnn_forward.1']
  %s0 = inlined_call_operand.vmem [shape: bf16[2,1,324], index: 0, kind: input, shape index: {}]
  %s1 = inlined_call_operand.vmem [shape: f32[1,324], index: 1, kind: input, shape index: {}]
  %s2 = inlined_call_operand.vmem [shape: bf16[3,64,3], index: 2, kind: input, shape index: {}]
  %s3 = inlined_call_operand.vmem [shape: f32[64,1], index: 3, kind: input, shape index: {}]
  %s4 = inlined_call_operand.vmem [shape: bf16[3,3,64,192], index: 4, kind: input, shape index: {}]
  %s5 = inlined_call_operand.vmem [shape: f32[3,64,1], index: 5, kind: input, shape index: {}]
  %s6 = inlined_call_operand.vmem [shape: bf16[3,1,192], index: 6, kind: input, shape index: {}]
  %s7 = inlined_call_operand.<no memory space> [shape: f32[1,1], index: 7, kind: input, shape index: {}]
  %s8 = inlined_call_operand.vmem [shape: f32[2,1,324], index: 8, kind: output, shape index: {}]
  %s9 = sld [smem:[#allocation0]]
  $region65: #{dncnn_forward.1} parent=0
    _
  %s11 = ssub.s32 1, %s9
  %s12 = scalar_select 0, %s11, %s9
  %v13 = vstv %s7
  %14 = vst [vmem:[#allocation3] sm:$0x1] %v13
  loop: start=0, step=1, limit=4
  $region2: #{dncnn_forward.1} parent=0 // loop_pre_header
    _
  $region3: #{dncnn_forward.1} parent=0 // loop_header
    %s16 = sphi 0, %s20
    %p17 = scmp.ge.s32.totalorder %s16, 4
    %s26 = sphi 0, %s28
    %s29 = sphi 0, %s26
    %s30 = sphi 0, %s29
    %s46 = sphi 0, %s30
    %s50 = sphi 0, %s50
    %s52 = sphi 0, %s50
    %s53 = sphi 0, %s52
    %s67 = sphi 0, %s53
    %s71 = sphi 0, %s71
    %s73 = sphi 0, %s71
    %s74 = sphi 0, %s73
    %s88 = sphi 0, %s74
    %s92 = sphi 0, %s92
    %s94 = sphi 0, %s92
    %s95 = sphi 0, %s94
    %s109 = sphi 0, %s95
    %s113 = sphi 0, %s113
    %s115 = sphi 0, %s113
    %s116 = sphi 0, %s115
    %s130 = sphi 0, %s116
    %s134 = sphi 0, %s134
    %s136 = sphi 0, %s134
    %s137 = sphi 0, %s136
    %s151 = sphi 0, %s137
    %s155 = sphi 0, %s155
    %s157 = sphi 0, %s155
    %s158 = sphi 0, %s157
    %s172 = sphi 0, %s158
    %s176 = sphi 0, %s176
    %s178 = sphi 0, %s176
    %s179 = sphi 0, %s178
    %s193 = sphi 0, %s179
    %s199 = sphi 0, %s201
    %s202 = sphi 0, %s199
    %s203 = sphi 0, %s202
    %s219 = sphi 0, %s203
  $region4: #{dncnn_forward.1} parent=0 // loop_header_branch
    %19 = sbr.rel (%p17) target = $region8
  $region5: #{dncnn_forward.1} parent=0 // loop_body
    %s21 = ssub.s32 %s16, 1
    %s22 = ssub.s32 %s16, 2
    %s23 = sadd.s32 %s16, 1
    %s24 = ssub.s32 %s16, %s23
    %p25 = scmp.eq.s32.totalorder %s24, 0
    %s27 = sadd.s32 %s26, 1
    %s28 = scalar_select %p25, %s26, %s27
    %p31 = pneg %p25
    %p32 = scmp.eq.s32.totalorder %s16, 1
    %p33 = por %p31, %p32
    %p34 = scmp.ne.s32.totalorder %s26, %s29
    %p35 = scmp.eq.s32.totalorder %s16, 0
    %p36 = por %p34, %p35
    %p37 = scmp.ne.s32.totalorder %s26, %s29
    %p38 = scmp.eq.s32.totalorder %s21, 1
    %p39 = por %p37, %p38
    %p40 = scmp.ne.s32.totalorder %s29, %s30
    %p41 = scmp.eq.s32.totalorder %s21, 0
    %p42 = por %p40, %p41
    %p43 = scmp.ne.s32.totalorder %s29, %s30
    %p44 = scmp.eq.s32.totalorder %s22, 1
    %p45 = por %p43, %p44
    %p47 = scmp.ne.s32.totalorder %s30, %s46
    %p48 = scmp.eq.s32.totalorder %s22, 0
    %p49 = por %p47, %p48
    %s51 = sadd.s32 %s50, 1
    %p54 = scmp.eq.s32.totalorder %s16, 1
    %p55 = scmp.ne.s32.totalorder %s50, %s52
    %p56 = scmp.eq.s32.totalorder %s16, 0
    %p57 = por %p55, %p56
    %p58 = scmp.ne.s32.totalorder %s50, %s52
    %p59 = scmp.eq.s32.totalorder %s21, 1
    %p60 = por %p58, %p59
    %p61 = scmp.ne.s32.totalorder %s52, %s53
    %p62 = scmp.eq.s32.totalorder %s21, 0
    %p63 = por %p61, %p62
    %p64 = scmp.ne.s32.totalorder %s52, %s53
    %p65 = scmp.eq.s32.totalorder %s22, 1
    %p66 = por %p64, %p65
    %p68 = scmp.ne.s32.totalorder %s53, %s67
    %p69 = scmp.eq.s32.totalorder %s22, 0
    %p70 = por %p68, %p69
    %s72 = sadd.s32 %s71, 1
    %p75 = scmp.eq.s32.totalorder %s16, 1
    %p76 = scmp.ne.s32.totalorder %s71, %s73
    %p77 = scmp.eq.s32.totalorder %s16, 0
    %p78 = por %p76, %p77
    %p79 = scmp.ne.s32.totalorder %s71, %s73
    %p80 = scmp.eq.s32.totalorder %s21, 1
    %p81 = por %p79, %p80
    %p82 = scmp.ne.s32.totalorder %s73, %s74
    %p83 = scmp.eq.s32.totalorder %s21, 0
    %p84 = por %p82, %p83
    %p85 = scmp.ne.s32.totalorder %s73, %s74
    %p86 = scmp.eq.s32.totalorder %s22, 1
    %p87 = por %p85, %p86
    %p89 = scmp.ne.s32.totalorder %s74, %s88
    %p90 = scmp.eq.s32.totalorder %s22, 0
    %p91 = por %p89, %p90
    %s93 = sadd.s32 %s92, 1
    %p96 = scmp.eq.s32.totalorder %s16, 1
    %p97 = scmp.ne.s32.totalorder %s92, %s94
    %p98 = scmp.eq.s32.totalorder %s16, 0
    %p99 = por %p97, %p98
    %p100 = scmp.ne.s32.totalorder %s92, %s94
    %p101 = scmp.eq.s32.totalorder %s21, 1
    %p102 = por %p100, %p101
    %p103 = scmp.ne.s32.totalorder %s94, %s95
    %p104 = scmp.eq.s32.totalorder %s21, 0
    %p105 = por %p103, %p104
    %p106 = scmp.ne.s32.totalorder %s94, %s95
    %p107 = scmp.eq.s32.totalorder %s22, 1
    %p108 = por %p106, %p107
    %p110 = scmp.ne.s32.totalorder %s95, %s109
    %p111 = scmp.eq.s32.totalorder %s22, 0
    %p112 = por %p110, %p111
    %s114 = sadd.s32 %s113, 1
    %p117 = scmp.eq.s32.totalorder %s16, 1
    %p118 = scmp.ne.s32.totalorder %s113, %s115
    %p119 = scmp.eq.s32.totalorder %s16, 0
    %p120 = por %p118, %p119
    %p121 = scmp.ne.s32.totalorder %s113, %s115
    %p122 = scmp.eq.s32.totalorder %s21, 1
    %p123 = por %p121, %p122
    %p124 = scmp.ne.s32.totalorder %s115, %s116
    %p125 = scmp.eq.s32.totalorder %s21, 0
    %p126 = por %p124, %p125
    %p127 = scmp.ne.s32.totalorder %s115, %s116
    %p128 = scmp.eq.s32.totalorder %s22, 1
    %p129 = por %p127, %p128
    %p131 = scmp.ne.s32.totalorder %s116, %s130
    %p132 = scmp.eq.s32.totalorder %s22, 0
    %p133 = por %p131, %p132
    %s135 = sadd.s32 %s134, 1
    %p138 = scmp.eq.s32.totalorder %s16, 1
    %p139 = scmp.ne.s32.totalorder %s134, %s136
    %p140 = scmp.eq.s32.totalorder %s16, 0
    %p141 = por %p139, %p140
    %p142 = scmp.ne.s32.totalorder %s134, %s136
    %p143 = scmp.eq.s32.totalorder %s21, 1
    %p144 = por %p142, %p143
    %p145 = scmp.ne.s32.totalorder %s136, %s137
    %p146 = scmp.eq.s32.totalorder %s21, 0
    %p147 = por %p145, %p146
    %p148 = scmp.ne.s32.totalorder %s136, %s137
    %p149 = scmp.eq.s32.totalorder %s22, 1
    %p150 = por %p148, %p149
    %p152 = scmp.ne.s32.totalorder %s137, %s151
    %p153 = scmp.eq.s32.totalorder %s22, 0
    %p154 = por %p152, %p153
    %s156 = sadd.s32 %s155, 1
    %p159 = scmp.eq.s32.totalorder %s16, 1
    %p160 = scmp.ne.s32.totalorder %s155, %s157
    %p161 = scmp.eq.s32.totalorder %s16, 0
    %p162 = por %p160, %p161
    %p163 = scmp.ne.s32.totalorder %s155, %s157
    %p164 = scmp.eq.s32.totalorder %s21, 1
    %p165 = por %p163, %p164
    %p166 = scmp.ne.s32.totalorder %s157, %s158
    %p167 = scmp.eq.s32.totalorder %s21, 0
    %p168 = por %p166, %p167
    %p169 = scmp.ne.s32.totalorder %s157, %s158
    %p170 = scmp.eq.s32.totalorder %s22, 1
    %p171 = por %p169, %p170
    %p173 = scmp.ne.s32.totalorder %s158, %s172
    %p174 = scmp.eq.s32.totalorder %s22, 0
    %p175 = por %p173, %p174
    %s177 = sadd.s32 %s176, 1
    %p180 = scmp.eq.s32.totalorder %s16, 1
    %p181 = scmp.ne.s32.totalorder %s176, %s178
    %p182 = scmp.eq.s32.totalorder %s16, 0
    %p183 = por %p181, %p182
    %p184 = scmp.ne.s32.totalorder %s176, %s178
    %p185 = scmp.eq.s32.totalorder %s21, 1
    %p186 = por %p184, %p185
    %p187 = scmp.ne.s32.totalorder %s178, %s179
    %p188 = scmp.eq.s32.totalorder %s21, 0
    %p189 = por %p187, %p188
    %p190 = scmp.ne.s32.totalorder %s178, %s179
    %p191 = scmp.eq.s32.totalorder %s22, 1
    %p192 = por %p190, %p191
    %p194 = scmp.ne.s32.totalorder %s179, %s193
    %p195 = scmp.eq.s32.totalorder %s22, 0
    %p196 = por %p194, %p195
    %s197 = ssub.s32 %s16, %s23
    %p198 = scmp.eq.s32.totalorder %s197, 0
    %s200 = sadd.s32 %s199, 1
    %s201 = scalar_select %p198, %s199, %s200
    %p204 = pneg %p198
    %p205 = scmp.eq.s32.totalorder %s16, 1
    %p206 = por %p204, %p205
    %p207 = scmp.ne.s32.totalorder %s199, %s202
    %p208 = scmp.eq.s32.totalorder %s16, 0
    %p209 = por %p207, %p208
    %p210 = scmp.ne.s32.totalorder %s199, %s202
    %p211 = scmp.eq.s32.totalorder %s21, 1
    %p212 = por %p210, %p211
    %p213 = scmp.ne.s32.totalorder %s202, %s203
    %p214 = scmp.eq.s32.totalorder %s21, 0
    %p215 = por %p213, %p214
    %p216 = scmp.ne.s32.totalorder %s202, %s203
    %p217 = scmp.eq.s32.totalorder %s22, 1
    %p218 = por %p216, %p217
    %p220 = scmp.ne.s32.totalorder %s203, %s219
    %p221 = scmp.eq.s32.totalorder %s22, 0
    %p222 = por %p220, %p221
    %p223 = scmp.le.s32.totalorder 1, %s16
    %p224 = scmp.lt.s32.totalorder %s16, 3
    %p225 = pnand %p223, %p224
    %p226 = pneg %p225
    // Predicated region
    $region9: #{dncnn_forward.1} parent=5 // pred_check
      _
    $region10: #{dncnn_forward.1} parent=5 // pred_check_branch
      %228 = sbr.rel (%p225) target = $region12
    $region11: #{dncnn_forward.1} parent=5 // pred_region
      %s229 = ssub.s32 %s16, 1
      // Predicated region
      $region13: #{dncnn_forward.1} parent=11 // pred_check
        %p230 = pneg %p63
      $region14: #{dncnn_forward.1} parent=11 // pred_check_branch
        %232 = sbr.rel (%p230) target = $region16
      $region15: #{dncnn_forward.1} parent=11 // pred_region
        _
      $region16: #{dncnn_forward.1} parent=11 // pred_fallthru
        _
      // Predicated region
      $region17: #{dncnn_forward.1} parent=11 // pred_check
        %p233 = pneg %p84
      $region18: #{dncnn_forward.1} parent=11 // pred_check_branch
        %235 = sbr.rel (%p233) target = $region20
      $region19: #{dncnn_forward.1} parent=11 // pred_region
        _
      $region20: #{dncnn_forward.1} parent=11 // pred_fallthru
        _
      // Predicated region
      $region21: #{dncnn_forward.1} parent=11 // pred_check
        %p236 = pneg %p105
      $region22: #{dncnn_forward.1} parent=11 // pred_check_branch
        %238 = sbr.rel (%p236) target = $region24
      $region23: #{dncnn_forward.1} parent=11 // pred_region
        _
      $region24: #{dncnn_forward.1} parent=11 // pred_fallthru
        _
      // Predicated region
      $region25: #{dncnn_forward.1} parent=11 // pred_check
        %p239 = pneg %p126
      $region26: #{dncnn_forward.1} parent=11 // pred_check_branch
        %241 = sbr.rel (%p239) target = $region28
      $region27: #{dncnn_forward.1} parent=11 // pred_region
        _
      $region28: #{dncnn_forward.1} parent=11 // pred_fallthru
        _
      // Predicated region
      $region29: #{dncnn_forward.1} parent=11 // pred_check
        %p242 = pneg %p147
      $region30: #{dncnn_forward.1} parent=11 // pred_check_branch
        %244 = sbr.rel (%p242) target = $region32
      $region31: #{dncnn_forward.1} parent=11 // pred_region
        _
      $region32: #{dncnn_forward.1} parent=11 // pred_fallthru
        _
      // Predicated region
      $region33: #{dncnn_forward.1} parent=11 // pred_check
        %p245 = pneg %p168
      $region34: #{dncnn_forward.1} parent=11 // pred_check_branch
        %247 = sbr.rel (%p245) target = $region36
      $region35: #{dncnn_forward.1} parent=11 // pred_region
        _
      $region36: #{dncnn_forward.1} parent=11 // pred_fallthru
        _
      // Predicated region
      $region37: #{dncnn_forward.1} parent=11 // pred_check
        %p248 = pneg %p189
      $region38: #{dncnn_forward.1} parent=11 // pred_check_branch
        %250 = sbr.rel (%p248) target = $region40
      $region39: #{dncnn_forward.1} parent=11 // pred_region
        _
      $region40: #{dncnn_forward.1} parent=11 // pred_fallthru
        _
    $region12: #{dncnn_forward.1} parent=5 // pred_fallthru
      _
    %p251 = scmp.lt.s32.totalorder %s16, 2
    // Predicated region
    $region41: #{dncnn_forward.1} parent=5 // pred_check
      %p252 = pneg %p251
    $region42: #{dncnn_forward.1} parent=5 // pred_check_branch
      %254 = sbr.rel (%p252) target = $region44
    $region43: #{dncnn_forward.1} parent=5 // pred_region
      // Predicated region
      $region45: #{dncnn_forward.1} parent=43 // pred_check
        %p255 = pneg %p36
      $region46: #{dncnn_forward.1} parent=43 // pred_check_branch
        %257 = sbr.rel (%p255) target = $region48
      $region47: #{dncnn_forward.1} parent=43 // pred_region
        %p258 = scmp.lt.s32.totalorder %s16, 1
        %s259 = scalar_select %p258, %s16, 1
        %s260 = smul.addr %s259, 3
        %s261 = scalar_lea.vmem %s0, %s260
      $region48: #{dncnn_forward.1} parent=43 // pred_fallthru
        _
    $region44: #{dncnn_forward.1} parent=5 // pred_fallthru
      _
    %p262 = scmp.le.s32.totalorder 1, %s16
    %p263 = scmp.lt.s32.totalorder %s16, 3
    %p264 = pnand %p262, %p263
    %p265 = pneg %p264
    // Predicated region
    $region49: #{dncnn_forward.1} parent=5 // pred_check
      _
    $region50: #{dncnn_forward.1} parent=5 // pred_check_branch
      %267 = sbr.rel (%p264) target = $region52
    $region51: #{dncnn_forward.1} parent=5 // pred_region
      %s268 = ssub.s32 %s16, 1
      %p269 = scmp.lt.s32.totalorder %s21, 1
      %s270 = scalar_select %p269, %s21, 1
      %s271 = smul.addr %s270, 3
      %s272 = scalar_lea.vmem %s0, %s271
      %p273 = pneg %p42
      %p274 = pneg %p39
      %p275 = pneg %p63
      %p276 = pneg %p60
      %p277 = pneg %p84
      %p278 = pneg %p81
      %p279 = pneg %p105
      %p280 = pneg %p102
      %p281 = pneg %p126
      %p282 = pneg %p123
      %p283 = pneg %p147
      %p284 = pneg %p144
      %p285 = pneg %p168
      %p286 = pneg %p165
      %p287 = pneg %p189
      %p288 = pneg %p186
      %p289 = pneg %p215
      %p290 = pneg %p212
      %p291 = scmp.lt.s32.totalorder %s21, 1
      %s292 = scalar_select %p291, %s21, 1
      %s293 = smul.addr %s292, 3
      %s294 = scalar_lea.vmem %s8, %s293
      %p295 = scmp.lt.s32.totalorder %s21, 1
      %s296 = scalar_select %p295, %s21, 1
      %s297 = smul.addr %s296, 3
      %s298 = scalar_lea.vmem %s0, %s297
      %p299 = scmp.lt.s32.totalorder %s21, 1
      %s300 = scalar_select %p299, %s21, 1
      %s301 = smul.addr %s300, 3
      %s302 = scalar_lea.vmem %s8, %s301
      %v304 = vld [vmem:[%s1] sm:$0x7]
      %v305 = vld [vmem:[%s298] sm:$0x7]
      %v308 = vunpack.c.l.s4 1966171168
      %v309 = vunpack.c.0.s8 %v308
      %v310 = vlaneseq
      %v311 = vshrl.u32 %v310, 7
      %v312 = vsub.s32 %v309, %v311
      %v313 = vrot.slane %v305, %v312
      %v315 = vunpack.c.l.s4 1966171168
      %v316 = vunpack.c.0.s8 %v315
      %v317 = vlaneseq
      %v318 = vshrl.u32 %v317, 7
      %v319 = vsub.s32 %v316, %v318
      %v320 = vrot.slane %v313, %v319
      %v321 = vcombine.high %v320, %v320
      %322 = vrot.lane.b32.xlu0 %v321, 79
      %v323 = vpop.permute.xlu0 %322
      %v324 = vcombine.high %v313, %v313
      %v326 = vunpack.c.l.s4 1966171168
      %v327 = vunpack.c.0.s8 %v326
      %v328 = vlaneseq
      %v329 = vshrl.u32 %v328, 7
      %v330 = vsub.s32 %v327, %v329
      %v331 = vrot.slane %v324, %v330
      %332 = vrot.lane.b32.xlu0 %v320, 19
      %v333 = vpop.permute.xlu0 %332
      %334 = vrot.lane.b32.xlu0 %v331, 19
      %v335 = vpop.permute.xlu0 %334
      %336 = vrot.lane.b32.xlu0 %v321, 19
      %v337 = vpop.permute.xlu0 %336
      %vm338 = vcmask 154624
      %v339 = vsel %vm338, %v333, %v335
      %v340 = vsel %vm338, %v335, %v337
      %vm343 = vcmask 154624
      %v346 = vsel %vm343, %v323, %v333
      %348 = vrot.lane.b32.xlu0 %v321, 78
      %v349 = vpop.permute.xlu0 %348
      %350 = vrot.lane.b32.xlu0 %v320, 18
      %v351 = vpop.permute.xlu0 %350
      %352 = vrot.lane.b32.xlu0 %v331, 18
      %v353 = vpop.permute.xlu0 %352
      %354 = vrot.lane.b32.xlu0 %v321, 18
      %v355 = vpop.permute.xlu0 %354
      %vm356 = vcmask 146432
      %v357 = vsel %vm356, %v351, %v353
      %v358 = vsel %vm356, %v353, %v355
      %vm359 = vcmask 146432
      %v362 = vsel %vm359, %v349, %v351
      %363 = vrot.lane.b32.xlu0 %v321, 77
      %v364 = vpop.permute.xlu0 %363
      %365 = vrot.lane.b32.xlu0 %v320, 17
      %v366 = vpop.permute.xlu0 %365
      %367 = vrot.lane.b32.xlu0 %v331, 17
      %v368 = vpop.permute.xlu0 %367
      %369 = vrot.lane.b32.xlu0 %v321, 17
      %v370 = vpop.permute.xlu0 %369
      %vm371 = vcmask 138240
      %v372 = vsel %vm371, %v366, %v368
      %v373 = vsel %vm371, %v368, %v370
      %vm374 = vcmask 138240
      %v377 = vsel %vm374, %v364, %v366
      %v378 = vshll.u32 %v362, 16
      %v381 = vshll.u32 %v357, 16
      %v384 = vshll.u32 %v358, 16
      %v390 = vrot.slane %v377, 7
      %v391 = vrot.slane %v372, 7
      %v392 = vrot.slane %v373, 7
      %vm393 = vcmask 1040384
      %vm394 = vsmask.f32 256
      %vm395 = vmand %vm393, %vm394
      %v396 = vsel %vm395, %v346, %v378
      %v397 = vsel %vm395, %v339, %v381
      %v398 = vsel %vm395, %v340, %v384
      %vm399 = vcmask 1040384
      %v402 = vsel %vm399, %v396, %v390
      %v405 = vsel %vm399, %v397, %v391
      %v408 = vsel %vm399, %v398, %v392
      %v409 = vld [vmem:[%s2] sm:$0xf]
      %v410 = vld [vmem:[%s2 + $0x4] sm:$0xf]
      %v411 = vld [vmem:[%s2 + $0x8] sm:$0xf]
      %v412 = vld [vmem:[%s2 + $0xc] sm:$0xf]
      %v413 = vld [vmem:[%s2 + $0x10] sm:$0xf]
      %v414 = vld [vmem:[%s2 + $0x14] sm:$0xf]
      %v415 = vld [vmem:[%s2 + $0x18] sm:$0xf]
      %v416 = vld [vmem:[%s2 + $0x1c] sm:$0xf]
      %417 = vrot.lane.b32.xlu0 %v321, 61
      %v418 = vpop.permute.xlu0 %417
      %419 = vrot.lane.b32.xlu0 %v320, 1
      %v420 = vpop.permute.xlu0 %419
      %421 = vrot.lane.b32.xlu0 %v331, 1
      %v422 = vpop.permute.xlu0 %421
      %423 = vrot.lane.b32.xlu0 %v321, 1
      %v424 = vpop.permute.xlu0 %423
      %vm425 = vcmask 7168
      %v426 = vsel %vm425, %v420, %v422
      %v427 = vsel %vm425, %v422, %v424
      %vm430 = vcmask 7168
      %v433 = vsel %vm430, %v418, %v420
      %435 = vrot.lane.b32.xlu0 %v320, 127
      %v436 = vpop.permute.xlu0 %435
      %437 = vrot.lane.b32.xlu0 %v331, 127
      %v438 = vpop.permute.xlu0 %437
      %439 = vrot.lane.b32.xlu0 %v321, 127
      %v440 = vpop.permute.xlu0 %439
      %vm441 = vcmask 1039360
      %v442 = vsel %vm441, %v436, %v438
      %v443 = vsel %vm441, %v438, %v440
      %444 = vrot.lane.b32.xlu0 %v320, 67
      %v445 = vpop.permute.xlu0 %444
      %vm446 = vcmask 547840
      %v449 = vsel %vm446, %v440, %v445
      %v451 = vshll.u32 %v320, 16
      %v454 = vshll.u32 %v331, 16
      %v457 = vshll.u32 %v321, 16
      %v463 = vrot.slane %v442, 7
      %v464 = vrot.slane %v443, 7
      %v465 = vrot.slane %v449, 7
      %v466 = vsel %vm395, %v433, %v451
      %v467 = vsel %vm395, %v426, %v454
      %v468 = vsel %vm395, %v427, %v457
      %v471 = vsel %vm399, %v466, %v463
      %v474 = vsel %vm399, %v467, %v464
      %v477 = vsel %vm399, %v468, %v465
      %s478 = scalar_lea.vmem %s2, 32
      %v479 = vld [vmem:[%s478] sm:$0xf]
      %v480 = vld [vmem:[%s478 + $0x4] sm:$0xf]
      %v481 = vld [vmem:[%s478 + $0x8] sm:$0xf]
      %v482 = vld [vmem:[%s478 + $0xc] sm:$0xf]
      %v483 = vld [vmem:[%s478 + $0x10] sm:$0xf]
      %v484 = vld [vmem:[%s478 + $0x14] sm:$0xf]
      %v485 = vld [vmem:[%s478 + $0x18] sm:$0xf]
      %v486 = vld [vmem:[%s478 + $0x1c] sm:$0xf]
      %v495 = vunpack.c.l.b16 %v479
      %v496 = vunpack.c.l.b16 %v480
      %v497 = vunpack.c.l.b16 %v481
      %v498 = vunpack.c.l.b16 %v482
      %v499 = vunpack.c.l.b16 %v483
      %v500 = vunpack.c.l.b16 %v484
      %v501 = vunpack.c.l.b16 %v485
      %v502 = vunpack.c.l.b16 %v486
      %v503 = vpack.c.b16 %v496, %v495
      %v504 = vpack.c.b16 %v498, %v497
      %v505 = vpack.c.b16 %v500, %v499
      %v506 = vpack.c.b16 %v502, %v501
      %vm507 = vcmask 23552
      %v509 = vsel %vm507, %v503, 0
      %v512 = vsel %vm507, %v504, 0
      %v515 = vsel %vm507, %v505, 0
      %v518 = vsel %vm507, %v506, 0
      %vm520 = vcmask 1041408
      %v521 = vsel %vm399, 4294967295, 65535
      %v522 = vsel %vm520, %v521, 0
      %v523 = vand.u32 %v471, %v522
      %v525 = vand.u32 %v474, %v522
      %v527 = vand.u32 %v477, %v522
      %529 = vmatprep.subr.bf16.mxu0 %v525
      %530 = vmatpush1.bf16.msra.mxu0 %v523
      %531 = vmatprep.subr.bf16.mxu0 0
      %532 = vmatpush1.bf16.msra.mxu0 0
      %533 = vmatprep.subr.bf16.mxu0 0
      %534 = vmatpush1.bf16.msra.mxu0 0
      %535 = vmatprep.subr.bf16.mxu0 0
      %536 = vmatpush1.bf16.msra.mxu0 0
      %537 = vmatprep.subr.bf16.mxu0 0
      %538 = vmatpush1.bf16.msra.mxu0 0
      %539 = vmatprep.subr.bf16.mxu0 0
      %540 = vmatpush1.bf16.msra.mxu0 0
      %541 = vmatprep.subr.bf16.mxu0 0
      %542 = vmatpush1.bf16.msra.mxu0 0
      %543 = vmatprep.subr.bf16.mxu0 0
      %544 = vmatpush1.bf16.msra.mxu0 0
      %545 = vmatprep.subr.bf16.mxu0 0
      %546 = vmatpush1.bf16.msra.mxu0 0
      %547 = vmatprep.subr.bf16.mxu0 0
      %548 = vmatpush1.bf16.msra.mxu0 0
      %549 = vmatprep.subr.bf16.mxu0 0
      %550 = vmatpush1.bf16.msra.mxu0 0
      %551 = vmatprep.subr.bf16.mxu0 0
      %552 = vmatpush1.bf16.msra.mxu0 0
      %553 = vmatprep.subr.bf16.mxu0 0
      %554 = vmatpush1.bf16.msra.mxu0 0
      %555 = vmatprep.subr.bf16.mxu0 0
      %556 = vmatpush1.bf16.msra.mxu0 0
      %557 = vmatprep.subr.bf16.mxu0 0
      %558 = vmatpush1.bf16.msra.mxu0 0
      %559 = vmatprep.subr.bf16.mxu0 0
      %560 = vmatpush1.bf16.msra.mxu0 0
      %561 = vmatprep.mubr.bf16.mxu0 0
      %562 = vmatmul.mubr.bf16.gmra.mrb[0].mxu0 %v509
      %v563 = vpop.f32.mrb[0].mxu0
      %v564 = vadd.f32 0.0, %v563
      %v565 = vpop.f32.mrb[0].mxu0
      %v566 = vadd.f32 0.0, %v565
      %v567 = vpop.f32.mrb[0].mxu0
      %v568 = vadd.f32 0.0, %v567
      %v569 = vpop.f32.mrb[0].mxu0
      %v570 = vadd.f32 0.0, %v569
      %571 = vmatprep.mubr.bf16.mxu0 0
      %572 = vmatmul.mubr.bf16.gmra.mrb[0].mxu0 %v512
      %v573 = vpop.f32.mrb[0].mxu0
      %v574 = vadd.f32 0.0, %v573
      %v575 = vpop.f32.mrb[0].mxu0
      %v576 = vadd.f32 0.0, %v575
      %v577 = vpop.f32.mrb[0].mxu0
      %v578 = vadd.f32 0.0, %v577
      %v579 = vpop.f32.mrb[0].mxu0
      %v580 = vadd.f32 0.0, %v579
      %581 = vmatprep.mubr.bf16.mxu0 0
      %582 = vmatmul.mubr.bf16.gmra.mrb[0].mxu0 %v515
      %v583 = vpop.f32.mrb[0].mxu0
      %v584 = vadd.f32 0.0, %v583
      %v585 = vpop.f32.mrb[0].mxu0
      %v586 = vadd.f32 0.0, %v585
      %v587 = vpop.f32.mrb[0].mxu0
      %v588 = vadd.f32 0.0, %v587
      %v589 = vpop.f32.mrb[0].mxu0
      %v590 = vadd.f32 0.0, %v589
      %591 = vmatprep.mubr.bf16.mxu0 0
      %592 = vmatmul.mubr.bf16.gmra.mrb[0].mxu0 %v518
      %v593 = vpop.f32.mrb[0].mxu0
      %v594 = vadd.f32 0.0, %v593
      %v595 = vpop.f32.mrb[0].mxu0
      %v596 = vadd.f32 0.0, %v595
      %v597 = vpop.f32.mrb[0].mxu0
      %v598 = vadd.f32 0.0, %v597
      %v599 = vpop.f32.mrb[0].mxu0
      %v600 = vadd.f32 0.0, %v599
      %601 = vdwg.mxu0
      %602 = vmatprep.subr.bf16.mxu0 0
      %603 = vmatpush1.bf16.msra.mxu0 %v527
      %604 = vmatprep.subr.bf16.mxu0 0
      %605 = vmatpush1.bf16.msra.mxu0 0
      %606 = vmatprep.subr.bf16.mxu0 0
      %607 = vmatpush1.bf16.msra.mxu0 0
      %608 = vmatprep.subr.bf16.mxu0 0
      %609 = vmatpush1.bf16.msra.mxu0 0
      %610 = vmatprep.subr.bf16.mxu0 0
      %611 = vmatpush1.bf16.msra.mxu0 0
      %612 = vmatprep.subr.bf16.mxu0 0
      %613 = vmatpush1.bf16.msra.mxu0 0
      %614 = vmatprep.subr.bf16.mxu0 0
      %615 = vmatpush1.bf16.msra.mxu0 0
      %616 = vmatprep.subr.bf16.mxu0 0
      %617 = vmatpush1.bf16.msra.mxu0 0
      %618 = vmatprep.subr.bf16.mxu0 0
      %619 = vmatpush1.bf16.msra.mxu0 0
      %620 = vmatprep.subr.bf16.mxu0 0
      %621 = vmatpush1.bf16.msra.mxu0 0
      %622 = vmatprep.subr.bf16.mxu0 0
      %623 = vmatpush1.bf16.msra.mxu0 0
      %624 = vmatprep.subr.bf16.mxu0 0
      %625 = vmatpush1.bf16.msra.mxu0 0
      %626 = vmatprep.subr.bf16.mxu0 0
      %627 = vmatpush1.bf16.msra.mxu0 0
      %628 = vmatprep.subr.bf16.mxu0 0
      %629 = vmatpush1.bf16.msra.mxu0 0
      %630 = vmatprep.subr.bf16.mxu0 0
      %631 = vmatpush1.bf16.msra.mxu0 0
      %632 = vmatprep.subr.bf16.mxu0 0
      %633 = vmatpush1.bf16.msra.mxu0 0
      %634 = vmatprep.mubr.bf16.mxu0 0
      %635 = vmatmul.mubr.bf16.gmra.mrb[0].mxu0 %v509
      %v636 = vpop.f32.mrb[0].mxu0
      %v637 = vadd.f32 0.0, %v636
      %v638 = vpop.f32.mrb[0].mxu0
      %v639 = vpop.f32.mrb[0].mxu0
      %v640 = vadd.f32 0.0, %v639
      %v641 = vpop.f32.mrb[0].mxu0
      %642 = vmatprep.mubr.bf16.mxu0 0
      %643 = vmatmul.mubr.bf16.gmra.mrb[0].mxu0 %v512
      %v644 = vpop.f32.mrb[0].mxu0
      %v645 = vadd.f32 0.0, %v644
      %v646 = vpop.f32.mrb[0].mxu0
      %v647 = vpop.f32.mrb[0].mxu0
      %v648 = vadd.f32 0.0, %v647
      %v649 = vpop.f32.mrb[0].mxu0
      %650 = vmatprep.mubr.bf16.mxu0 0
      %651 = vmatmul.mubr.bf16.gmra.mrb[0].mxu0 %v515
      %v652 = vpop.f32.mrb[0].mxu0
      %v653 = vadd.f32 0.0, %v652
      %v654 = vpop.f32.mrb[0].mxu0
      %v655 = vpop.f32.mrb[0].mxu0
      %v656 = vadd.f32 0.0, %v655
      %v657 = vpop.f32.mrb[0].mxu0
      %658 = vmatprep.mubr.bf16.mxu0 0
      %659 = vmatmul.mubr.bf16.gmra.mrb[0].mxu0 %v518
      %v660 = vpop.f32.mrb[0].mxu0
      %v661 = vadd.f32 0.0, %v660
      %v662 = vpop.f32.mrb[0].mxu0
      %v663 = vpop.f32.mrb[0].mxu0
      %v664 = vadd.f32 0.0, %v663
      %v665 = vpop.f32.mrb[0].mxu0
      %666 = vdwg.mxu0
      %v675 = vunpack.c.l.b16 %v409
      %v676 = vunpack.c.l.b16 %v410
      %v677 = vunpack.c.l.b16 %v411
      %v678 = vunpack.c.l.b16 %v412
      %v679 = vunpack.c.l.b16 %v413
      %v680 = vunpack.c.l.b16 %v414
      %v681 = vunpack.c.l.b16 %v415
      %v682 = vunpack.c.l.b16 %v416
      %v683 = vpack.c.b16 %v676, %v675
      %v684 = vpack.c.b16 %v678, %v677
      %v685 = vpack.c.b16 %v680, %v679
      %v686 = vpack.c.b16 %v682, %v681
      %v688 = vsel %vm507, %v683, 0
      %v691 = vsel %vm507, %v684, 0
      %v694 = vsel %vm507, %v685, 0
      %v697 = vsel %vm507, %v686, 0
      %v699 = vand.u32 %v402, %v522
      %v701 = vand.u32 %v405, %v522
      %v703 = vand.u32 %v408, %v522
      %705 = vmatprep.subr.bf16.mxu0 %v701
      %706 = vmatpush1.bf16.msra.mxu0 %v699
      %707 = vmatprep.subr.bf16.mxu0 0
      %708 = vmatpush1.bf16.msra.mxu0 0
      %709 = vmatprep.subr.bf16.mxu0 0
      %710 = vmatpush1.bf16.msra.mxu0 0
      %711 = vmatprep.subr.bf16.mxu0 0
      %712 = vmatpush1.bf16.msra.mxu0 0
      %713 = vmatprep.subr.bf16.mxu0 0
      %714 = vmatpush1.bf16.msra.mxu0 0
      %715 = vmatprep.subr.bf16.mxu0 0
      %716 = vmatpush1.bf16.msra.mxu0 0
      %717 = vmatprep.subr.bf16.mxu0 0
      %718 = vmatpush1.bf16.msra.mxu0 0
      %719 = vmatprep.subr.bf16.mxu0 0
      %720 = vmatpush1.bf16.msra.mxu0 0
      %721 = vmatprep.subr.bf16.mxu0 0
      %722 = vmatpush1.bf16.msra.mxu0 0
      %723 = vmatprep.subr.bf16.mxu0 0
      %724 = vmatpush1.bf16.msra.mxu0 0
      %725 = vmatprep.subr.bf16.mxu0 0
      %726 = vmatpush1.bf16.msra.mxu0 0
      %727 = vmatprep.subr.bf16.mxu0 0
      %728 = vmatpush1.bf16.msra.mxu0 0
      %729 = vmatprep.subr.bf16.mxu0 0
      %730 = vmatpush1.bf16.msra.mxu0 0
      %731 = vmatprep.subr.bf16.mxu0 0
      %732 = vmatpush1.bf16.msra.mxu0 0
      %733 = vmatprep.subr.bf16.mxu0 0
      %734 = vmatpush1.bf16.msra.mxu0 0
      %735 = vmatprep.subr.bf16.mxu0 0
      %736 = vmatpush1.bf16.msra.mxu0 0
      %737 = vmatprep.mubr.bf16.mxu0 0
      %738 = vmatmul.mubr.bf16.gmra.mrb[0].mxu0 %v688
      %v739 = vpop.f32.mrb[0].mxu0
      %v740 = vadd.f32 %v564, %v739
      %v741 = vpop.f32.mrb[0].mxu0
      %v742 = vadd.f32 %v566, %v741
      %v743 = vpop.f32.mrb[0].mxu0
      %v744 = vadd.f32 %v568, %v743
      %v745 = vpop.f32.mrb[0].mxu0
      %v746 = vadd.f32 %v570, %v745
      %747 = vmatprep.mubr.bf16.mxu0 0
      %748 = vmatmul.mubr.bf16.gmra.mrb[0].mxu0 %v691
      %v749 = vpop.f32.mrb[0].mxu0
      %v750 = vadd.f32 %v574, %v749
      %v751 = vpop.f32.mrb[0].mxu0
      %v752 = vadd.f32 %v576, %v751
      %v753 = vpop.f32.mrb[0].mxu0
      %v754 = vadd.f32 %v578, %v753
      %v755 = vpop.f32.mrb[0].mxu0
      %v756 = vadd.f32 %v580, %v755
      %757 = vmatprep.mubr.bf16.mxu0 0
      %758 = vmatmul.mubr.bf16.gmra.mrb[0].mxu0 %v694
      %v759 = vpop.f32.mrb[0].mxu0
      %v760 = vadd.f32 %v584, %v759
      %v761 = vpop.f32.mrb[0].mxu0
      %v762 = vadd.f32 %v586, %v761
      %v763 = vpop.f32.mrb[0].mxu0
      %v764 = vadd.f32 %v588, %v763
      %v765 = vpop.f32.mrb[0].mxu0
      %v766 = vadd.f32 %v590, %v765
      %767 = vmatprep.mubr.bf16.mxu0 0
      %768 = vmatmul.mubr.bf16.gmra.mrb[0].mxu0 %v697
      %v769 = vpop.f32.mrb[0].mxu0
      %v770 = vadd.f32 %v594, %v769
      %v771 = vpop.f32.mrb[0].mxu0
      %v772 = vadd.f32 %v596, %v771
      %v773 = vpop.f32.mrb[0].mxu0
      %v774 = vadd.f32 %v598, %v773
      %v775 = vpop.f32.mrb[0].mxu0
      %v776 = vadd.f32 %v600, %v775
      %777 = vdwg.mxu0
      %778 = vmatprep.subr.bf16.mxu0 0
      %779 = vmatpush1.bf16.msra.mxu0 %v703
      %780 = vmatprep.subr.bf16.mxu0 0
      %781 = vmatpush1.bf16.msra.mxu0 0
      %782 = vmatprep.subr.bf16.mxu0 0
      %783 = vmatpush1.bf16.msra.mxu0 0
      %784 = vmatprep.subr.bf16.mxu0 0
      %785 = vmatpush1.bf16.msra.mxu0 0
      %786 = vmatprep.subr.bf16.mxu0 0
      %787 = vmatpush1.bf16.msra.mxu0 0
      %788 = vmatprep.subr.bf16.mxu0 0
      %789 = vmatpush1.bf16.msra.mxu0 0
      %790 = vmatprep.subr.bf16.mxu0 0
      %791 = vmatpush1.bf16.msra.mxu0 0
      %792 = vmatprep.subr.bf16.mxu0 0
      %793 = vmatpush1.bf16.msra.mxu0 0
      %794 = vmatprep.subr.bf16.mxu0 0
      %795 = vmatpush1.bf16.msra.mxu0 0
      %796 = vmatprep.subr.bf16.mxu0 0
      %797 = vmatpush1.bf16.msra.mxu0 0
      %798 = vmatprep.subr.bf16.mxu0 0
      %799 = vmatpush1.bf16.msra.mxu0 0
      %800 = vmatprep.subr.bf16.mxu0 0
      %801 = vmatpush1.bf16.msra.mxu0 0
      %802 = vmatprep.subr.bf16.mxu0 0
      %803 = vmatpush1.bf16.msra.mxu0 0
      %804 = vmatprep.subr.bf16.mxu0 0
      %805 = vmatpush1.bf16.msra.mxu0 0
      %806 = vmatprep.subr.bf16.mxu0 0
      %807 = vmatpush1.bf16.msra.mxu0 0
      %808 = vmatprep.subr.bf16.mxu0 0
      %809 = vmatpush1.bf16.msra.mxu0 0
      %810 = vmatprep.mubr.bf16.mxu0 0
      %811 = vmatmul.mubr.bf16.gmra.mrb[0].mxu0 %v688
      %v812 = vpop.f32.mrb[0].mxu0
      %v813 = vadd.f32 %v637, %v812
      %v814 = vpop.f32.mrb[0].mxu0
      %v815 = vpop.f32.mrb[0].mxu0
      %v816 = vadd.f32 %v640, %v815
      %v817 = vpop.f32.mrb[0].mxu0
      %818 = vmatprep.mubr.bf16.mxu0 0
      %819 = vmatmul.mubr.bf16.gmra.mrb[0].mxu0 %v691
      %v820 = vpop.f32.mrb[0].mxu0
      %v821 = vadd.f32 %v645, %v820
      %v822 = vpop.f32.mrb[0].mxu0
      %v823 = vpop.f32.mrb[0].mxu0
      %v824 = vadd.f32 %v648, %v823
      %v825 = vpop.f32.mrb[0].mxu0
      %826 = vmatprep.mubr.bf16.mxu0 0
      %827 = vmatmul.mubr.bf16.gmra.mrb[0].mxu0 %v694
      %v828 = vpop.f32.mrb[0].mxu0
      %v829 = vadd.f32 %v653, %v828
      %v830 = vpop.f32.mrb[0].mxu0
      %v831 = vpop.f32.mrb[0].mxu0
      %v832 = vadd.f32 %v656, %v831
      %v833 = vpop.f32.mrb[0].mxu0
      %834 = vmatprep.mubr.bf16.mxu0 0
      %835 = vmatmul.mubr.bf16.gmra.mrb[0].mxu0 %v697
      %v836 = vpop.f32.mrb[0].mxu0
      %v837 = vadd.f32 %v661, %v836
      %v838 = vpop.f32.mrb[0].mxu0
      %v839 = vpop.f32.mrb[0].mxu0
      %v840 = vadd.f32 %v664, %v839
      %v841 = vpop.f32.mrb[0].mxu0
      %842 = vdwg.mxu0
      %843 = vrot.lane.b32.xlu0 %v320, 111
      %v844 = vpop.permute.xlu0 %843
      %845 = vrot.lane.b32.xlu0 %v331, 111
      %v846 = vpop.permute.xlu0 %845
      %847 = vrot.lane.b32.xlu0 %v321, 111
      %v848 = vpop.permute.xlu0 %847
      %vm849 = vcmask 908288
      %v850 = vsel %vm849, %v844, %v846
      %v851 = vsel %vm849, %v846, %v848
      %854 = vrot.lane.b32.xlu0 %v320, 51
      %v855 = vpop.permute.xlu0 %854
      %vm856 = vcmask 416768
      %v859 = vsel %vm856, %v848, %v855
      %861 = vrot.lane.b32.xlu0 %v320, 110
      %v862 = vpop.permute.xlu0 %861
      %863 = vrot.lane.b32.xlu0 %v331, 110
      %v864 = vpop.permute.xlu0 %863
      %865 = vrot.lane.b32.xlu0 %v321, 110
      %v866 = vpop.permute.xlu0 %865
      %vm867 = vcmask 900096
      %v868 = vsel %vm867, %v862, %v864
      %v869 = vsel %vm867, %v864, %v866
      %870 = vrot.lane.b32.xlu0 %v320, 50
      %v871 = vpop.permute.xlu0 %870
      %vm872 = vcmask 408576
      %v875 = vsel %vm872, %v866, %v871
      %876 = vrot.lane.b32.xlu0 %v320, 109
      %v877 = vpop.permute.xlu0 %876
      %878 = vrot.lane.b32.xlu0 %v331, 109
      %v879 = vpop.permute.xlu0 %878
      %880 = vrot.lane.b32.xlu0 %v321, 109
      %v881 = vpop.permute.xlu0 %880
      %vm882 = vcmask 891904
      %v883 = vsel %vm882, %v877, %v879
      %v884 = vsel %vm882, %v879, %v881
      %885 = vrot.lane.b32.xlu0 %v320, 49
      %v886 = vpop.permute.xlu0 %885
      %vm887 = vcmask 400384
      %v890 = vsel %vm887, %v881, %v886
      %v892 = vshll.u32 %v868, 16
      %v895 = vshll.u32 %v869, 16
      %v897 = vshll.u32 %v875, 16
      %v903 = vrot.slane %v883, 7
      %v904 = vrot.slane %v884, 7
      %v905 = vrot.slane %v890, 7
      %v906 = vsel %vm395, %v850, %v892
      %v907 = vsel %vm395, %v851, %v895
      %v908 = vsel %vm395, %v859, %v897
      %v911 = vsel %vm399, %v906, %v903
      %v914 = vsel %vm399, %v907, %v904
      %v917 = vsel %vm399, %v908, %v905
      %s918 = scalar_lea.vmem %s2, 64
      %v919 = vld [vmem:[%s918] sm:$0xf]
      %v920 = vld [vmem:[%s918 + $0x4] sm:$0xf]
      %v921 = vld [vmem:[%s918 + $0x8] sm:$0xf]
      %v922 = vld [vmem:[%s918 + $0xc] sm:$0xf]
      %v923 = vld [vmem:[%s918 + $0x10] sm:$0xf]
      %v924 = vld [vmem:[%s918 + $0x14] sm:$0xf]
      %v925 = vld [vmem:[%s918 + $0x18] sm:$0xf]
      %v926 = vld [vmem:[%s918 + $0x1c] sm:$0xf]
      %v935 = vunpack.c.l.b16 %v919
      %v936 = vunpack.c.l.b16 %v920
      %v937 = vunpack.c.l.b16 %v921
      %v938 = vunpack.c.l.b16 %v922
      %v939 = vunpack.c.l.b16 %v923
      %v940 = vunpack.c.l.b16 %v924
      %v941 = vunpack.c.l.b16 %v925
      %v942 = vunpack.c.l.b16 %v926
      %v943 = vpack.c.b16 %v936, %v935
      %v944 = vpack.c.b16 %v938, %v937
      %v945 = vpack.c.b16 %v940, %v939
      %v946 = vpack.c.b16 %v942, %v941
      %v948 = vsel %vm507, %v943, 0
      %v951 = vsel %vm507, %v944, 0
      %v954 = vsel %vm507, %v945, 0
      %v957 = vsel %vm507, %v946, 0
      %v959 = vand.u32 %v911, %v522
      %v961 = vand.u32 %v914, %v522
      %v963 = vand.u32 %v917, %v522
      %965 = vmatprep.subr.bf16.mxu0 %v961
      %966 = vmatpush1.bf16.msra.mxu0 %v959
      %967 = vmatprep.subr.bf16.mxu0 0
      %968 = vmatpush1.bf16.msra.mxu0 0
      %969 = vmatprep.subr.bf16.mxu0 0
      %970 = vmatpush1.bf16.msra.mxu0 0
      %971 = vmatprep.subr.bf16.mxu0 0
      %972 = vmatpush1.bf16.msra.mxu0 0
      %973 = vmatprep.subr.bf16.mxu0 0
      %974 = vmatpush1.bf16.msra.mxu0 0
      %975 = vmatprep.subr.bf16.mxu0 0
      %976 = vmatpush1.bf16.msra.mxu0 0
      %977 = vmatprep.subr.bf16.mxu0 0
      %978 = vmatpush1.bf16.msra.mxu0 0
      %979 = vmatprep.subr.bf16.mxu0 0
      %980 = vmatpush1.bf16.msra.mxu0 0
      %981 = vmatprep.subr.bf16.mxu0 0
      %982 = vmatpush1.bf16.msra.mxu0 0
      %983 = vmatprep.subr.bf16.mxu0 0
      %984 = vmatpush1.bf16.msra.mxu0 0
      %985 = vmatprep.subr.bf16.mxu0 0
      %986 = vmatpush1.bf16.msra.mxu0 0
      %987 = vmatprep.subr.bf16.mxu0 0
      %988 = vmatpush1.bf16.msra.mxu0 0
      %989 = vmatprep.subr.bf16.mxu0 0
      %990 = vmatpush1.bf16.msra.mxu0 0
      %991 = vmatprep.subr.bf16.mxu0 0
      %992 = vmatpush1.bf16.msra.mxu0 0
      %993 = vmatprep.subr.bf16.mxu0 0
      %994 = vmatpush1.bf16.msra.mxu0 0
      %995 = vmatprep.subr.bf16.mxu0 0
      %996 = vmatpush1.bf16.msra.mxu0 0
      %997 = vmatprep.mubr.bf16.mxu0 0
      %998 = vmatmul.mubr.bf16.gmra.mrb[0].mxu0 %v948
      %v999 = vpop.f32.mrb[0].mxu0
      %v1000 = vadd.f32 0.0, %v999
      %v1001 = vpop.f32.mrb[0].mxu0
      %v1002 = vadd.f32 0.0, %v1001
      %v1003 = vpop.f32.mrb[0].mxu0
      %v1004 = vadd.f32 0.0, %v1003
      %v1005 = vpop.f32.mrb[0].mxu0
      %v1006 = vadd.f32 0.0, %v1005
      %1007 = vmatprep.mubr.bf16.mxu0 0
      %1008 = vmatmul.mubr.bf16.gmra.mrb[0].mxu0 %v951
      %v1009 = vpop.f32.mrb[0].mxu0
      %v1010 = vadd.f32 0.0, %v1009
      %v1011 = vpop.f32.mrb[0].mxu0
      %v1012 = vadd.f32 0.0, %v1011
      %v1013 = vpop.f32.mrb[0].mxu0
      %v1014 = vadd.f32 0.0, %v1013
      %v1015 = vpop.f32.mrb[0].mxu0
      %v1016 = vadd.f32 0.0, %v1015
      %1017 = vmatprep.mubr.bf16.mxu0 0
      %1018 = vmatmul.mubr.bf16.gmra.mrb[0].mxu0 %v954
      %v1019 = vpop.f32.mrb[0].mxu0
      %v1020 = vadd.f32 0.0, %v1019
      %v1021 = vpop.f32.mrb[0].mxu0
      %v1022 = vadd.f32 0.0, %v1021
      %v1023 = vpop.f32.mrb[0].mxu0
      %v1024 = vadd.f32 0.0, %v1023
      %v1025 = vpop.f32.mrb[0].mxu0
      %v1026 = vadd.f32 0.0, %v1025
      %1027 = vmatprep.mubr.bf16.mxu0 0
      %1028 = vmatmul.mubr.bf16.gmra.mrb[0].mxu0 %v957
      %v1029 = vpop.f32.mrb[0].mxu0
      %v1030 = vadd.f32 0.0, %v1029
      %v1031 = vpop.f32.mrb[0].mxu0
      %v1032 = vadd.f32 0.0, %v1031
      %v1033 = vpop.f32.mrb[0].mxu0
      %v1034 = vadd.f32 0.0, %v1033
      %v1035 = vpop.f32.mrb[0].mxu0
      %v1036 = vadd.f32 0.0, %v1035
      %1037 = vdwg.mxu0
      %1038 = vmatprep.subr.bf16.mxu0 0
      %1039 = vmatpush1.bf16.msra.mxu0 %v963
      %1040 = vmatprep.subr.bf16.mxu0 0
      %1041 = vmatpush1.bf16.msra.mxu0 0
      %1042 = vmatprep.subr.bf16.mxu0 0
      %1043 = vmatpush1.bf16.msra.mxu0 0
      %1044 = vmatprep.subr.bf16.mxu0 0
      %1045 = vmatpush1.bf16.msra.mxu0 0
      %1046 = vmatprep.subr.bf16.mxu0 0
      %1047 = vmatpush1.bf16.msra.mxu0 0
      %1048 = vmatprep.subr.bf16.mxu0 0
      %1049 = vmatpush1.bf16.msra.mxu0 0
      %1050 = vmatprep.subr.bf16.mxu0 0
      %1051 = vmatpush1.bf16.msra.mxu0 0
      %1052 = vmatprep.subr.bf16.mxu0 0
      %1053 = vmatpush1.bf16.msra.mxu0 0
      %1054 = vmatprep.subr.bf16.mxu0 0
      %1055 = vmatpush1.bf16.msra.mxu0 0
      %1056 = vmatprep.subr.bf16.mxu0 0
      %1057 = vmatpush1.bf16.msra.mxu0 0
      %1058 = vmatprep.subr.bf16.mxu0 0
      %1059 = vmatpush1.bf16.msra.mxu0 0
      %1060 = vmatprep.subr.bf16.mxu0 0
      %1061 = vmatpush1.bf16.msra.mxu0 0
      %1062 = vmatprep.subr.bf16.mxu0 0
      %1063 = vmatpush1.bf16.msra.mxu0 0
      %1064 = vmatprep.subr.bf16.mxu0 0
      %1065 = vmatpush1.bf16.msra.mxu0 0
      %1066 = vmatprep.subr.bf16.mxu0 0
      %1067 = vmatpush1.bf16.msra.mxu0 0
      %1068 = vmatprep.subr.bf16.mxu0 0
      %1069 = vmatpush1.bf16.msra.mxu0 0
      %1070 = vmatprep.mubr.bf16.mxu0 0
      %1071 = vmatmul.mubr.bf16.gmra.mrb[0].mxu0 %v948
      %v1072 = vpop.f32.mrb[0].mxu0
      %v1073 = vadd.f32 0.0, %v1072
      %v1074 = vpop.f32.mrb[0].mxu0
      %v1075 = vpop.f32.mrb[0].mxu0
      %v1076 = vadd.f32 0.0, %v1075
      %v1077 = vpop.f32.mrb[0].mxu0
      %1078 = vmatprep.mubr.bf16.mxu0 0
      %1079 = vmatmul.mubr.bf16.gmra.mrb[0].mxu0 %v951
      %v1080 = vpop.f32.mrb[0].mxu0
      %v1081 = vadd.f32 0.0, %v1080
      %v1082 = vpop.f32.mrb[0].mxu0
      %v1083 = vpop.f32.mrb[0].mxu0
      %v1084 = vadd.f32 0.0, %v1083
      %v1085 = vpop.f32.mrb[0].mxu0
      %1086 = vmatprep.mubr.bf16.mxu0 0
      %1087 = vmatmul.mubr.bf16.gmra.mrb[0].mxu0 %v954
      %v1088 = vpop.f32.mrb[0].mxu0
      %v1089 = vadd.f32 0.0, %v1088
      %v1090 = vpop.f32.mrb[0].mxu0
      %v1091 = vpop.f32.mrb[0].mxu0
      %v1092 = vadd.f32 0.0, %v1091
      %v1093 = vpop.f32.mrb[0].mxu0
      %1094 = vmatprep.mubr.bf16.mxu0 0
      %1095 = vmatmul.mubr.bf16.gmra.mrb[0].mxu0 %v957
      %v1096 = vpop.f32.mrb[0].mxu0
      %v1097 = vadd.f32 0.0, %v1096
      %v1098 = vpop.f32.mrb[0].mxu0
      %v1099 = vpop.f32.mrb[0].mxu0
      %v1100 = vadd.f32 0.0, %v1099
      %v1101 = vpop.f32.mrb[0].mxu0
      %1102 = vdwg.mxu0
      %v1103 = vadd.f32 %v740, %v1000
      %v1104 = vadd.f32 %v742, %v1002
      %v1105 = vadd.f32 %v813, %v1073
      %v1106 = vadd.f32 %v744, %v1004
      %v1107 = vadd.f32 %v746, %v1006
      %v1108 = vadd.f32 %v816, %v1076
      %v1109 = vadd.f32 %v750, %v1010
      %v1110 = vadd.f32 %v752, %v1012
      %v1111 = vadd.f32 %v821, %v1081
      %v1112 = vadd.f32 %v754, %v1014
      %v1113 = vadd.f32 %v756, %v1016
      %v1114 = vadd.f32 %v824, %v1084
      %v1115 = vadd.f32 %v760, %v1020
      %v1116 = vadd.f32 %v762, %v1022
      %v1117 = vadd.f32 %v829, %v1089
      %v1118 = vadd.f32 %v764, %v1024
      %v1119 = vadd.f32 %v766, %v1026
      %v1120 = vadd.f32 %v832, %v1092
      %v1121 = vadd.f32 %v770, %v1030
      %v1122 = vadd.f32 %v772, %v1032
      %v1123 = vadd.f32 %v837, %v1097
      %v1124 = vadd.f32 %v774, %v1034
      %v1125 = vadd.f32 %v776, %v1036
      %v1126 = vadd.f32 %v840, %v1100
      %v1127 = vld [vmem:[%s3] sm:$0xff]
      %v1128 = vld [vmem:[%s3 + $0x8] sm:$0xff]
      %v1129 = vld [vmem:[%s3 + $0x10] sm:$0xff]
      %v1130 = vld [vmem:[%s3 + $0x18] sm:$0xff]
      %v1131 = vld [vmem:[%s3 + $0x20] sm:$0xff]
      %v1132 = vld [vmem:[%s3 + $0x28] sm:$0xff]
      %v1133 = vld [vmem:[%s3 + $0x30] sm:$0xff]
      %v1134 = vld [vmem:[%s3 + $0x38] sm:$0xff]
      %1136 = vset.pattern.permute.xlu0 0
      %1137 = vperm.xlu0 %1136, %v1127
      %v1138 = vpop.permute.xlu0 %1137
      %1141 = vset.pattern.permute.xlu0 0
      %1142 = vperm.xlu0 %1141, %v1128
      %v1143 = vpop.permute.xlu0 %1142
      %1146 = vset.pattern.permute.xlu0 0
      %1147 = vperm.xlu0 %1146, %v1129
      %v1148 = vpop.permute.xlu0 %1147
      %1151 = vset.pattern.permute.xlu0 0
      %1152 = vperm.xlu0 %1151, %v1130
      %v1153 = vpop.permute.xlu0 %1152
      %1156 = vset.pattern.permute.xlu0 0
      %1157 = vperm.xlu0 %1156, %v1131
      %v1158 = vpop.permute.xlu0 %1157
      %1161 = vset.pattern.permute.xlu0 0
      %1162 = vperm.xlu0 %1161, %v1132
      %v1163 = vpop.permute.xlu0 %1162
      %1166 = vset.pattern.permute.xlu0 0
      %1167 = vperm.xlu0 %1166, %v1133
      %v1168 = vpop.permute.xlu0 %1167
      %1171 = vset.pattern.permute.xlu0 0
      %1172 = vperm.xlu0 %1171, %v1134
      %v1173 = vpop.permute.xlu0 %1172
      %v1175 = vadd.f32 %v1103, %v1138
      %v1176 = vadd.f32 %v1104, %v1138
      %v1177 = vadd.f32 %v1105, %v1138
      %v1178 = vadd.f32 %v1106, %v1143
      %v1179 = vadd.f32 %v1107, %v1143
      %v1180 = vadd.f32 %v1108, %v1143
      %v1181 = vadd.f32 %v1109, %v1148
      %v1182 = vadd.f32 %v1110, %v1148
      %v1183 = vadd.f32 %v1111, %v1148
      %v1184 = vadd.f32 %v1112, %v1153
      %v1185 = vadd.f32 %v1113, %v1153
      %v1186 = vadd.f32 %v1114, %v1153
      %v1187 = vadd.f32 %v1115, %v1158
      %v1188 = vadd.f32 %v1116, %v1158
      %v1189 = vadd.f32 %v1117, %v1158
      %v1190 = vadd.f32 %v1118, %v1163
      %v1191 = vadd.f32 %v1119, %v1163
      %v1192 = vadd.f32 %v1120, %v1163
      %v1193 = vadd.f32 %v1121, %v1168
      %v1194 = vadd.f32 %v1122, %v1168
      %v1195 = vadd.f32 %v1123, %v1168
      %v1196 = vadd.f32 %v1124, %v1173
      %v1197 = vadd.f32 %v1125, %v1173
      %v1198 = vadd.f32 %v1126, %v1173
      %v1199 = vmax.f32 %v1175, 0.0
      %v1200 = vmax.f32 %v1176, 0.0
      %v1201 = vmax.f32 %v1177, 0.0
      %v1202 = vmax.f32 %v1178, 0.0
      %v1203 = vmax.f32 %v1179, 0.0
      %v1204 = vmax.f32 %v1180, 0.0
      %v1205 = vmax.f32 %v1181, 0.0
      %v1206 = vmax.f32 %v1182, 0.0
      %v1207 = vmax.f32 %v1183, 0.0
      %v1208 = vmax.f32 %v1184, 0.0
      %v1209 = vmax.f32 %v1185, 0.0
      %v1210 = vmax.f32 %v1186, 0.0
      %v1211 = vmax.f32 %v1187, 0.0
      %v1212 = vmax.f32 %v1188, 0.0
      %v1213 = vmax.f32 %v1189, 0.0
      %v1214 = vmax.f32 %v1190, 0.0
      %v1215 = vmax.f32 %v1191, 0.0
      %v1216 = vmax.f32 %v1192, 0.0
      %v1217 = vmax.f32 %v1193, 0.0
      %v1218 = vmax.f32 %v1194, 0.0
      %v1219 = vmax.f32 %v1195, 0.0
      %v1220 = vmax.f32 %v1196, 0.0
      %v1221 = vmax.f32 %v1197, 0.0
      %v1222 = vmax.f32 %v1198, 0.0
      %v1224 = vlaneseq
      %v1225 = vshrl.u32 %v1224, 7
      %v1226 = vsub.s32 0, %v1225
      %v1227 = vrot.slane %v304, %v1226
      %v1228 = vlaneseq
      %v1229 = vshrl.u32 %v1228, 7
      %v1230 = vsub.s32 1, %v1229
      %v1231 = vrot.slane %v304, %v1230
      %v1232 = vlaneseq
      %v1233 = vshrl.u32 %v1232, 7
      %v1234 = vsub.s32 2, %v1233
      %v1235 = vrot.slane %v304, %v1234
      %v1239 = vmul.f32 %v1199, %v1227
      %v1240 = vmul.f32 %v1200, %v1231
      %v1241 = vmul.f32 %v1201, %v1235
      %v1242 = vmul.f32 %v1202, %v1227
      %v1243 = vmul.f32 %v1203, %v1231
      %v1244 = vmul.f32 %v1204, %v1235
      %v1245 = vmul.f32 %v1205, %v1227
      %v1246 = vmul.f32 %v1206, %v1231
      %v1247 = vmul.f32 %v1207, %v1235
      %v1248 = vmul.f32 %v1208, %v1227
      %v1249 = vmul.f32 %v1209, %v1231
      %v1250 = vmul.f32 %v1210, %v1235
      %v1251 = vmul.f32 %v1211, %v1227
      %v1252 = vmul.f32 %v1212, %v1231
      %v1253 = vmul.f32 %v1213, %v1235
      %v1254 = vmul.f32 %v1214, %v1227
      %v1255 = vmul.f32 %v1215, %v1231
      %v1256 = vmul.f32 %v1216, %v1235
      %v1257 = vmul.f32 %v1217, %v1227
      %v1258 = vmul.f32 %v1218, %v1231
      %v1259 = vmul.f32 %v1219, %v1235
      %v1260 = vmul.f32 %v1220, %v1227
      %v1261 = vmul.f32 %v1221, %v1231
      %v1262 = vmul.f32 %v1222, %v1235
      %v1263 = vpack.c.bf16 %v1242, %v1239
      %v1264 = vpack.c.bf16 %v1243, %v1240
      %v1265 = vpack.c.bf16 %v1244, %v1241
      %v1266 = vpack.c.bf16 %v1248, %v1245
      %v1267 = vpack.c.bf16 %v1249, %v1246
      %v1268 = vpack.c.bf16 %v1250, %v1247
      %v1269 = vpack.c.bf16 %v1254, %v1251
      %v1270 = vpack.c.bf16 %v1255, %v1252
      %v1271 = vpack.c.bf16 %v1256, %v1253
      %v1272 = vpack.c.bf16 %v1260, %v1257
      %v1273 = vpack.c.bf16 %v1261, %v1258
      %v1274 = vpack.c.bf16 %v1262, %v1259
      %1275 = vst [vmem:[#allocation2] sm:$0xff] %v1263
      %1276 = vst [vmem:[#allocation2 + $0x8] sm:$0xff] %v1264
      %vm1277 = vcmask 556032
      %1278 = vst.msk [vmem:[#allocation2 + $0x10] sm:$0xff] %vm1277, %v1265
      %1279 = vst [vmem:[#allocation2 + $0x18] sm:$0xff] %v1266
      %1280 = vst [vmem:[#allocation2 + $0x20] sm:$0xff] %v1267
      %1281 = vst.msk [vmem:[#allocation2 + $0x28] sm:$0xff] %vm1277, %v1268
      %1282 = vst [vmem:[#allocation2 + $0x30] sm:$0xff] %v1269
      %1283 = vst [vmem:[#allocation2 + $0x38] sm:$0xff] %v1270
      %1284 = vst.msk [vmem:[#allocation2 + $0x40] sm:$0xff] %vm1277, %v1271
      %1285 = vst [vmem:[#allocation2 + $0x48] sm:$0xff] %v1272
      %1286 = vst [vmem:[#allocation2 + $0x50] sm:$0xff] %v1273
      %1287 = vst.msk [vmem:[#allocation2 + $0x58] sm:$0xff] %vm1277, %v1274
      %v1288 = vld [vmem:[#allocation2] sm:$0xff]
      %v1289 = vld [vmem:[#allocation2 + $0x8] sm:$0xff]
      %v1290 = vld [vmem:[#allocation2 + $0x10] sm:$0xff]
      %v1291 = vld [vmem:[#allocation2 + $0x18] sm:$0xff]
      %v1292 = vld [vmem:[#allocation2 + $0x20] sm:$0xff]
      %v1293 = vld [vmem:[#allocation2 + $0x28] sm:$0xff]
      %v1294 = vld [vmem:[#allocation2 + $0x30] sm:$0xff]
      %v1295 = vld [vmem:[#allocation2 + $0x38] sm:$0xff]
      %v1296 = vld [vmem:[#allocation2 + $0x40] sm:$0xff]
      %v1297 = vld [vmem:[#allocation2 + $0x48] sm:$0xff]
      %v1298 = vld [vmem:[#allocation2 + $0x50] sm:$0xff]
      %v1299 = vld [vmem:[#allocation2 + $0x58] sm:$0xff]
      %1304 = vrot.lane.b32.xlu0 %v1290, 79
      %v1305 = vpop.permute.xlu0 %1304
      %1306 = vrot.lane.b32.xlu0 %v1293, 79
      %v1307 = vpop.permute.xlu0 %1306
      %1308 = vrot.lane.b32.xlu0 %v1296, 79
      %v1309 = vpop.permute.xlu0 %1308
      %1310 = vrot.lane.b32.xlu0 %v1299, 79
      %v1311 = vpop.permute.xlu0 %1310
      %1320 = vrot.lane.b32.xlu0 %v1288, 19
      %v1321 = vpop.permute.xlu0 %1320
      %1322 = vrot.lane.b32.xlu0 %v1289, 19
      %v1323 = vpop.permute.xlu0 %1322
      %1324 = vrot.lane.b32.xlu0 %v1290, 19
      %v1325 = vpop.permute.xlu0 %1324
      %1326 = vrot.lane.b32.xlu0 %v1291, 19
      %v1327 = vpop.permute.xlu0 %1326
      %1328 = vrot.lane.b32.xlu0 %v1292, 19
      %v1329 = vpop.permute.xlu0 %1328
      %1330 = vrot.lane.b32.xlu0 %v1293, 19
      %v1331 = vpop.permute.xlu0 %1330
      %1332 = vrot.lane.b32.xlu0 %v1294, 19
      %v1333 = vpop.permute.xlu0 %1332
      %1334 = vrot.lane.b32.xlu0 %v1295, 19
      %v1335 = vpop.permute.xlu0 %1334
      %1336 = vrot.lane.b32.xlu0 %v1296, 19
      %v1337 = vpop.permute.xlu0 %1336
      %1338 = vrot.lane.b32.xlu0 %v1297, 19
      %v1339 = vpop.permute.xlu0 %1338
      %1340 = vrot.lane.b32.xlu0 %v1298, 19
      %v1341 = vpop.permute.xlu0 %1340
      %1342 = vrot.lane.b32.xlu0 %v1299, 19
      %v1343 = vpop.permute.xlu0 %1342
      %v1344 = vsel %vm338, %v1321, %v1323
      %v1345 = vsel %vm338, %v1323, %v1325
      %v1346 = vsel %vm338, %v1327, %v1329
      %v1347 = vsel %vm338, %v1329, %v1331
      %v1348 = vsel %vm338, %v1333, %v1335
      %v1349 = vsel %vm338, %v1335, %v1337
      %v1350 = vsel %vm338, %v1339, %v1341
      %v1351 = vsel %vm338, %v1341, %v1343
      %v1362 = vsel %vm343, %v1305, %v1321
      %v1366 = vsel %vm343, %v1307, %v1327
      %v1370 = vsel %vm343, %v1309, %v1333
      %v1374 = vsel %vm343, %v1311, %v1339
      %1376 = vrot.lane.b32.xlu0 %v1290, 78
      %v1377 = vpop.permute.xlu0 %1376
      %1378 = vrot.lane.b32.xlu0 %v1293, 78
      %v1379 = vpop.permute.xlu0 %1378
      %1380 = vrot.lane.b32.xlu0 %v1296, 78
      %v1381 = vpop.permute.xlu0 %1380
      %1382 = vrot.lane.b32.xlu0 %v1299, 78
      %v1383 = vpop.permute.xlu0 %1382
      %1384 = vrot.lane.b32.xlu0 %v1288, 18
      %v1385 = vpop.permute.xlu0 %1384
      %1386 = vrot.lane.b32.xlu0 %v1289, 18
      %v1387 = vpop.permute.xlu0 %1386
      %1388 = vrot.lane.b32.xlu0 %v1290, 18
      %v1389 = vpop.permute.xlu0 %1388
      %1390 = vrot.lane.b32.xlu0 %v1291, 18
      %v1391 = vpop.permute.xlu0 %1390
      %1392 = vrot.lane.b32.xlu0 %v1292, 18
      %v1393 = vpop.permute.xlu0 %1392
      %1394 = vrot.lane.b32.xlu0 %v1293, 18
      %v1395 = vpop.permute.xlu0 %1394
      %1396 = vrot.lane.b32.xlu0 %v1294, 18
      %v1397 = vpop.permute.xlu0 %1396
      %1398 = vrot.lane.b32.xlu0 %v1295, 18
      %v1399 = vpop.permute.xlu0 %1398
      %1400 = vrot.lane.b32.xlu0 %v1296, 18
      %v1401 = vpop.permute.xlu0 %1400
      %1402 = vrot.lane.b32.xlu0 %v1297, 18
      %v1403 = vpop.permute.xlu0 %1402
      %1404 = vrot.lane.b32.xlu0 %v1298, 18
      %v1405 = vpop.permute.xlu0 %1404
      %1406 = vrot.lane.b32.xlu0 %v1299, 18
      %v1407 = vpop.permute.xlu0 %1406
      %v1408 = vsel %vm356, %v1385, %v1387
      %v1409 = vsel %vm356, %v1387, %v1389
      %v1410 = vsel %vm356, %v1391, %v1393
      %v1411 = vsel %vm356, %v1393, %v1395
      %v1412 = vsel %vm356, %v1397, %v1399
      %v1413 = vsel %vm356, %v1399, %v1401
      %v1414 = vsel %vm356, %v1403, %v1405
      %v1415 = vsel %vm356, %v1405, %v1407
      %v1426 = vsel %vm359, %v1377, %v1385
      %v1430 = vsel %vm359, %v1379, %v1391
      %v1434 = vsel %vm359, %v1381, %v1397
      %v1438 = vsel %vm359, %v1383, %v1403
      %1440 = vrot.lane.b32.xlu0 %v1290, 77
      %v1441 = vpop.permute.xlu0 %1440
      %1442 = vrot.lane.b32.xlu0 %v1293, 77
      %v1443 = vpop.permute.xlu0 %1442
      %1444 = vrot.lane.b32.xlu0 %v1296, 77
      %v1445 = vpop.permute.xlu0 %1444
      %1446 = vrot.lane.b32.xlu0 %v1299, 77
      %v1447 = vpop.permute.xlu0 %1446
      %1448 = vrot.lane.b32.xlu0 %v1288, 17
      %v1449 = vpop.permute.xlu0 %1448
      %1450 = vrot.lane.b32.xlu0 %v1289, 17
      %v1451 = vpop.permute.xlu0 %1450
      %1452 = vrot.lane.b32.xlu0 %v1290, 17
      %v1453 = vpop.permute.xlu0 %1452
      %1454 = vrot.lane.b32.xlu0 %v1291, 17
      %v1455 = vpop.permute.xlu0 %1454
      %1456 = vrot.lane.b32.xlu0 %v1292, 17
      %v1457 = vpop.permute.xlu0 %1456
      %1458 = vrot.lane.b32.xlu0 %v1293, 17
      %v1459 = vpop.permute.xlu0 %1458
      %1460 = vrot.lane.b32.xlu0 %v1294, 17
      %v1461 = vpop.permute.xlu0 %1460
      %1462 = vrot.lane.b32.xlu0 %v1295, 17
      %v1463 = vpop.permute.xlu0 %1462
      %1464 = vrot.lane.b32.xlu0 %v1296, 17
      %v1465 = vpop.permute.xlu0 %1464
      %1466 = vrot.lane.b32.xlu0 %v1297, 17
      %v1467 = vpop.permute.xlu0 %1466
      %1468 = vrot.lane.b32.xlu0 %v1298, 17
      %v1469 = vpop.permute.xlu0 %1468
      %1470 = vrot.lane.b32.xlu0 %v1299, 17
      %v1471 = vpop.permute.xlu0 %1470
      %v1472 = vsel %vm371, %v1449, %v1451
      %v1473 = vsel %vm371, %v1451, %v1453
      %v1474 = vsel %vm371, %v1455, %v1457
      %v1475 = vsel %vm371, %v1457, %v1459
      %v1476 = vsel %vm371, %v1461, %v1463
      %v1477 = vsel %vm371, %v1463, %v1465
      %v1478 = vsel %vm371, %v1467, %v1469
      %v1479 = vsel %vm371, %v1469, %v1471
      %v1490 = vsel %vm374, %v1441, %v1449
      %v1494 = vsel %vm374, %v1443, %v1455
      %v1498 = vsel %vm374, %v1445, %v1461
      %v1502 = vsel %vm374, %v1447, %v1467
      %v1504 = vld [vmem:[%s4] sm:$0xff]
      %v1505 = vld [vmem:[%s4 + $0x8] sm:$0xff]
      %v1506 = vld [vmem:[%s4 + $0x10] sm:$0xff]
      %v1507 = vld [vmem:[%s4 + $0x18] sm:$0xff]
      %v1508 = vld [vmem:[%s4 + $0x20] sm:$0xff]
      %v1509 = vld [vmem:[%s4 + $0x28] sm:$0xff]
      %v1510 = vld [vmem:[%s4 + $0x30] sm:$0xff]
      %v1511 = vld [vmem:[%s4 + $0x38] sm:$0xff]
      %1512 = vrot.lane.b32.xlu0 %v1290, 61
      %v1513 = vpop.permute.xlu0 %1512
      %1514 = vrot.lane.b32.xlu0 %v1293, 61
      %v1515 = vpop.permute.xlu0 %1514
      %1516 = vrot.lane.b32.xlu0 %v1296, 61
      %v1517 = vpop.permute.xlu0 %1516
      %1518 = vrot.lane.b32.xlu0 %v1299, 61
      %v1519 = vpop.permute.xlu0 %1518
      %1520 = vrot.lane.b32.xlu0 %v1288, 1
      %v1521 = vpop.permute.xlu0 %1520
      %1522 = vrot.lane.b32.xlu0 %v1289, 1
      %v1523 = vpop.permute.xlu0 %1522
      %1524 = vrot.lane.b32.xlu0 %v1290, 1
      %v1525 = vpop.permute.xlu0 %1524
      %1526 = vrot.lane.b32.xlu0 %v1291, 1
      %v1527 = vpop.permute.xlu0 %1526
      %1528 = vrot.lane.b32.xlu0 %v1292, 1
      %v1529 = vpop.permute.xlu0 %1528
      %1530 = vrot.lane.b32.xlu0 %v1293, 1
      %v1531 = vpop.permute.xlu0 %1530
      %1532 = vrot.lane.b32.xlu0 %v1294, 1
      %v1533 = vpop.permute.xlu0 %1532
      %1534 = vrot.lane.b32.xlu0 %v1295, 1
      %v1535 = vpop.permute.xlu0 %1534
      %1536 = vrot.lane.b32.xlu0 %v1296, 1
      %v1537 = vpop.permute.xlu0 %1536
      %1538 = vrot.lane.b32.xlu0 %v1297, 1
      %v1539 = vpop.permute.xlu0 %1538
      %1540 = vrot.lane.b32.xlu0 %v1298, 1
      %v1541 = vpop.permute.xlu0 %1540
      %1542 = vrot.lane.b32.xlu0 %v1299, 1
      %v1543 = vpop.permute.xlu0 %1542
      %v1544 = vsel %vm425, %v1521, %v1523
      %v1545 = vsel %vm425, %v1523, %v1525
      %v1546 = vsel %vm425, %v1527, %v1529
      %v1547 = vsel %vm425, %v1529, %v1531
      %v1548 = vsel %vm425, %v1533, %v1535
      %v1549 = vsel %vm425, %v1535, %v1537
      %v1550 = vsel %vm425, %v1539, %v1541
      %v1551 = vsel %vm425, %v1541, %v1543
      %v1562 = vsel %vm430, %v1513, %v1521
      %v1566 = vsel %vm430, %v1515, %v1527
      %v1570 = vsel %vm430, %v1517, %v1533
      %v1574 = vsel %vm430, %v1519, %v1539
      %1576 = vrot.lane.b32.xlu0 %v1288, 127
      %v1577 = vpop.permute.xlu0 %1576
      %1578 = vrot.lane.b32.xlu0 %v1289, 127
      %v1579 = vpop.permute.xlu0 %1578
      %1580 = vrot.lane.b32.xlu0 %v1290, 127
      %v1581 = vpop.permute.xlu0 %1580
      %1582 = vrot.lane.b32.xlu0 %v1291, 127
      %v1583 = vpop.permute.xlu0 %1582
      %1584 = vrot.lane.b32.xlu0 %v1292, 127
      %v1585 = vpop.permute.xlu0 %1584
      %1586 = vrot.lane.b32.xlu0 %v1293, 127
      %v1587 = vpop.permute.xlu0 %1586
      %1588 = vrot.lane.b32.xlu0 %v1294, 127
      %v1589 = vpop.permute.xlu0 %1588
      %1590 = vrot.lane.b32.xlu0 %v1295, 127
      %v1591 = vpop.permute.xlu0 %1590
      %1592 = vrot.lane.b32.xlu0 %v1296, 127
      %v1593 = vpop.permute.xlu0 %1592
      %1594 = vrot.lane.b32.xlu0 %v1297, 127
      %v1595 = vpop.permute.xlu0 %1594
      %1596 = vrot.lane.b32.xlu0 %v1298, 127
      %v1597 = vpop.permute.xlu0 %1596
      %1598 = vrot.lane.b32.xlu0 %v1299, 127
      %v1599 = vpop.permute.xlu0 %1598
      %v1600 = vsel %vm441, %v1577, %v1579
      %v1601 = vsel %vm441, %v1579, %v1581
      %v1602 = vsel %vm441, %v1583, %v1585
      %v1603 = vsel %vm441, %v1585, %v1587
      %v1604 = vsel %vm441, %v1589, %v1591
      %v1605 = vsel %vm441, %v1591, %v1593
      %v1606 = vsel %vm441, %v1595, %v1597
      %v1607 = vsel %vm441, %v1597, %v1599
      %1616 = vrot.lane.b32.xlu0 %v1288, 67
      %v1617 = vpop.permute.xlu0 %1616
      %1618 = vrot.lane.b32.xlu0 %v1291, 67
      %v1619 = vpop.permute.xlu0 %1618
      %1620 = vrot.lane.b32.xlu0 %v1294, 67
      %v1621 = vpop.permute.xlu0 %1620
      %1622 = vrot.lane.b32.xlu0 %v1297, 67
      %v1623 = vpop.permute.xlu0 %1622
      %v1626 = vsel %vm446, %v1581, %v1617
      %v1630 = vsel %vm446, %v1587, %v1619
      %v1634 = vsel %vm446, %v1593, %v1621
      %v1638 = vsel %vm446, %v1599, %v1623
      %s1640 = scalar_lea.vmem %s4, 64
      %v1641 = vld [vmem:[%s1640] sm:$0xff]
      %v1642 = vld [vmem:[%s1640 + $0x8] sm:$0xff]
      %v1643 = vld [vmem:[%s1640 + $0x10] sm:$0xff]
      %v1644 = vld [vmem:[%s1640 + $0x18] sm:$0xff]
      %v1645 = vld [vmem:[%s1640 + $0x20] sm:$0xff]
      %v1646 = vld [vmem:[%s1640 + $0x28] sm:$0xff]
      %v1647 = vld [vmem:[%s1640 + $0x30] sm:$0xff]
      %v1648 = vld [vmem:[%s1640 + $0x38] sm:$0xff]
      %v1657 = vunpack.c.l.b16 %v1641
      %v1658 = vunpack.c.h.b16 %v1641
      %v1659 = vunpack.c.l.b16 %v1642
      %v1660 = vunpack.c.h.b16 %v1642
      %v1661 = vunpack.c.l.b16 %v1643
      %v1662 = vunpack.c.h.b16 %v1643
      %v1663 = vunpack.c.l.b16 %v1644
      %v1664 = vunpack.c.h.b16 %v1644
      %v1665 = vunpack.c.l.b16 %v1645
      %v1666 = vunpack.c.h.b16 %v1645
      %v1667 = vunpack.c.l.b16 %v1646
      %v1668 = vunpack.c.h.b16 %v1646
      %v1669 = vunpack.c.l.b16 %v1647
      %v1670 = vunpack.c.h.b16 %v1647
      %v1671 = vunpack.c.l.b16 %v1648
      %v1672 = vunpack.c.h.b16 %v1648
      %v1673 = vpack.c.b16 %v1659, %v1657
      %v1674 = vpack.c.b16 %v1660, %v1658
      %v1675 = vpack.c.b16 %v1663, %v1661
      %v1676 = vpack.c.b16 %v1664, %v1662
      %v1677 = vpack.c.b16 %v1667, %v1665
      %v1678 = vpack.c.b16 %v1668, %v1666
      %v1679 = vpack.c.b16 %v1671, %v1669
      %v1680 = vpack.c.b16 %v1672, %v1670
      %vm1685 = vcmask 523264
      %v1687 = vsel %vm1685, %v1674, 0
      %v1690 = vsel %vm1685, %v1676, 0
      %v1693 = vsel %vm1685, %v1678, 0
      %v1696 = vsel %vm1685, %v1680, 0
      %1698 = vmatprep.subr.bf16.mxu0 %v1544
      %1699 = vmatpush1.bf16.msra.mxu0 %v1562
      %1700 = vmatprep.subr.bf16.mxu0 %v1546
      %1701 = vmatpush1.bf16.msra.mxu0 %v1566
      %1702 = vmatprep.subr.bf16.mxu0 %v1548
      %1703 = vmatpush1.bf16.msra.mxu0 %v1570
      %1704 = vmatprep.subr.bf16.mxu0 %v1550
      %1705 = vmatpush1.bf16.msra.mxu0 %v1574
      %1706 = vmatprep.subr.bf16.mxu0 %v1289
      %1707 = vmatpush1.bf16.msra.mxu0 %v1288
      %1708 = vmatprep.subr.bf16.mxu0 %v1292
      %1709 = vmatpush1.bf16.msra.mxu0 %v1291
      %1710 = vmatprep.subr.bf16.mxu0 %v1295
      %1711 = vmatpush1.bf16.msra.mxu0 %v1294
      %1712 = vmatprep.subr.bf16.mxu0 %v1298
      %1713 = vmatpush1.bf16.msra.mxu0 %v1297
      %1714 = vmatprep.subr.bf16.mxu0 %v1601
      %1715 = vmatpush1.bf16.msra.mxu0 %v1600
      %1716 = vmatprep.subr.bf16.mxu0 %v1603
      %1717 = vmatpush1.bf16.msra.mxu0 %v1602
      %1718 = vmatprep.subr.bf16.mxu0 %v1605
      %1719 = vmatpush1.bf16.msra.mxu0 %v1604
      %1720 = vmatprep.subr.bf16.mxu0 %v1607
      %1721 = vmatpush1.bf16.msra.mxu0 %v1606
      %1722 = vmatprep.subr.bf16.mxu0 0
      %1723 = vmatpush1.bf16.msra.mxu0 0
      %1724 = vmatprep.subr.bf16.mxu0 0
      %1725 = vmatpush1.bf16.msra.mxu0 0
      %1726 = vmatprep.subr.bf16.mxu0 0
      %1727 = vmatpush1.bf16.msra.mxu0 0
      %1728 = vmatprep.subr.bf16.mxu0 0
      %1729 = vmatpush1.bf16.msra.mxu0 0
      %1730 = vmatprep.mubr.bf16.mxu0 %v1687
      %1731 = vmatmul.mubr.bf16.gmra.mrb[0].mxu0 %v1673
      %v1732 = vpop.f32.mrb[0].mxu0
      %v1733 = vadd.f32 0.0, %v1732
      %v1734 = vpop.f32.mrb[0].mxu0
      %v1735 = vadd.f32 0.0, %v1734
      %v1736 = vpop.f32.mrb[0].mxu0
      %v1737 = vadd.f32 0.0, %v1736
      %v1738 = vpop.f32.mrb[0].mxu0
      %v1739 = vadd.f32 0.0, %v1738
      %1740 = vmatprep.mubr.bf16.mxu0 %v1690
      %1741 = vmatmul.mubr.bf16.gmra.mrb[0].mxu0 %v1675
      %v1742 = vpop.f32.mrb[0].mxu0
      %v1743 = vadd.f32 0.0, %v1742
      %v1744 = vpop.f32.mrb[0].mxu0
      %v1745 = vadd.f32 0.0, %v1744
      %v1746 = vpop.f32.mrb[0].mxu0
      %v1747 = vadd.f32 0.0, %v1746
      %v1748 = vpop.f32.mrb[0].mxu0
      %v1749 = vadd.f32 0.0, %v1748
      %1750 = vmatprep.mubr.bf16.mxu0 %v1693
      %1751 = vmatmul.mubr.bf16.gmra.mrb[0].mxu0 %v1677
      %v1752 = vpop.f32.mrb[0].mxu0
      %v1753 = vadd.f32 0.0, %v1752
      %v1754 = vpop.f32.mrb[0].mxu0
      %v1755 = vadd.f32 0.0, %v1754
      %v1756 = vpop.f32.mrb[0].mxu0
      %v1757 = vadd.f32 0.0, %v1756
      %v1758 = vpop.f32.mrb[0].mxu0
      %v1759 = vadd.f32 0.0, %v1758
      %1760 = vmatprep.mubr.bf16.mxu0 %v1696
      %1761 = vmatmul.mubr.bf16.gmra.mrb[0].mxu0 %v1679
      %v1762 = vpop.f32.mrb[0].mxu0
      %v1763 = vadd.f32 0.0, %v1762
      %v1764 = vpop.f32.mrb[0].mxu0
      %v1765 = vadd.f32 0.0, %v1764
      %v1766 = vpop.f32.mrb[0].mxu0
      %v1767 = vadd.f32 0.0, %v1766
      %v1768 = vpop.f32.mrb[0].mxu0
      %v1769 = vadd.f32 0.0, %v1768
      %1770 = vdwg.mxu0
      %1771 = vmatprep.subr.bf16.mxu0 0
      %1772 = vmatpush1.bf16.msra.mxu0 %v1545
      %1773 = vmatprep.subr.bf16.mxu0 0
      %1774 = vmatpush1.bf16.msra.mxu0 %v1547
      %1775 = vmatprep.subr.bf16.mxu0 0
      %1776 = vmatpush1.bf16.msra.mxu0 %v1549
      %1777 = vmatprep.subr.bf16.mxu0 0
      %1778 = vmatpush1.bf16.msra.mxu0 %v1551
      %1779 = vmatprep.subr.bf16.mxu0 0
      %1780 = vmatpush1.bf16.msra.mxu0 %v1290
      %1781 = vmatprep.subr.bf16.mxu0 0
      %1782 = vmatpush1.bf16.msra.mxu0 %v1293
      %1783 = vmatprep.subr.bf16.mxu0 0
      %1784 = vmatpush1.bf16.msra.mxu0 %v1296
      %1785 = vmatprep.subr.bf16.mxu0 0
      %1786 = vmatpush1.bf16.msra.mxu0 %v1299
      %1787 = vmatprep.subr.bf16.mxu0 0
      %1788 = vmatpush1.bf16.msra.mxu0 %v1626
      %1789 = vmatprep.subr.bf16.mxu0 0
      %1790 = vmatpush1.bf16.msra.mxu0 %v1630
      %1791 = vmatprep.subr.bf16.mxu0 0
      %1792 = vmatpush1.bf16.msra.mxu0 %v1634
      %1793 = vmatprep.subr.bf16.mxu0 0
      %1794 = vmatpush1.bf16.msra.mxu0 %v1638
      %1795 = vmatprep.subr.bf16.mxu0 0
      %1796 = vmatpush1.bf16.msra.mxu0 0
      %1797 = vmatprep.subr.bf16.mxu0 0
      %1798 = vmatpush1.bf16.msra.mxu0 0
      %1799 = vmatprep.subr.bf16.mxu0 0
      %1800 = vmatpush1.bf16.msra.mxu0 0
      %1801 = vmatprep.subr.bf16.mxu0 0
      %1802 = vmatpush1.bf16.msra.mxu0 0
      %1803 = vmatprep.mubr.bf16.mxu0 %v1687
      %1804 = vmatmul.mubr.bf16.gmra.mrb[0].mxu0 %v1673
      %v1805 = vpop.f32.mrb[0].mxu0
      %v1806 = vadd.f32 0.0, %v1805
      %v1807 = vpop.f32.mrb[0].mxu0
      %v1808 = vpop.f32.mrb[0].mxu0
      %v1809 = vadd.f32 0.0, %v1808
      %v1810 = vpop.f32.mrb[0].mxu0
      %1811 = vmatprep.mubr.bf16.mxu0 %v1690
      %1812 = vmatmul.mubr.bf16.gmra.mrb[0].mxu0 %v1675
      %v1813 = vpop.f32.mrb[0].mxu0
      %v1814 = vadd.f32 0.0, %v1813
      %v1815 = vpop.f32.mrb[0].mxu0
      %v1816 = vpop.f32.mrb[0].mxu0
      %v1817 = vadd.f32 0.0, %v1816
      %v1818 = vpop.f32.mrb[0].mxu0
      %1819 = vmatprep.mubr.bf16.mxu0 %v1693
      %1820 = vmatmul.mubr.bf16.gmra.mrb[0].mxu0 %v1677
      %v1821 = vpop.f32.mrb[0].mxu0
      %v1822 = vadd.f32 0.0, %v1821
      %v1823 = vpop.f32.mrb[0].mxu0
      %v1824 = vpop.f32.mrb[0].mxu0
      %v1825 = vadd.f32 0.0, %v1824
      %v1826 = vpop.f32.mrb[0].mxu0
      %1827 = vmatprep.mubr.bf16.mxu0 %v1696
      %1828 = vmatmul.mubr.bf16.gmra.mrb[0].mxu0 %v1679
      %v1829 = vpop.f32.mrb[0].mxu0
      %v1830 = vadd.f32 0.0, %v1829
      %v1831 = vpop.f32.mrb[0].mxu0
      %v1832 = vpop.f32.mrb[0].mxu0
      %v1833 = vadd.f32 0.0, %v1832
      %v1834 = vpop.f32.mrb[0].mxu0
      %1835 = vdwg.mxu0
      %v1844 = vunpack.c.l.b16 %v1504
      %v1845 = vunpack.c.h.b16 %v1504
      %v1846 = vunpack.c.l.b16 %v1505
      %v1847 = vunpack.c.h.b16 %v1505
      %v1848 = vunpack.c.l.b16 %v1506
      %v1849 = vunpack.c.h.b16 %v1506
      %v1850 = vunpack.c.l.b16 %v1507
      %v1851 = vunpack.c.h.b16 %v1507
      %v1852 = vunpack.c.l.b16 %v1508
      %v1853 = vunpack.c.h.b16 %v1508
      %v1854 = vunpack.c.l.b16 %v1509
      %v1855 = vunpack.c.h.b16 %v1509
      %v1856 = vunpack.c.l.b16 %v1510
      %v1857 = vunpack.c.h.b16 %v1510
      %v1858 = vunpack.c.l.b16 %v1511
      %v1859 = vunpack.c.h.b16 %v1511
      %v1860 = vpack.c.b16 %v1846, %v1844
      %v1861 = vpack.c.b16 %v1847, %v1845
      %v1862 = vpack.c.b16 %v1850, %v1848
      %v1863 = vpack.c.b16 %v1851, %v1849
      %v1864 = vpack.c.b16 %v1854, %v1852
      %v1865 = vpack.c.b16 %v1855, %v1853
      %v1866 = vpack.c.b16 %v1858, %v1856
      %v1867 = vpack.c.b16 %v1859, %v1857
      %v1873 = vsel %vm1685, %v1861, 0
      %v1876 = vsel %vm1685, %v1863, 0
      %v1879 = vsel %vm1685, %v1865, 0
      %v1882 = vsel %vm1685, %v1867, 0
      %1884 = vmatprep.subr.bf16.mxu0 %v1344
      %1885 = vmatpush1.bf16.msra.mxu0 %v1362
      %1886 = vmatprep.subr.bf16.mxu0 %v1346
      %1887 = vmatpush1.bf16.msra.mxu0 %v1366
      %1888 = vmatprep.subr.bf16.mxu0 %v1348
      %1889 = vmatpush1.bf16.msra.mxu0 %v1370
      %1890 = vmatprep.subr.bf16.mxu0 %v1350
      %1891 = vmatpush1.bf16.msra.mxu0 %v1374
      %1892 = vmatprep.subr.bf16.mxu0 %v1408
      %1893 = vmatpush1.bf16.msra.mxu0 %v1426
      %1894 = vmatprep.subr.bf16.mxu0 %v1410
      %1895 = vmatpush1.bf16.msra.mxu0 %v1430
      %1896 = vmatprep.subr.bf16.mxu0 %v1412
      %1897 = vmatpush1.bf16.msra.mxu0 %v1434
      %1898 = vmatprep.subr.bf16.mxu0 %v1414
      %1899 = vmatpush1.bf16.msra.mxu0 %v1438
      %1900 = vmatprep.subr.bf16.mxu0 %v1472
      %1901 = vmatpush1.bf16.msra.mxu0 %v1490
      %1902 = vmatprep.subr.bf16.mxu0 %v1474
      %1903 = vmatpush1.bf16.msra.mxu0 %v1494
      %1904 = vmatprep.subr.bf16.mxu0 %v1476
      %1905 = vmatpush1.bf16.msra.mxu0 %v1498
      %1906 = vmatprep.subr.bf16.mxu0 %v1478
      %1907 = vmatpush1.bf16.msra.mxu0 %v1502
      %1908 = vmatprep.subr.bf16.mxu0 0
      %1909 = vmatpush1.bf16.msra.mxu0 0
      %1910 = vmatprep.subr.bf16.mxu0 0
      %1911 = vmatpush1.bf16.msra.mxu0 0
      %1912 = vmatprep.subr.bf16.mxu0 0
      %1913 = vmatpush1.bf16.msra.mxu0 0
      %1914 = vmatprep.subr.bf16.mxu0 0
      %1915 = vmatpush1.bf16.msra.mxu0 0
      %1916 = vmatprep.mubr.bf16.mxu0 %v1873
      %1917 = vmatmul.mubr.bf16.gmra.mrb[0].mxu0 %v1860
      %v1918 = vpop.f32.mrb[0].mxu0
      %v1919 = vadd.f32 %v1733, %v1918
      %v1920 = vpop.f32.mrb[0].mxu0
      %v1921 = vadd.f32 %v1735, %v1920
      %v1922 = vpop.f32.mrb[0].mxu0
      %v1923 = vadd.f32 %v1737, %v1922
      %v1924 = vpop.f32.mrb[0].mxu0
      %v1925 = vadd.f32 %v1739, %v1924
      %1926 = vmatprep.mubr.bf16.mxu0 %v1876
      %1927 = vmatmul.mubr.bf16.gmra.mrb[0].mxu0 %v1862
      %v1928 = vpop.f32.mrb[0].mxu0
      %v1929 = vadd.f32 %v1743, %v1928
      %v1930 = vpop.f32.mrb[0].mxu0
      %v1931 = vadd.f32 %v1745, %v1930
      %v1932 = vpop.f32.mrb[0].mxu0
      %v1933 = vadd.f32 %v1747, %v1932
      %v1934 = vpop.f32.mrb[0].mxu0
      %v1935 = vadd.f32 %v1749, %v1934
      %1936 = vmatprep.mubr.bf16.mxu0 %v1879
      %1937 = vmatmul.mubr.bf16.gmra.mrb[0].mxu0 %v1864
      %v1938 = vpop.f32.mrb[0].mxu0
      %v1939 = vadd.f32 %v1753, %v1938
      %v1940 = vpop.f32.mrb[0].mxu0
      %v1941 = vadd.f32 %v1755, %v1940
      %v1942 = vpop.f32.mrb[0].mxu0
      %v1943 = vadd.f32 %v1757, %v1942
      %v1944 = vpop.f32.mrb[0].mxu0
      %v1945 = vadd.f32 %v1759, %v1944
      %1946 = vmatprep.mubr.bf16.mxu0 %v1882
      %1947 = vmatmul.mubr.bf16.gmra.mrb[0].mxu0 %v1866
      %v1948 = vpop.f32.mrb[0].mxu0
      %v1949 = vadd.f32 %v1763, %v1948
      %v1950 = vpop.f32.mrb[0].mxu0
      %v1951 = vadd.f32 %v1765, %v1950
      %v1952 = vpop.f32.mrb[0].mxu0
      %v1953 = vadd.f32 %v1767, %v1952
      %v1954 = vpop.f32.mrb[0].mxu0
      %v1955 = vadd.f32 %v1769, %v1954
      %1956 = vdwg.mxu0
      %1957 = vmatprep.subr.bf16.mxu0 0
      %1958 = vmatpush1.bf16.msra.mxu0 %v1345
      %1959 = vmatprep.subr.bf16.mxu0 0
      %1960 = vmatpush1.bf16.msra.mxu0 %v1347
      %1961 = vmatprep.subr.bf16.mxu0 0
      %1962 = vmatpush1.bf16.msra.mxu0 %v1349
      %1963 = vmatprep.subr.bf16.mxu0 0
      %1964 = vmatpush1.bf16.msra.mxu0 %v1351
      %1965 = vmatprep.subr.bf16.mxu0 0
      %1966 = vmatpush1.bf16.msra.mxu0 %v1409
      %1967 = vmatprep.subr.bf16.mxu0 0
      %1968 = vmatpush1.bf16.msra.mxu0 %v1411
      %1969 = vmatprep.subr.bf16.mxu0 0
      %1970 = vmatpush1.bf16.msra.mxu0 %v1413
      %1971 = vmatprep.subr.bf16.mxu0 0
      %1972 = vmatpush1.bf16.msra.mxu0 %v1415
      %1973 = vmatprep.subr.bf16.mxu0 0
      %1974 = vmatpush1.bf16.msra.mxu0 %v1473
      %1975 = vmatprep.subr.bf16.mxu0 0
      %1976 = vmatpush1.bf16.msra.mxu0 %v1475
      %1977 = vmatprep.subr.bf16.mxu0 0
      %1978 = vmatpush1.bf16.msra.mxu0 %v1477
      %1979 = vmatprep.subr.bf16.mxu0 0
      %1980 = vmatpush1.bf16.msra.mxu0 %v1479
      %1981 = vmatprep.subr.bf16.mxu0 0
      %1982 = vmatpush1.bf16.msra.mxu0 0
      %1983 = vmatprep.subr.bf16.mxu0 0
      %1984 = vmatpush1.bf16.msra.mxu0 0
      %1985 = vmatprep.subr.bf16.mxu0 0
      %1986 = vmatpush1.bf16.msra.mxu0 0
      %1987 = vmatprep.subr.bf16.mxu0 0
      %1988 = vmatpush1.bf16.msra.mxu0 0
      %1989 = vmatprep.mubr.bf16.mxu0 %v1873
      %1990 = vmatmul.mubr.bf16.gmra.mrb[0].mxu0 %v1860
      %v1991 = vpop.f32.mrb[0].mxu0
      %v1992 = vadd.f32 %v1806, %v1991
      %v1993 = vpop.f32.mrb[0].mxu0
      %v1994 = vpop.f32.mrb[0].mxu0
      %v1995 = vadd.f32 %v1809, %v1994
      %v1996 = vpop.f32.mrb[0].mxu0
      %1997 = vmatprep.mubr.bf16.mxu0 %v1876
      %1998 = vmatmul.mubr.bf16.gmra.mrb[0].mxu0 %v1862
      %v1999 = vpop.f32.mrb[0].mxu0
      %v2000 = vadd.f32 %v1814, %v1999
      %v2001 = vpop.f32.mrb[0].mxu0
      %v2002 = vpop.f32.mrb[0].mxu0
      %v2003 = vadd.f32 %v1817, %v2002
      %v2004 = vpop.f32.mrb[0].mxu0
      %2005 = vmatprep.mubr.bf16.mxu0 %v1879
      %2006 = vmatmul.mubr.bf16.gmra.mrb[0].mxu0 %v1864
      %v2007 = vpop.f32.mrb[0].mxu0
      %v2008 = vadd.f32 %v1822, %v2007
      %v2009 = vpop.f32.mrb[0].mxu0
      %v2010 = vpop.f32.mrb[0].mxu0
      %v2011 = vadd.f32 %v1825, %v2010
      %v2012 = vpop.f32.mrb[0].mxu0
      %2013 = vmatprep.mubr.bf16.mxu0 %v1882
      %2014 = vmatmul.mubr.bf16.gmra.mrb[0].mxu0 %v1866
      %v2015 = vpop.f32.mrb[0].mxu0
      %v2016 = vadd.f32 %v1830, %v2015
      %v2017 = vpop.f32.mrb[0].mxu0
      %v2018 = vpop.f32.mrb[0].mxu0
      %v2019 = vadd.f32 %v1833, %v2018
      %v2020 = vpop.f32.mrb[0].mxu0
      %2021 = vdwg.mxu0
      %2022 = vrot.lane.b32.xlu0 %v1288, 111
      %v2023 = vpop.permute.xlu0 %2022
      %2024 = vrot.lane.b32.xlu0 %v1289, 111
      %v2025 = vpop.permute.xlu0 %2024
      %2026 = vrot.lane.b32.xlu0 %v1290, 111
      %v2027 = vpop.permute.xlu0 %2026
      %2028 = vrot.lane.b32.xlu0 %v1291, 111
      %v2029 = vpop.permute.xlu0 %2028
      %2030 = vrot.lane.b32.xlu0 %v1292, 111
      %v2031 = vpop.permute.xlu0 %2030
      %2032 = vrot.lane.b32.xlu0 %v1293, 111
      %v2033 = vpop.permute.xlu0 %2032
      %2034 = vrot.lane.b32.xlu0 %v1294, 111
      %v2035 = vpop.permute.xlu0 %2034
      %2036 = vrot.lane.b32.xlu0 %v1295, 111
      %v2037 = vpop.permute.xlu0 %2036
      %2038 = vrot.lane.b32.xlu0 %v1296, 111
      %v2039 = vpop.permute.xlu0 %2038
      %2040 = vrot.lane.b32.xlu0 %v1297, 111
      %v2041 = vpop.permute.xlu0 %2040
      %2042 = vrot.lane.b32.xlu0 %v1298, 111
      %v2043 = vpop.permute.xlu0 %2042
      %2044 = vrot.lane.b32.xlu0 %v1299, 111
      %v2045 = vpop.permute.xlu0 %2044
      %v2046 = vsel %vm849, %v2023, %v2025
      %v2047 = vsel %vm849, %v2025, %v2027
      %v2048 = vsel %vm849, %v2029, %v2031
      %v2049 = vsel %vm849, %v2031, %v2033
      %v2050 = vsel %vm849, %v2035, %v2037
      %v2051 = vsel %vm849, %v2037, %v2039
      %v2052 = vsel %vm849, %v2041, %v2043
      %v2053 = vsel %vm849, %v2043, %v2045
      %2062 = vrot.lane.b32.xlu0 %v1288, 51
      %v2063 = vpop.permute.xlu0 %2062
      %2064 = vrot.lane.b32.xlu0 %v1291, 51
      %v2065 = vpop.permute.xlu0 %2064
      %2066 = vrot.lane.b32.xlu0 %v1294, 51
      %v2067 = vpop.permute.xlu0 %2066
      %2068 = vrot.lane.b32.xlu0 %v1297, 51
      %v2069 = vpop.permute.xlu0 %2068
      %v2072 = vsel %vm856, %v2027, %v2063
      %v2076 = vsel %vm856, %v2033, %v2065
      %v2080 = vsel %vm856, %v2039, %v2067
      %v2084 = vsel %vm856, %v2045, %v2069
      %2086 = vrot.lane.b32.xlu0 %v1288, 110
      %v2087 = vpop.permute.xlu0 %2086
      %2088 = vrot.lane.b32.xlu0 %v1289, 110
      %v2089 = vpop.permute.xlu0 %2088
      %2090 = vrot.lane.b32.xlu0 %v1290, 110
      %v2091 = vpop.permute.xlu0 %2090
      %2092 = vrot.lane.b32.xlu0 %v1291, 110
      %v2093 = vpop.permute.xlu0 %2092
      %2094 = vrot.lane.b32.xlu0 %v1292, 110
      %v2095 = vpop.permute.xlu0 %2094
      %2096 = vrot.lane.b32.xlu0 %v1293, 110
      %v2097 = vpop.permute.xlu0 %2096
      %2098 = vrot.lane.b32.xlu0 %v1294, 110
      %v2099 = vpop.permute.xlu0 %2098
      %2100 = vrot.lane.b32.xlu0 %v1295, 110
      %v2101 = vpop.permute.xlu0 %2100
      %2102 = vrot.lane.b32.xlu0 %v1296, 110
      %v2103 = vpop.permute.xlu0 %2102
      %2104 = vrot.lane.b32.xlu0 %v1297, 110
      %v2105 = vpop.permute.xlu0 %2104
      %2106 = vrot.lane.b32.xlu0 %v1298, 110
      %v2107 = vpop.permute.xlu0 %2106
      %2108 = vrot.lane.b32.xlu0 %v1299, 110
      %v2109 = vpop.permute.xlu0 %2108
      %v2110 = vsel %vm867, %v2087, %v2089
      %v2111 = vsel %vm867, %v2089, %v2091
      %v2112 = vsel %vm867, %v2093, %v2095
      %v2113 = vsel %vm867, %v2095, %v2097
      %v2114 = vsel %vm867, %v2099, %v2101
      %v2115 = vsel %vm867, %v2101, %v2103
      %v2116 = vsel %vm867, %v2105, %v2107
      %v2117 = vsel %vm867, %v2107, %v2109
      %2126 = vrot.lane.b32.xlu0 %v1288, 50
      %v2127 = vpop.permute.xlu0 %2126
      %2128 = vrot.lane.b32.xlu0 %v1291, 50
      %v2129 = vpop.permute.xlu0 %2128
      %2130 = vrot.lane.b32.xlu0 %v1294, 50
      %v2131 = vpop.permute.xlu0 %2130
      %2132 = vrot.lane.b32.xlu0 %v1297, 50
      %v2133 = vpop.permute.xlu0 %2132
      %v2136 = vsel %vm872, %v2091, %v2127
      %v2140 = vsel %vm872, %v2097, %v2129
      %v2144 = vsel %vm872, %v2103, %v2131
      %v2148 = vsel %vm872, %v2109, %v2133
      %2150 = vrot.lane.b32.xlu0 %v1288, 109
      %v2151 = vpop.permute.xlu0 %2150
      %2152 = vrot.lane.b32.xlu0 %v1289, 109
      %v2153 = vpop.permute.xlu0 %2152
      %2154 = vrot.lane.b32.xlu0 %v1290, 109
      %v2155 = vpop.permute.xlu0 %2154
      %2156 = vrot.lane.b32.xlu0 %v1291, 109
      %v2157 = vpop.permute.xlu0 %2156
      %2158 = vrot.lane.b32.xlu0 %v1292, 109
      %v2159 = vpop.permute.xlu0 %2158
      %2160 = vrot.lane.b32.xlu0 %v1293, 109
      %v2161 = vpop.permute.xlu0 %2160
      %2162 = vrot.lane.b32.xlu0 %v1294, 109
      %v2163 = vpop.permute.xlu0 %2162
      %2164 = vrot.lane.b32.xlu0 %v1295, 109
      %v2165 = vpop.permute.xlu0 %2164
      %2166 = vrot.lane.b32.xlu0 %v1296, 109
      %v2167 = vpop.permute.xlu0 %2166
      %2168 = vrot.lane.b32.xlu0 %v1297, 109
      %v2169 = vpop.permute.xlu0 %2168
      %2170 = vrot.lane.b32.xlu0 %v1298, 109
      %v2171 = vpop.permute.xlu0 %2170
      %2172 = vrot.lane.b32.xlu0 %v1299, 109
      %v2173 = vpop.permute.xlu0 %2172
      %v2174 = vsel %vm882, %v2151, %v2153
      %v2175 = vsel %vm882, %v2153, %v2155
      %v2176 = vsel %vm882, %v2157, %v2159
      %v2177 = vsel %vm882, %v2159, %v2161
      %v2178 = vsel %vm882, %v2163, %v2165
      %v2179 = vsel %vm882, %v2165, %v2167
      %v2180 = vsel %vm882, %v2169, %v2171
      %v2181 = vsel %vm882, %v2171, %v2173
      %2190 = vrot.lane.b32.xlu0 %v1288, 49
      %v2191 = vpop.permute.xlu0 %2190
      %2192 = vrot.lane.b32.xlu0 %v1291, 49
      %v2193 = vpop.permute.xlu0 %2192
      %2194 = vrot.lane.b32.xlu0 %v1294, 49
      %v2195 = vpop.permute.xlu0 %2194
      %2196 = vrot.lane.b32.xlu0 %v1297, 49
      %v2197 = vpop.permute.xlu0 %2196
      %v2200 = vsel %vm887, %v2155, %v2191
      %v2204 = vsel %vm887, %v2161, %v2193
      %v2208 = vsel %vm887, %v2167, %v2195
      %v2212 = vsel %vm887, %v2173, %v2197
      %s2214 = scalar_lea.vmem %s4, 128
      %v2215 = vld [vmem:[%s2214] sm:$0xff]
      %v2216 = vld [vmem:[%s2214 + $0x8] sm:$0xff]
      %v2217 = vld [vmem:[%s2214 + $0x10] sm:$0xff]
      %v2218 = vld [vmem:[%s2214 + $0x18] sm:$0xff]
      %v2219 = vld [vmem:[%s2214 + $0x20] sm:$0xff]
      %v2220 = vld [vmem:[%s2214 + $0x28] sm:$0xff]
      %v2221 = vld [vmem:[%s2214 + $0x30] sm:$0xff]
      %v2222 = vld [vmem:[%s2214 + $0x38] sm:$0xff]
      %v2231 = vunpack.c.l.b16 %v2215
      %v2232 = vunpack.c.h.b16 %v2215
      %v2233 = vunpack.c.l.b16 %v2216
      %v2234 = vunpack.c.h.b16 %v2216
      %v2235 = vunpack.c.l.b16 %v2217
      %v2236 = vunpack.c.h.b16 %v2217
      %v2237 = vunpack.c.l.b16 %v2218
      %v2238 = vunpack.c.h.b16 %v2218
      %v2239 = vunpack.c.l.b16 %v2219
      %v2240 = vunpack.c.h.b16 %v2219
      %v2241 = vunpack.c.l.b16 %v2220
      %v2242 = vunpack.c.h.b16 %v2220
      %v2243 = vunpack.c.l.b16 %v2221
      %v2244 = vunpack.c.h.b16 %v2221
      %v2245 = vunpack.c.l.b16 %v2222
      %v2246 = vunpack.c.h.b16 %v2222
      %v2247 = vpack.c.b16 %v2233, %v2231
      %v2248 = vpack.c.b16 %v2234, %v2232
      %v2249 = vpack.c.b16 %v2237, %v2235
      %v2250 = vpack.c.b16 %v2238, %v2236
      %v2251 = vpack.c.b16 %v2241, %v2239
      %v2252 = vpack.c.b16 %v2242, %v2240
      %v2253 = vpack.c.b16 %v2245, %v2243
      %v2254 = vpack.c.b16 %v2246, %v2244
      %v2260 = vsel %vm1685, %v2248, 0
      %v2263 = vsel %vm1685, %v2250, 0
      %v2266 = vsel %vm1685, %v2252, 0
      %v2269 = vsel %vm1685, %v2254, 0
      %2271 = vmatprep.subr.bf16.mxu0 %v2047
      %2272 = vmatpush1.bf16.msra.mxu0 %v2046
      %2273 = vmatprep.subr.bf16.mxu0 %v2049
      %2274 = vmatpush1.bf16.msra.mxu0 %v2048
      %2275 = vmatprep.subr.bf16.mxu0 %v2051
      %2276 = vmatpush1.bf16.msra.mxu0 %v2050
      %2277 = vmatprep.subr.bf16.mxu0 %v2053
      %2278 = vmatpush1.bf16.msra.mxu0 %v2052
      %2279 = vmatprep.subr.bf16.mxu0 %v2111
      %2280 = vmatpush1.bf16.msra.mxu0 %v2110
      %2281 = vmatprep.subr.bf16.mxu0 %v2113
      %2282 = vmatpush1.bf16.msra.mxu0 %v2112
      %2283 = vmatprep.subr.bf16.mxu0 %v2115
      %2284 = vmatpush1.bf16.msra.mxu0 %v2114
      %2285 = vmatprep.subr.bf16.mxu0 %v2117
      %2286 = vmatpush1.bf16.msra.mxu0 %v2116
      %2287 = vmatprep.subr.bf16.mxu0 %v2175
      %2288 = vmatpush1.bf16.msra.mxu0 %v2174
      %2289 = vmatprep.subr.bf16.mxu0 %v2177
      %2290 = vmatpush1.bf16.msra.mxu0 %v2176
      %2291 = vmatprep.subr.bf16.mxu0 %v2179
      %2292 = vmatpush1.bf16.msra.mxu0 %v2178
      %2293 = vmatprep.subr.bf16.mxu0 %v2181
      %2294 = vmatpush1.bf16.msra.mxu0 %v2180
      %2295 = vmatprep.subr.bf16.mxu0 0
      %2296 = vmatpush1.bf16.msra.mxu0 0
      %2297 = vmatprep.subr.bf16.mxu0 0
      %2298 = vmatpush1.bf16.msra.mxu0 0
      %2299 = vmatprep.subr.bf16.mxu0 0
      %2300 = vmatpush1.bf16.msra.mxu0 0
      %2301 = vmatprep.subr.bf16.mxu0 0
      %2302 = vmatpush1.bf16.msra.mxu0 0
      %2303 = vmatprep.mubr.bf16.mxu0 %v2260
      %2304 = vmatmul.mubr.bf16.gmra.mrb[0].mxu0 %v2247
      %v2305 = vpop.f32.mrb[0].mxu0
      %v2306 = vadd.f32 0.0, %v2305
      %v2307 = vpop.f32.mrb[0].mxu0
      %v2308 = vadd.f32 0.0, %v2307
      %v2309 = vpop.f32.mrb[0].mxu0
      %v2310 = vadd.f32 0.0, %v2309
      %v2311 = vpop.f32.mrb[0].mxu0
      %v2312 = vadd.f32 0.0, %v2311
      %2313 = vmatprep.mubr.bf16.mxu0 %v2263
      %2314 = vmatmul.mubr.bf16.gmra.mrb[0].mxu0 %v2249
      %v2315 = vpop.f32.mrb[0].mxu0
      %v2316 = vadd.f32 0.0, %v2315
      %v2317 = vpop.f32.mrb[0].mxu0
      %v2318 = vadd.f32 0.0, %v2317
      %v2319 = vpop.f32.mrb[0].mxu0
      %v2320 = vadd.f32 0.0, %v2319
      %v2321 = vpop.f32.mrb[0].mxu0
      %v2322 = vadd.f32 0.0, %v2321
      %2323 = vmatprep.mubr.bf16.mxu0 %v2266
      %2324 = vmatmul.mubr.bf16.gmra.mrb[0].mxu0 %v2251
      %v2325 = vpop.f32.mrb[0].mxu0
      %v2326 = vadd.f32 0.0, %v2325
      %v2327 = vpop.f32.mrb[0].mxu0
      %v2328 = vadd.f32 0.0, %v2327
      %v2329 = vpop.f32.mrb[0].mxu0
      %v2330 = vadd.f32 0.0, %v2329
      %v2331 = vpop.f32.mrb[0].mxu0
      %v2332 = vadd.f32 0.0, %v2331
      %2333 = vmatprep.mubr.bf16.mxu0 %v2269
      %2334 = vmatmul.mubr.bf16.gmra.mrb[0].mxu0 %v2253
      %v2335 = vpop.f32.mrb[0].mxu0
      %v2336 = vadd.f32 0.0, %v2335
      %v2337 = vpop.f32.mrb[0].mxu0
      %v2338 = vadd.f32 0.0, %v2337
      %v2339 = vpop.f32.mrb[0].mxu0
      %v2340 = vadd.f32 0.0, %v2339
      %v2341 = vpop.f32.mrb[0].mxu0
      %v2342 = vadd.f32 0.0, %v2341
      %2343 = vdwg.mxu0
      %2344 = vmatprep.subr.bf16.mxu0 0
      %2345 = vmatpush1.bf16.msra.mxu0 %v2072
      %2346 = vmatprep.subr.bf16.mxu0 0
      %2347 = vmatpush1.bf16.msra.mxu0 %v2076
      %2348 = vmatprep.subr.bf16.mxu0 0
      %2349 = vmatpush1.bf16.msra.mxu0 %v2080
      %2350 = vmatprep.subr.bf16.mxu0 0
      %2351 = vmatpush1.bf16.msra.mxu0 %v2084
      %2352 = vmatprep.subr.bf16.mxu0 0
      %2353 = vmatpush1.bf16.msra.mxu0 %v2136
      %2354 = vmatprep.subr.bf16.mxu0 0
      %2355 = vmatpush1.bf16.msra.mxu0 %v2140
      %2356 = vmatprep.subr.bf16.mxu0 0
      %2357 = vmatpush1.bf16.msra.mxu0 %v2144
      %2358 = vmatprep.subr.bf16.mxu0 0
      %2359 = vmatpush1.bf16.msra.mxu0 %v2148
      %2360 = vmatprep.subr.bf16.mxu0 0
      %2361 = vmatpush1.bf16.msra.mxu0 %v2200
      %2362 = vmatprep.subr.bf16.mxu0 0
      %2363 = vmatpush1.bf16.msra.mxu0 %v2204
      %2364 = vmatprep.subr.bf16.mxu0 0
      %2365 = vmatpush1.bf16.msra.mxu0 %v2208
      %2366 = vmatprep.subr.bf16.mxu0 0
      %2367 = vmatpush1.bf16.msra.mxu0 %v2212
      %2368 = vmatprep.subr.bf16.mxu0 0
      %2369 = vmatpush1.bf16.msra.mxu0 0
      %2370 = vmatprep.subr.bf16.mxu0 0
      %2371 = vmatpush1.bf16.msra.mxu0 0
      %2372 = vmatprep.subr.bf16.mxu0 0
      %2373 = vmatpush1.bf16.msra.mxu0 0
      %2374 = vmatprep.subr.bf16.mxu0 0
      %2375 = vmatpush1.bf16.msra.mxu0 0
      %2376 = vmatprep.mubr.bf16.mxu0 %v2260
      %2377 = vmatmul.mubr.bf16.gmra.mrb[0].mxu0 %v2247
      %v2378 = vpop.f32.mrb[0].mxu0
      %v2379 = vadd.f32 0.0, %v2378
      %v2380 = vpop.f32.mrb[0].mxu0
      %v2381 = vpop.f32.mrb[0].mxu0
      %v2382 = vadd.f32 0.0, %v2381
      %v2383 = vpop.f32.mrb[0].mxu0
      %2384 = vmatprep.mubr.bf16.mxu0 %v2263
      %2385 = vmatmul.mubr.bf16.gmra.mrb[0].mxu0 %v2249
      %v2386 = vpop.f32.mrb[0].mxu0
      %v2387 = vadd.f32 0.0, %v2386
      %v2388 = vpop.f32.mrb[0].mxu0
      %v2389 = vpop.f32.mrb[0].mxu0
      %v2390 = vadd.f32 0.0, %v2389
      %v2391 = vpop.f32.mrb[0].mxu0
      %2392 = vmatprep.mubr.bf16.mxu0 %v2266
      %2393 = vmatmul.mubr.bf16.gmra.mrb[0].mxu0 %v2251
      %v2394 = vpop.f32.mrb[0].mxu0
      %v2395 = vadd.f32 0.0, %v2394
      %v2396 = vpop.f32.mrb[0].mxu0
      %v2397 = vpop.f32.mrb[0].mxu0
      %v2398 = vadd.f32 0.0, %v2397
      %v2399 = vpop.f32.mrb[0].mxu0
      %2400 = vmatprep.mubr.bf16.mxu0 %v2269
      %2401 = vmatmul.mubr.bf16.gmra.mrb[0].mxu0 %v2253
      %v2402 = vpop.f32.mrb[0].mxu0
      %v2403 = vadd.f32 0.0, %v2402
      %v2404 = vpop.f32.mrb[0].mxu0
      %v2405 = vpop.f32.mrb[0].mxu0
      %v2406 = vadd.f32 0.0, %v2405
      %v2407 = vpop.f32.mrb[0].mxu0
      %2408 = vdwg.mxu0
      %v2409 = vadd.f32 %v1919, %v2306
      %v2410 = vadd.f32 %v1921, %v2308
      %v2411 = vadd.f32 %v1992, %v2379
      %v2412 = vadd.f32 %v1923, %v2310
      %v2413 = vadd.f32 %v1925, %v2312
      %v2414 = vadd.f32 %v1995, %v2382
      %v2415 = vadd.f32 %v1929, %v2316
      %v2416 = vadd.f32 %v1931, %v2318
      %v2417 = vadd.f32 %v2000, %v2387
      %v2418 = vadd.f32 %v1933, %v2320
      %v2419 = vadd.f32 %v1935, %v2322
      %v2420 = vadd.f32 %v2003, %v2390
      %v2421 = vadd.f32 %v1939, %v2326
      %v2422 = vadd.f32 %v1941, %v2328
      %v2423 = vadd.f32 %v2008, %v2395
      %v2424 = vadd.f32 %v1943, %v2330
      %v2425 = vadd.f32 %v1945, %v2332
      %v2426 = vadd.f32 %v2011, %v2398
      %v2427 = vadd.f32 %v1949, %v2336
      %v2428 = vadd.f32 %v1951, %v2338
      %v2429 = vadd.f32 %v2016, %v2403
      %v2430 = vadd.f32 %v1953, %v2340
      %v2431 = vadd.f32 %v1955, %v2342
      %v2432 = vadd.f32 %v2019, %v2406
      %v2433 = vld [vmem:[%s5] sm:$0xff]
      %v2434 = vld [vmem:[%s5 + $0x8] sm:$0xff]
      %v2435 = vld [vmem:[%s5 + $0x10] sm:$0xff]
      %v2436 = vld [vmem:[%s5 + $0x18] sm:$0xff]
      %v2437 = vld [vmem:[%s5 + $0x20] sm:$0xff]
      %v2438 = vld [vmem:[%s5 + $0x28] sm:$0xff]
      %v2439 = vld [vmem:[%s5 + $0x30] sm:$0xff]
      %v2440 = vld [vmem:[%s5 + $0x38] sm:$0xff]
      %2442 = vset.pattern.permute.xlu0 0
      %2443 = vperm.xlu0 %2442, %v2433
      %v2444 = vpop.permute.xlu0 %2443
      %2447 = vset.pattern.permute.xlu0 0
      %2448 = vperm.xlu0 %2447, %v2434
      %v2449 = vpop.permute.xlu0 %2448
      %2452 = vset.pattern.permute.xlu0 0
      %2453 = vperm.xlu0 %2452, %v2435
      %v2454 = vpop.permute.xlu0 %2453
      %2457 = vset.pattern.permute.xlu0 0
      %2458 = vperm.xlu0 %2457, %v2436
      %v2459 = vpop.permute.xlu0 %2458
      %2462 = vset.pattern.permute.xlu0 0
      %2463 = vperm.xlu0 %2462, %v2437
      %v2464 = vpop.permute.xlu0 %2463
      %2467 = vset.pattern.permute.xlu0 0
      %2468 = vperm.xlu0 %2467, %v2438
      %v2469 = vpop.permute.xlu0 %2468
      %2472 = vset.pattern.permute.xlu0 0
      %2473 = vperm.xlu0 %2472, %v2439
      %v2474 = vpop.permute.xlu0 %2473
      %2477 = vset.pattern.permute.xlu0 0
      %2478 = vperm.xlu0 %2477, %v2440
      %v2479 = vpop.permute.xlu0 %2478
      %v2481 = vadd.f32 %v2409, %v2444
      %v2482 = vadd.f32 %v2410, %v2444
      %v2483 = vadd.f32 %v2411, %v2444
      %v2484 = vadd.f32 %v2412, %v2449
      %v2485 = vadd.f32 %v2413, %v2449
      %v2486 = vadd.f32 %v2414, %v2449
      %v2487 = vadd.f32 %v2415, %v2454
      %v2488 = vadd.f32 %v2416, %v2454
      %v2489 = vadd.f32 %v2417, %v2454
      %v2490 = vadd.f32 %v2418, %v2459
      %v2491 = vadd.f32 %v2419, %v2459
      %v2492 = vadd.f32 %v2420, %v2459
      %v2493 = vadd.f32 %v2421, %v2464
      %v2494 = vadd.f32 %v2422, %v2464
      %v2495 = vadd.f32 %v2423, %v2464
      %v2496 = vadd.f32 %v2424, %v2469
      %v2497 = vadd.f32 %v2425, %v2469
      %v2498 = vadd.f32 %v2426, %v2469
      %v2499 = vadd.f32 %v2427, %v2474
      %v2500 = vadd.f32 %v2428, %v2474
      %v2501 = vadd.f32 %v2429, %v2474
      %v2502 = vadd.f32 %v2430, %v2479
      %v2503 = vadd.f32 %v2431, %v2479
      %v2504 = vadd.f32 %v2432, %v2479
      %v2505 = vmax.f32 %v2481, 0.0
      %v2506 = vmax.f32 %v2482, 0.0
      %v2507 = vmax.f32 %v2483, 0.0
      %v2508 = vmax.f32 %v2484, 0.0
      %v2509 = vmax.f32 %v2485, 0.0
      %v2510 = vmax.f32 %v2486, 0.0
      %v2511 = vmax.f32 %v2487, 0.0
      %v2512 = vmax.f32 %v2488, 0.0
      %v2513 = vmax.f32 %v2489, 0.0
      %v2514 = vmax.f32 %v2490, 0.0
      %v2515 = vmax.f32 %v2491, 0.0
      %v2516 = vmax.f32 %v2492, 0.0
      %v2517 = vmax.f32 %v2493, 0.0
      %v2518 = vmax.f32 %v2494, 0.0
      %v2519 = vmax.f32 %v2495, 0.0
      %v2520 = vmax.f32 %v2496, 0.0
      %v2521 = vmax.f32 %v2497, 0.0
      %v2522 = vmax.f32 %v2498, 0.0
      %v2523 = vmax.f32 %v2499, 0.0
      %v2524 = vmax.f32 %v2500, 0.0
      %v2525 = vmax.f32 %v2501, 0.0
      %v2526 = vmax.f32 %v2502, 0.0
      %v2527 = vmax.f32 %v2503, 0.0
      %v2528 = vmax.f32 %v2504, 0.0
      %v2529 = vmul.f32 %v2505, %v1227
      %v2530 = vmul.f32 %v2506, %v1231
      %v2531 = vmul.f32 %v2507, %v1235
      %v2532 = vmul.f32 %v2508, %v1227
      %v2533 = vmul.f32 %v2509, %v1231
      %v2534 = vmul.f32 %v2510, %v1235
      %v2535 = vmul.f32 %v2511, %v1227
      %v2536 = vmul.f32 %v2512, %v1231
      %v2537 = vmul.f32 %v2513, %v1235
      %v2538 = vmul.f32 %v2514, %v1227
      %v2539 = vmul.f32 %v2515, %v1231
      %v2540 = vmul.f32 %v2516, %v1235
      %v2541 = vmul.f32 %v2517, %v1227
      %v2542 = vmul.f32 %v2518, %v1231
      %v2543 = vmul.f32 %v2519, %v1235
      %v2544 = vmul.f32 %v2520, %v1227
      %v2545 = vmul.f32 %v2521, %v1231
      %v2546 = vmul.f32 %v2522, %v1235
      %v2547 = vmul.f32 %v2523, %v1227
      %v2548 = vmul.f32 %v2524, %v1231
      %v2549 = vmul.f32 %v2525, %v1235
      %v2550 = vmul.f32 %v2526, %v1227
      %v2551 = vmul.f32 %v2527, %v1231
      %v2552 = vmul.f32 %v2528, %v1235
      %v2553 = vpack.c.bf16 %v2532, %v2529
      %v2554 = vpack.c.bf16 %v2533, %v2530
      %v2555 = vpack.c.bf16 %v2534, %v2531
      %v2556 = vpack.c.bf16 %v2538, %v2535
      %v2557 = vpack.c.bf16 %v2539, %v2536
      %v2558 = vpack.c.bf16 %v2540, %v2537
      %v2559 = vpack.c.bf16 %v2544, %v2541
      %v2560 = vpack.c.bf16 %v2545, %v2542
      %v2561 = vpack.c.bf16 %v2546, %v2543
      %v2562 = vpack.c.bf16 %v2550, %v2547
      %v2563 = vpack.c.bf16 %v2551, %v2548
      %v2564 = vpack.c.bf16 %v2552, %v2549
      %s2565 = scalar_lea.vmem [#allocation2], 96
      %2566 = vst [vmem:[%s2565] sm:$0xff] %v2553
      %2567 = vst [vmem:[%s2565 + $0x8] sm:$0xff] %v2554
      %2568 = vst.msk [vmem:[%s2565 + $0x10] sm:$0xff] %vm1277, %v2555
      %2569 = vst [vmem:[%s2565 + $0x18] sm:$0xff] %v2556
      %2570 = vst [vmem:[%s2565 + $0x20] sm:$0xff] %v2557
      %2571 = vst.msk [vmem:[%s2565 + $0x28] sm:$0xff] %vm1277, %v2558
      %2572 = vst [vmem:[%s2565 + $0x30] sm:$0xff] %v2559
      %2573 = vst [vmem:[%s2565 + $0x38] sm:$0xff] %v2560
      %2574 = vst.msk [vmem:[%s2565 + $0x40] sm:$0xff] %vm1277, %v2561
      %2575 = vst [vmem:[%s2565 + $0x48] sm:$0xff] %v2562
      %2576 = vst [vmem:[%s2565 + $0x50] sm:$0xff] %v2563
      %2577 = vst.msk [vmem:[%s2565 + $0x58] sm:$0xff] %vm1277, %v2564
      %v2578 = vld [vmem:[%s2565] sm:$0xff]
      %v2579 = vld [vmem:[%s2565 + $0x8] sm:$0xff]
      %v2580 = vld [vmem:[%s2565 + $0x10] sm:$0xff]
      %v2581 = vld [vmem:[%s2565 + $0x18] sm:$0xff]
      %v2582 = vld [vmem:[%s2565 + $0x20] sm:$0xff]
      %v2583 = vld [vmem:[%s2565 + $0x28] sm:$0xff]
      %v2584 = vld [vmem:[%s2565 + $0x30] sm:$0xff]
      %v2585 = vld [vmem:[%s2565 + $0x38] sm:$0xff]
      %v2586 = vld [vmem:[%s2565 + $0x40] sm:$0xff]
      %v2587 = vld [vmem:[%s2565 + $0x48] sm:$0xff]
      %v2588 = vld [vmem:[%s2565 + $0x50] sm:$0xff]
      %v2589 = vld [vmem:[%s2565 + $0x58] sm:$0xff]
      %2594 = vrot.lane.b32.xlu0 %v2580, 79
      %v2595 = vpop.permute.xlu0 %2594
      %2596 = vrot.lane.b32.xlu0 %v2583, 79
      %v2597 = vpop.permute.xlu0 %2596
      %2598 = vrot.lane.b32.xlu0 %v2586, 79
      %v2599 = vpop.permute.xlu0 %2598
      %2600 = vrot.lane.b32.xlu0 %v2589, 79
      %v2601 = vpop.permute.xlu0 %2600
      %2610 = vrot.lane.b32.xlu0 %v2578, 19
      %v2611 = vpop.permute.xlu0 %2610
      %2612 = vrot.lane.b32.xlu0 %v2579, 19
      %v2613 = vpop.permute.xlu0 %2612
      %2614 = vrot.lane.b32.xlu0 %v2580, 19
      %v2615 = vpop.permute.xlu0 %2614
      %2616 = vrot.lane.b32.xlu0 %v2581, 19
      %v2617 = vpop.permute.xlu0 %2616
      %2618 = vrot.lane.b32.xlu0 %v2582, 19
      %v2619 = vpop.permute.xlu0 %2618
      %2620 = vrot.lane.b32.xlu0 %v2583, 19
      %v2621 = vpop.permute.xlu0 %2620
      %2622 = vrot.lane.b32.xlu0 %v2584, 19
      %v2623 = vpop.permute.xlu0 %2622
      %2624 = vrot.lane.b32.xlu0 %v2585, 19
      %v2625 = vpop.permute.xlu0 %2624
      %2626 = vrot.lane.b32.xlu0 %v2586, 19
      %v2627 = vpop.permute.xlu0 %2626
      %2628 = vrot.lane.b32.xlu0 %v2587, 19
      %v2629 = vpop.permute.xlu0 %2628
      %2630 = vrot.lane.b32.xlu0 %v2588, 19
      %v2631 = vpop.permute.xlu0 %2630
      %2632 = vrot.lane.b32.xlu0 %v2589, 19
      %v2633 = vpop.permute.xlu0 %2632
      %v2634 = vsel %vm338, %v2611, %v2613
      %v2635 = vsel %vm338, %v2613, %v2615
      %v2636 = vsel %vm338, %v2617, %v2619
      %v2637 = vsel %vm338, %v2619, %v2621
      %v2638 = vsel %vm338, %v2623, %v2625
      %v2639 = vsel %vm338, %v2625, %v2627
      %v2640 = vsel %vm338, %v2629, %v2631
      %v2641 = vsel %vm338, %v2631, %v2633
      %v2652 = vsel %vm343, %v2595, %v2611
      %v2656 = vsel %vm343, %v2597, %v2617
      %v2660 = vsel %vm343, %v2599, %v2623
      %v2664 = vsel %vm343, %v2601, %v2629
      %2666 = vrot.lane.b32.xlu0 %v2580, 78
      %v2667 = vpop.permute.xlu0 %2666
      %2668 = vrot.lane.b32.xlu0 %v2583, 78
      %v2669 = vpop.permute.xlu0 %2668
      %2670 = vrot.lane.b32.xlu0 %v2586, 78
      %v2671 = vpop.permute.xlu0 %2670
      %2672 = vrot.lane.b32.xlu0 %v2589, 78
      %v2673 = vpop.permute.xlu0 %2672
      %2674 = vrot.lane.b32.xlu0 %v2578, 18
      %v2675 = vpop.permute.xlu0 %2674
      %2676 = vrot.lane.b32.xlu0 %v2579, 18
      %v2677 = vpop.permute.xlu0 %2676
      %2678 = vrot.lane.b32.xlu0 %v2580, 18
      %v2679 = vpop.permute.xlu0 %2678
      %2680 = vrot.lane.b32.xlu0 %v2581, 18
      %v2681 = vpop.permute.xlu0 %2680
      %2682 = vrot.lane.b32.xlu0 %v2582, 18
      %v2683 = vpop.permute.xlu0 %2682
      %2684 = vrot.lane.b32.xlu0 %v2583, 18
      %v2685 = vpop.permute.xlu0 %2684
      %2686 = vrot.lane.b32.xlu0 %v2584, 18
      %v2687 = vpop.permute.xlu0 %2686
      %2688 = vrot.lane.b32.xlu0 %v2585, 18
      %v2689 = vpop.permute.xlu0 %2688
      %2690 = vrot.lane.b32.xlu0 %v2586, 18
      %v2691 = vpop.permute.xlu0 %2690
      %2692 = vrot.lane.b32.xlu0 %v2587, 18
      %v2693 = vpop.permute.xlu0 %2692
      %2694 = vrot.lane.b32.xlu0 %v2588, 18
      %v2695 = vpop.permute.xlu0 %2694
      %2696 = vrot.lane.b32.xlu0 %v2589, 18
      %v2697 = vpop.permute.xlu0 %2696
      %v2698 = vsel %vm356, %v2675, %v2677
      %v2699 = vsel %vm356, %v2677, %v2679
      %v2700 = vsel %vm356, %v2681, %v2683
      %v2701 = vsel %vm356, %v2683, %v2685
      %v2702 = vsel %vm356, %v2687, %v2689
      %v2703 = vsel %vm356, %v2689, %v2691
      %v2704 = vsel %vm356, %v2693, %v2695
      %v2705 = vsel %vm356, %v2695, %v2697
      %v2716 = vsel %vm359, %v2667, %v2675
      %v2720 = vsel %vm359, %v2669, %v2681
      %v2724 = vsel %vm359, %v2671, %v2687
      %v2728 = vsel %vm359, %v2673, %v2693
      %2730 = vrot.lane.b32.xlu0 %v2580, 77
      %v2731 = vpop.permute.xlu0 %2730
      %2732 = vrot.lane.b32.xlu0 %v2583, 77
      %v2733 = vpop.permute.xlu0 %2732
      %2734 = vrot.lane.b32.xlu0 %v2586, 77
      %v2735 = vpop.permute.xlu0 %2734
      %2736 = vrot.lane.b32.xlu0 %v2589, 77
      %v2737 = vpop.permute.xlu0 %2736
      %2738 = vrot.lane.b32.xlu0 %v2578, 17
      %v2739 = vpop.permute.xlu0 %2738
      %2740 = vrot.lane.b32.xlu0 %v2579, 17
      %v2741 = vpop.permute.xlu0 %2740
      %2742 = vrot.lane.b32.xlu0 %v2580, 17
      %v2743 = vpop.permute.xlu0 %2742
      %2744 = vrot.lane.b32.xlu0 %v2581, 17
      %v2745 = vpop.permute.xlu0 %2744
      %2746 = vrot.lane.b32.xlu0 %v2582, 17
      %v2747 = vpop.permute.xlu0 %2746
      %2748 = vrot.lane.b32.xlu0 %v2583, 17
      %v2749 = vpop.permute.xlu0 %2748
      %2750 = vrot.lane.b32.xlu0 %v2584, 17
      %v2751 = vpop.permute.xlu0 %2750
      %2752 = vrot.lane.b32.xlu0 %v2585, 17
      %v2753 = vpop.permute.xlu0 %2752
      %2754 = vrot.lane.b32.xlu0 %v2586, 17
      %v2755 = vpop.permute.xlu0 %2754
      %2756 = vrot.lane.b32.xlu0 %v2587, 17
      %v2757 = vpop.permute.xlu0 %2756
      %2758 = vrot.lane.b32.xlu0 %v2588, 17
      %v2759 = vpop.permute.xlu0 %2758
      %2760 = vrot.lane.b32.xlu0 %v2589, 17
      %v2761 = vpop.permute.xlu0 %2760
      %v2762 = vsel %vm371, %v2739, %v2741
      %v2763 = vsel %vm371, %v2741, %v2743
      %v2764 = vsel %vm371, %v2745, %v2747
      %v2765 = vsel %vm371, %v2747, %v2749
      %v2766 = vsel %vm371, %v2751, %v2753
      %v2767 = vsel %vm371, %v2753, %v2755
      %v2768 = vsel %vm371, %v2757, %v2759
      %v2769 = vsel %vm371, %v2759, %v2761
      %v2780 = vsel %vm374, %v2731, %v2739
      %v2784 = vsel %vm374, %v2733, %v2745
      %v2788 = vsel %vm374, %v2735, %v2751
      %v2792 = vsel %vm374, %v2737, %v2757
      %s2794 = scalar_lea.vmem %s4, 192
      %v2795 = vld [vmem:[%s2794] sm:$0xff]
      %v2796 = vld [vmem:[%s2794 + $0x8] sm:$0xff]
      %v2797 = vld [vmem:[%s2794 + $0x10] sm:$0xff]
      %v2798 = vld [vmem:[%s2794 + $0x18] sm:$0xff]
      %v2799 = vld [vmem:[%s2794 + $0x20] sm:$0xff]
      %v2800 = vld [vmem:[%s2794 + $0x28] sm:$0xff]
      %v2801 = vld [vmem:[%s2794 + $0x30] sm:$0xff]
      %v2802 = vld [vmem:[%s2794 + $0x38] sm:$0xff]
      %2803 = vrot.lane.b32.xlu0 %v2580, 61
      %v2804 = vpop.permute.xlu0 %2803
      %2805 = vrot.lane.b32.xlu0 %v2583, 61
      %v2806 = vpop.permute.xlu0 %2805
      %2807 = vrot.lane.b32.xlu0 %v2586, 61
      %v2808 = vpop.permute.xlu0 %2807
      %2809 = vrot.lane.b32.xlu0 %v2589, 61
      %v2810 = vpop.permute.xlu0 %2809
      %2811 = vrot.lane.b32.xlu0 %v2578, 1
      %v2812 = vpop.permute.xlu0 %2811
      %2813 = vrot.lane.b32.xlu0 %v2579, 1
      %v2814 = vpop.permute.xlu0 %2813
      %2815 = vrot.lane.b32.xlu0 %v2580, 1
      %v2816 = vpop.permute.xlu0 %2815
      %2817 = vrot.lane.b32.xlu0 %v2581, 1
      %v2818 = vpop.permute.xlu0 %2817
      %2819 = vrot.lane.b32.xlu0 %v2582, 1
      %v2820 = vpop.permute.xlu0 %2819
      %2821 = vrot.lane.b32.xlu0 %v2583, 1
      %v2822 = vpop.permute.xlu0 %2821
      %2823 = vrot.lane.b32.xlu0 %v2584, 1
      %v2824 = vpop.permute.xlu0 %2823
      %2825 = vrot.lane.b32.xlu0 %v2585, 1
      %v2826 = vpop.permute.xlu0 %2825
      %2827 = vrot.lane.b32.xlu0 %v2586, 1
      %v2828 = vpop.permute.xlu0 %2827
      %2829 = vrot.lane.b32.xlu0 %v2587, 1
      %v2830 = vpop.permute.xlu0 %2829
      %2831 = vrot.lane.b32.xlu0 %v2588, 1
      %v2832 = vpop.permute.xlu0 %2831
      %2833 = vrot.lane.b32.xlu0 %v2589, 1
      %v2834 = vpop.permute.xlu0 %2833
      %v2835 = vsel %vm425, %v2812, %v2814
      %v2836 = vsel %vm425, %v2814, %v2816
      %v2837 = vsel %vm425, %v2818, %v2820
      %v2838 = vsel %vm425, %v2820, %v2822
      %v2839 = vsel %vm425, %v2824, %v2826
      %v2840 = vsel %vm425, %v2826, %v2828
      %v2841 = vsel %vm425, %v2830, %v2832
      %v2842 = vsel %vm425, %v2832, %v2834
      %v2853 = vsel %vm430, %v2804, %v2812
      %v2857 = vsel %vm430, %v2806, %v2818
      %v2861 = vsel %vm430, %v2808, %v2824
      %v2865 = vsel %vm430, %v2810, %v2830
      %2867 = vrot.lane.b32.xlu0 %v2578, 127
      %v2868 = vpop.permute.xlu0 %2867
      %2869 = vrot.lane.b32.xlu0 %v2579, 127
      %v2870 = vpop.permute.xlu0 %2869
      %2871 = vrot.lane.b32.xlu0 %v2580, 127
      %v2872 = vpop.permute.xlu0 %2871
      %2873 = vrot.lane.b32.xlu0 %v2581, 127
      %v2874 = vpop.permute.xlu0 %2873
      %2875 = vrot.lane.b32.xlu0 %v2582, 127
      %v2876 = vpop.permute.xlu0 %2875
      %2877 = vrot.lane.b32.xlu0 %v2583, 127
      %v2878 = vpop.permute.xlu0 %2877
      %2879 = vrot.lane.b32.xlu0 %v2584, 127
      %v2880 = vpop.permute.xlu0 %2879
      %2881 = vrot.lane.b32.xlu0 %v2585, 127
      %v2882 = vpop.permute.xlu0 %2881
      %2883 = vrot.lane.b32.xlu0 %v2586, 127
      %v2884 = vpop.permute.xlu0 %2883
      %2885 = vrot.lane.b32.xlu0 %v2587, 127
      %v2886 = vpop.permute.xlu0 %2885
      %2887 = vrot.lane.b32.xlu0 %v2588, 127
      %v2888 = vpop.permute.xlu0 %2887
      %2889 = vrot.lane.b32.xlu0 %v2589, 127
      %v2890 = vpop.permute.xlu0 %2889
      %v2891 = vsel %vm441, %v2868, %v2870
      %v2892 = vsel %vm441, %v2870, %v2872
      %v2893 = vsel %vm441, %v2874, %v2876
      %v2894 = vsel %vm441, %v2876, %v2878
      %v2895 = vsel %vm441, %v2880, %v2882
      %v2896 = vsel %vm441, %v2882, %v2884
      %v2897 = vsel %vm441, %v2886, %v2888
      %v2898 = vsel %vm441, %v2888, %v2890
      %2907 = vrot.lane.b32.xlu0 %v2578, 67
      %v2908 = vpop.permute.xlu0 %2907
      %2909 = vrot.lane.b32.xlu0 %v2581, 67
      %v2910 = vpop.permute.xlu0 %2909
      %2911 = vrot.lane.b32.xlu0 %v2584, 67
      %v2912 = vpop.permute.xlu0 %2911
      %2913 = vrot.lane.b32.xlu0 %v2587, 67
      %v2914 = vpop.permute.xlu0 %2913
      %v2917 = vsel %vm446, %v2872, %v2908
      %v2921 = vsel %vm446, %v2878, %v2910
      %v2925 = vsel %vm446, %v2884, %v2912
      %v2929 = vsel %vm446, %v2890, %v2914
      %s2931 = scalar_lea.vmem %s4, 256
      %v2932 = vld [vmem:[%s2931] sm:$0xff]
      %v2933 = vld [vmem:[%s2931 + $0x8] sm:$0xff]
      %v2934 = vld [vmem:[%s2931 + $0x10] sm:$0xff]
      %v2935 = vld [vmem:[%s2931 + $0x18] sm:$0xff]
      %v2936 = vld [vmem:[%s2931 + $0x20] sm:$0xff]
      %v2937 = vld [vmem:[%s2931 + $0x28] sm:$0xff]
      %v2938 = vld [vmem:[%s2931 + $0x30] sm:$0xff]
      %v2939 = vld [vmem:[%s2931 + $0x38] sm:$0xff]
      %v2948 = vunpack.c.l.b16 %v2932
      %v2949 = vunpack.c.h.b16 %v2932
      %v2950 = vunpack.c.l.b16 %v2933
      %v2951 = vunpack.c.h.b16 %v2933
      %v2952 = vunpack.c.l.b16 %v2934
      %v2953 = vunpack.c.h.b16 %v2934
      %v2954 = vunpack.c.l.b16 %v2935
      %v2955 = vunpack.c.h.b16 %v2935
      %v2956 = vunpack.c.l.b16 %v2936
      %v2957 = vunpack.c.h.b16 %v2936
      %v2958 = vunpack.c.l.b16 %v2937
      %v2959 = vunpack.c.h.b16 %v2937
      %v2960 = vunpack.c.l.b16 %v2938
      %v2961 = vunpack.c.h.b16 %v2938
      %v2962 = vunpack.c.l.b16 %v2939
      %v2963 = vunpack.c.h.b16 %v2939
      %v2964 = vpack.c.b16 %v2950, %v2948
      %v2965 = vpack.c.b16 %v2951, %v2949
      %v2966 = vpack.c.b16 %v2954, %v2952
      %v2967 = vpack.c.b16 %v2955, %v2953
      %v2968 = vpack.c.b16 %v2958, %v2956
      %v2969 = vpack.c.b16 %v2959, %v2957
      %v2970 = vpack.c.b16 %v2962, %v2960
      %v2971 = vpack.c.b16 %v2963, %v2961
      %v2977 = vsel %vm1685, %v2965, 0
      %v2980 = vsel %vm1685, %v2967, 0
      %v2983 = vsel %vm1685, %v2969, 0
      %v2986 = vsel %vm1685, %v2971, 0
      %2988 = vmatprep.subr.bf16.mxu0 %v2835
      %2989 = vmatpush1.bf16.msra.mxu0 %v2853
      %2990 = vmatprep.subr.bf16.mxu0 %v2837
      %2991 = vmatpush1.bf16.msra.mxu0 %v2857
      %2992 = vmatprep.subr.bf16.mxu0 %v2839
      %2993 = vmatpush1.bf16.msra.mxu0 %v2861
      %2994 = vmatprep.subr.bf16.mxu0 %v2841
      %2995 = vmatpush1.bf16.msra.mxu0 %v2865
      %2996 = vmatprep.subr.bf16.mxu0 %v2579
      %2997 = vmatpush1.bf16.msra.mxu0 %v2578
      %2998 = vmatprep.subr.bf16.mxu0 %v2582
      %2999 = vmatpush1.bf16.msra.mxu0 %v2581
      %3000 = vmatprep.subr.bf16.mxu0 %v2585
      %3001 = vmatpush1.bf16.msra.mxu0 %v2584
      %3002 = vmatprep.subr.bf16.mxu0 %v2588
      %3003 = vmatpush1.bf16.msra.mxu0 %v2587
      %3004 = vmatprep.subr.bf16.mxu0 %v2892
      %3005 = vmatpush1.bf16.msra.mxu0 %v2891
      %3006 = vmatprep.subr.bf16.mxu0 %v2894
      %3007 = vmatpush1.bf16.msra.mxu0 %v2893
      %3008 = vmatprep.subr.bf16.mxu0 %v2896
      %3009 = vmatpush1.bf16.msra.mxu0 %v2895
      %3010 = vmatprep.subr.bf16.mxu0 %v2898
      %3011 = vmatpush1.bf16.msra.mxu0 %v2897
      %3012 = vmatprep.subr.bf16.mxu0 0
      %3013 = vmatpush1.bf16.msra.mxu0 0
      %3014 = vmatprep.subr.bf16.mxu0 0
      %3015 = vmatpush1.bf16.msra.mxu0 0
      %3016 = vmatprep.subr.bf16.mxu0 0
      %3017 = vmatpush1.bf16.msra.mxu0 0
      %3018 = vmatprep.subr.bf16.mxu0 0
      %3019 = vmatpush1.bf16.msra.mxu0 0
      %3020 = vmatprep.mubr.bf16.mxu0 %v2977
      %3021 = vmatmul.mubr.bf16.gmra.mrb[0].mxu0 %v2964
      %v3022 = vpop.f32.mrb[0].mxu0
      %v3023 = vadd.f32 0.0, %v3022
      %v3024 = vpop.f32.mrb[0].mxu0
      %v3025 = vadd.f32 0.0, %v3024
      %v3026 = vpop.f32.mrb[0].mxu0
      %v3027 = vadd.f32 0.0, %v3026
      %v3028 = vpop.f32.mrb[0].mxu0
      %v3029 = vadd.f32 0.0, %v3028
      %3030 = vmatprep.mubr.bf16.mxu0 %v2980
      %3031 = vmatmul.mubr.bf16.gmra.mrb[0].mxu0 %v2966
      %v3032 = vpop.f32.mrb[0].mxu0
      %v3033 = vadd.f32 0.0, %v3032
      %v3034 = vpop.f32.mrb[0].mxu0
      %v3035 = vadd.f32 0.0, %v3034
      %v3036 = vpop.f32.mrb[0].mxu0
      %v3037 = vadd.f32 0.0, %v3036
      %v3038 = vpop.f32.mrb[0].mxu0
      %v3039 = vadd.f32 0.0, %v3038
      %3040 = vmatprep.mubr.bf16.mxu0 %v2983
      %3041 = vmatmul.mubr.bf16.gmra.mrb[0].mxu0 %v2968
      %v3042 = vpop.f32.mrb[0].mxu0
      %v3043 = vadd.f32 0.0, %v3042
      %v3044 = vpop.f32.mrb[0].mxu0
      %v3045 = vadd.f32 0.0, %v3044
      %v3046 = vpop.f32.mrb[0].mxu0
      %v3047 = vadd.f32 0.0, %v3046
      %v3048 = vpop.f32.mrb[0].mxu0
      %v3049 = vadd.f32 0.0, %v3048
      %3050 = vmatprep.mubr.bf16.mxu0 %v2986
      %3051 = vmatmul.mubr.bf16.gmra.mrb[0].mxu0 %v2970
      %v3052 = vpop.f32.mrb[0].mxu0
      %v3053 = vadd.f32 0.0, %v3052
      %v3054 = vpop.f32.mrb[0].mxu0
      %v3055 = vadd.f32 0.0, %v3054
      %v3056 = vpop.f32.mrb[0].mxu0
      %v3057 = vadd.f32 0.0, %v3056
      %v3058 = vpop.f32.mrb[0].mxu0
      %v3059 = vadd.f32 0.0, %v3058
      %3060 = vdwg.mxu0
      %3061 = vmatprep.subr.bf16.mxu0 0
      %3062 = vmatpush1.bf16.msra.mxu0 %v2836
      %3063 = vmatprep.subr.bf16.mxu0 0
      %3064 = vmatpush1.bf16.msra.mxu0 %v2838
      %3065 = vmatprep.subr.bf16.mxu0 0
      %3066 = vmatpush1.bf16.msra.mxu0 %v2840
      %3067 = vmatprep.subr.bf16.mxu0 0
      %3068 = vmatpush1.bf16.msra.mxu0 %v2842
      %3069 = vmatprep.subr.bf16.mxu0 0
      %3070 = vmatpush1.bf16.msra.mxu0 %v2580
      %3071 = vmatprep.subr.bf16.mxu0 0
      %3072 = vmatpush1.bf16.msra.mxu0 %v2583
      %3073 = vmatprep.subr.bf16.mxu0 0
      %3074 = vmatpush1.bf16.msra.mxu0 %v2586
      %3075 = vmatprep.subr.bf16.mxu0 0
      %3076 = vmatpush1.bf16.msra.mxu0 %v2589
      %3077 = vmatprep.subr.bf16.mxu0 0
      %3078 = vmatpush1.bf16.msra.mxu0 %v2917
      %3079 = vmatprep.subr.bf16.mxu0 0
      %3080 = vmatpush1.bf16.msra.mxu0 %v2921
      %3081 = vmatprep.subr.bf16.mxu0 0
      %3082 = vmatpush1.bf16.msra.mxu0 %v2925
      %3083 = vmatprep.subr.bf16.mxu0 0
      %3084 = vmatpush1.bf16.msra.mxu0 %v2929
      %3085 = vmatprep.subr.bf16.mxu0 0
      %3086 = vmatpush1.bf16.msra.mxu0 0
      %3087 = vmatprep.subr.bf16.mxu0 0
      %3088 = vmatpush1.bf16.msra.mxu0 0
      %3089 = vmatprep.subr.bf16.mxu0 0
      %3090 = vmatpush1.bf16.msra.mxu0 0
      %3091 = vmatprep.subr.bf16.mxu0 0
      %3092 = vmatpush1.bf16.msra.mxu0 0
      %3093 = vmatprep.mubr.bf16.mxu0 %v2977
      %3094 = vmatmul.mubr.bf16.gmra.mrb[0].mxu0 %v2964
      %v3095 = vpop.f32.mrb[0].mxu0
      %v3096 = vadd.f32 0.0, %v3095
      %v3097 = vpop.f32.mrb[0].mxu0
      %v3098 = vpop.f32.mrb[0].mxu0
      %v3099 = vadd.f32 0.0, %v3098
      %v3100 = vpop.f32.mrb[0].mxu0
      %3101 = vmatprep.mubr.bf16.mxu0 %v2980
      %3102 = vmatmul.mubr.bf16.gmra.mrb[0].mxu0 %v2966
      %v3103 = vpop.f32.mrb[0].mxu0
      %v3104 = vadd.f32 0.0, %v3103
      %v3105 = vpop.f32.mrb[0].mxu0
      %v3106 = vpop.f32.mrb[0].mxu0
      %v3107 = vadd.f32 0.0, %v3106
      %v3108 = vpop.f32.mrb[0].mxu0
      %3109 = vmatprep.mubr.bf16.mxu0 %v2983
      %3110 = vmatmul.mubr.bf16.gmra.mrb[0].mxu0 %v2968
      %v3111 = vpop.f32.mrb[0].mxu0
      %v3112 = vadd.f32 0.0, %v3111
      %v3113 = vpop.f32.mrb[0].mxu0
      %v3114 = vpop.f32.mrb[0].mxu0
      %v3115 = vadd.f32 0.0, %v3114
      %v3116 = vpop.f32.mrb[0].mxu0
      %3117 = vmatprep.mubr.bf16.mxu0 %v2986
      %3118 = vmatmul.mubr.bf16.gmra.mrb[0].mxu0 %v2970
      %v3119 = vpop.f32.mrb[0].mxu0
      %v3120 = vadd.f32 0.0, %v3119
      %v3121 = vpop.f32.mrb[0].mxu0
      %v3122 = vpop.f32.mrb[0].mxu0
      %v3123 = vadd.f32 0.0, %v3122
      %v3124 = vpop.f32.mrb[0].mxu0
      %3125 = vdwg.mxu0
      %v3134 = vunpack.c.l.b16 %v2795
      %v3135 = vunpack.c.h.b16 %v2795
      %v3136 = vunpack.c.l.b16 %v2796
      %v3137 = vunpack.c.h.b16 %v2796
      %v3138 = vunpack.c.l.b16 %v2797
      %v3139 = vunpack.c.h.b16 %v2797
      %v3140 = vunpack.c.l.b16 %v2798
      %v3141 = vunpack.c.h.b16 %v2798
      %v3142 = vunpack.c.l.b16 %v2799
      %v3143 = vunpack.c.h.b16 %v2799
      %v3144 = vunpack.c.l.b16 %v2800
      %v3145 = vunpack.c.h.b16 %v2800
      %v3146 = vunpack.c.l.b16 %v2801
      %v3147 = vunpack.c.h.b16 %v2801
      %v3148 = vunpack.c.l.b16 %v2802
      %v3149 = vunpack.c.h.b16 %v2802
      %v3150 = vpack.c.b16 %v3136, %v3134
      %v3151 = vpack.c.b16 %v3137, %v3135
      %v3152 = vpack.c.b16 %v3140, %v3138
      %v3153 = vpack.c.b16 %v3141, %v3139
      %v3154 = vpack.c.b16 %v3144, %v3142
      %v3155 = vpack.c.b16 %v3145, %v3143
      %v3156 = vpack.c.b16 %v3148, %v3146
      %v3157 = vpack.c.b16 %v3149, %v3147
      %v3163 = vsel %vm1685, %v3151, 0
      %v3166 = vsel %vm1685, %v3153, 0
      %v3169 = vsel %vm1685, %v3155, 0
      %v3172 = vsel %vm1685, %v3157, 0
      %3174 = vmatprep.subr.bf16.mxu0 %v2634
      %3175 = vmatpush1.bf16.msra.mxu0 %v2652
      %3176 = vmatprep.subr.bf16.mxu0 %v2636
      %3177 = vmatpush1.bf16.msra.mxu0 %v2656
      %3178 = vmatprep.subr.bf16.mxu0 %v2638
      %3179 = vmatpush1.bf16.msra.mxu0 %v2660
      %3180 = vmatprep.subr.bf16.mxu0 %v2640
      %3181 = vmatpush1.bf16.msra.mxu0 %v2664
      %3182 = vmatprep.subr.bf16.mxu0 %v2698
      %3183 = vmatpush1.bf16.msra.mxu0 %v2716
      %3184 = vmatprep.subr.bf16.mxu0 %v2700
      %3185 = vmatpush1.bf16.msra.mxu0 %v2720
      %3186 = vmatprep.subr.bf16.mxu0 %v2702
      %3187 = vmatpush1.bf16.msra.mxu0 %v2724
      %3188 = vmatprep.subr.bf16.mxu0 %v2704
      %3189 = vmatpush1.bf16.msra.mxu0 %v2728
      %3190 = vmatprep.subr.bf16.mxu0 %v2762
      %3191 = vmatpush1.bf16.msra.mxu0 %v2780
      %3192 = vmatprep.subr.bf16.mxu0 %v2764
      %3193 = vmatpush1.bf16.msra.mxu0 %v2784
      %3194 = vmatprep.subr.bf16.mxu0 %v2766
      %3195 = vmatpush1.bf16.msra.mxu0 %v2788
      %3196 = vmatprep.subr.bf16.mxu0 %v2768
      %3197 = vmatpush1.bf16.msra.mxu0 %v2792
      %3198 = vmatprep.subr.bf16.mxu0 0
      %3199 = vmatpush1.bf16.msra.mxu0 0
      %3200 = vmatprep.subr.bf16.mxu0 0
      %3201 = vmatpush1.bf16.msra.mxu0 0
      %3202 = vmatprep.subr.bf16.mxu0 0
      %3203 = vmatpush1.bf16.msra.mxu0 0
      %3204 = vmatprep.subr.bf16.mxu0 0
      %3205 = vmatpush1.bf16.msra.mxu0 0
      %3206 = vmatprep.mubr.bf16.mxu0 %v3163
      %3207 = vmatmul.mubr.bf16.gmra.mrb[0].mxu0 %v3150
      %v3208 = vpop.f32.mrb[0].mxu0
      %v3209 = vadd.f32 %v3023, %v3208
      %v3210 = vpop.f32.mrb[0].mxu0
      %v3211 = vadd.f32 %v3025, %v3210
      %v3212 = vpop.f32.mrb[0].mxu0
      %v3213 = vadd.f32 %v3027, %v3212
      %v3214 = vpop.f32.mrb[0].mxu0
      %v3215 = vadd.f32 %v3029, %v3214
      %3216 = vmatprep.mubr.bf16.mxu0 %v3166
      %3217 = vmatmul.mubr.bf16.gmra.mrb[0].mxu0 %v3152
      %v3218 = vpop.f32.mrb[0].mxu0
      %v3219 = vadd.f32 %v3033, %v3218
      %v3220 = vpop.f32.mrb[0].mxu0
      %v3221 = vadd.f32 %v3035, %v3220
      %v3222 = vpop.f32.mrb[0].mxu0
      %v3223 = vadd.f32 %v3037, %v3222
      %v3224 = vpop.f32.mrb[0].mxu0
      %v3225 = vadd.f32 %v3039, %v3224
      %3226 = vmatprep.mubr.bf16.mxu0 %v3169
      %3227 = vmatmul.mubr.bf16.gmra.mrb[0].mxu0 %v3154
      %v3228 = vpop.f32.mrb[0].mxu0
      %v3229 = vadd.f32 %v3043, %v3228
      %v3230 = vpop.f32.mrb[0].mxu0
      %v3231 = vadd.f32 %v3045, %v3230
      %v3232 = vpop.f32.mrb[0].mxu0
      %v3233 = vadd.f32 %v3047, %v3232
      %v3234 = vpop.f32.mrb[0].mxu0
      %v3235 = vadd.f32 %v3049, %v3234
      %3236 = vmatprep.mubr.bf16.mxu0 %v3172
      %3237 = vmatmul.mubr.bf16.gmra.mrb[0].mxu0 %v3156
      %v3238 = vpop.f32.mrb[0].mxu0
      %v3239 = vadd.f32 %v3053, %v3238
      %v3240 = vpop.f32.mrb[0].mxu0
      %v3241 = vadd.f32 %v3055, %v3240
      %v3242 = vpop.f32.mrb[0].mxu0
      %v3243 = vadd.f32 %v3057, %v3242
      %v3244 = vpop.f32.mrb[0].mxu0
      %v3245 = vadd.f32 %v3059, %v3244
      %3246 = vdwg.mxu0
      %3247 = vmatprep.subr.bf16.mxu0 0
      %3248 = vmatpush1.bf16.msra.mxu0 %v2635
      %3249 = vmatprep.subr.bf16.mxu0 0
      %3250 = vmatpush1.bf16.msra.mxu0 %v2637
      %3251 = vmatprep.subr.bf16.mxu0 0
      %3252 = vmatpush1.bf16.msra.mxu0 %v2639
      %3253 = vmatprep.subr.bf16.mxu0 0
      %3254 = vmatpush1.bf16.msra.mxu0 %v2641
      %3255 = vmatprep.subr.bf16.mxu0 0
      %3256 = vmatpush1.bf16.msra.mxu0 %v2699
      %3257 = vmatprep.subr.bf16.mxu0 0
      %3258 = vmatpush1.bf16.msra.mxu0 %v2701
      %3259 = vmatprep.subr.bf16.mxu0 0
      %3260 = vmatpush1.bf16.msra.mxu0 %v2703
      %3261 = vmatprep.subr.bf16.mxu0 0
      %3262 = vmatpush1.bf16.msra.mxu0 %v2705
      %3263 = vmatprep.subr.bf16.mxu0 0
      %3264 = vmatpush1.bf16.msra.mxu0 %v2763
      %3265 = vmatprep.subr.bf16.mxu0 0
      %3266 = vmatpush1.bf16.msra.mxu0 %v2765
      %3267 = vmatprep.subr.bf16.mxu0 0
      %3268 = vmatpush1.bf16.msra.mxu0 %v2767
      %3269 = vmatprep.subr.bf16.mxu0 0
      %3270 = vmatpush1.bf16.msra.mxu0 %v2769
      %3271 = vmatprep.subr.bf16.mxu0 0
      %3272 = vmatpush1.bf16.msra.mxu0 0
      %3273 = vmatprep.subr.bf16.mxu0 0
      %3274 = vmatpush1.bf16.msra.mxu0 0
      %3275 = vmatprep.subr.bf16.mxu0 0
      %3276 = vmatpush1.bf16.msra.mxu0 0
      %3277 = vmatprep.subr.bf16.mxu0 0
      %3278 = vmatpush1.bf16.msra.mxu0 0
      %3279 = vmatprep.mubr.bf16.mxu0 %v3163
      %3280 = vmatmul.mubr.bf16.gmra.mrb[0].mxu0 %v3150
      %v3281 = vpop.f32.mrb[0].mxu0
      %v3282 = vadd.f32 %v3096, %v3281
      %v3283 = vpop.f32.mrb[0].mxu0
      %v3284 = vpop.f32.mrb[0].mxu0
      %v3285 = vadd.f32 %v3099, %v3284
      %v3286 = vpop.f32.mrb[0].mxu0
      %3287 = vmatprep.mubr.bf16.mxu0 %v3166
      %3288 = vmatmul.mubr.bf16.gmra.mrb[0].mxu0 %v3152
      %v3289 = vpop.f32.mrb[0].mxu0
      %v3290 = vadd.f32 %v3104, %v3289
      %v3291 = vpop.f32.mrb[0].mxu0
      %v3292 = vpop.f32.mrb[0].mxu0
      %v3293 = vadd.f32 %v3107, %v3292
      %v3294 = vpop.f32.mrb[0].mxu0
      %3295 = vmatprep.mubr.bf16.mxu0 %v3169
      %3296 = vmatmul.mubr.bf16.gmra.mrb[0].mxu0 %v3154
      %v3297 = vpop.f32.mrb[0].mxu0
      %v3298 = vadd.f32 %v3112, %v3297
      %v3299 = vpop.f32.mrb[0].mxu0
      %v3300 = vpop.f32.mrb[0].mxu0
      %v3301 = vadd.f32 %v3115, %v3300
      %v3302 = vpop.f32.mrb[0].mxu0
      %3303 = vmatprep.mubr.bf16.mxu0 %v3172
      %3304 = vmatmul.mubr.bf16.gmra.mrb[0].mxu0 %v3156
      %v3305 = vpop.f32.mrb[0].mxu0
      %v3306 = vadd.f32 %v3120, %v3305
      %v3307 = vpop.f32.mrb[0].mxu0
      %v3308 = vpop.f32.mrb[0].mxu0
      %v3309 = vadd.f32 %v3123, %v3308
      %v3310 = vpop.f32.mrb[0].mxu0
      %3311 = vdwg.mxu0
      %3312 = vrot.lane.b32.xlu0 %v2578, 111
      %v3313 = vpop.permute.xlu0 %3312
      %3314 = vrot.lane.b32.xlu0 %v2579, 111
      %v3315 = vpop.permute.xlu0 %3314
      %3316 = vrot.lane.b32.xlu0 %v2580, 111
      %v3317 = vpop.permute.xlu0 %3316
      %3318 = vrot.lane.b32.xlu0 %v2581, 111
      %v3319 = vpop.permute.xlu0 %3318
      %3320 = vrot.lane.b32.xlu0 %v2582, 111
      %v3321 = vpop.permute.xlu0 %3320
      %3322 = vrot.lane.b32.xlu0 %v2583, 111
      %v3323 = vpop.permute.xlu0 %3322
      %3324 = vrot.lane.b32.xlu0 %v2584, 111
      %v3325 = vpop.permute.xlu0 %3324
      %3326 = vrot.lane.b32.xlu0 %v2585, 111
      %v3327 = vpop.permute.xlu0 %3326
      %3328 = vrot.lane.b32.xlu0 %v2586, 111
      %v3329 = vpop.permute.xlu0 %3328
      %3330 = vrot.lane.b32.xlu0 %v2587, 111
      %v3331 = vpop.permute.xlu0 %3330
      %3332 = vrot.lane.b32.xlu0 %v2588, 111
      %v3333 = vpop.permute.xlu0 %3332
      %3334 = vrot.lane.b32.xlu0 %v2589, 111
      %v3335 = vpop.permute.xlu0 %3334
      %v3336 = vsel %vm849, %v3313, %v3315
      %v3337 = vsel %vm849, %v3315, %v3317
      %v3338 = vsel %vm849, %v3319, %v3321
      %v3339 = vsel %vm849, %v3321, %v3323
      %v3340 = vsel %vm849, %v3325, %v3327
      %v3341 = vsel %vm849, %v3327, %v3329
      %v3342 = vsel %vm849, %v3331, %v3333
      %v3343 = vsel %vm849, %v3333, %v3335
      %3352 = vrot.lane.b32.xlu0 %v2578, 51
      %v3353 = vpop.permute.xlu0 %3352
      %3354 = vrot.lane.b32.xlu0 %v2581, 51
      %v3355 = vpop.permute.xlu0 %3354
      %3356 = vrot.lane.b32.xlu0 %v2584, 51
      %v3357 = vpop.permute.xlu0 %3356
      %3358 = vrot.lane.b32.xlu0 %v2587, 51
      %v3359 = vpop.permute.xlu0 %3358
      %v3362 = vsel %vm856, %v3317, %v3353
      %v3366 = vsel %vm856, %v3323, %v3355
      %v3370 = vsel %vm856, %v3329, %v3357
      %v3374 = vsel %vm856, %v3335, %v3359
      %3376 = vrot.lane.b32.xlu0 %v2578, 110
      %v3377 = vpop.permute.xlu0 %3376
      %3378 = vrot.lane.b32.xlu0 %v2579, 110
      %v3379 = vpop.permute.xlu0 %3378
      %3380 = vrot.lane.b32.xlu0 %v2580, 110
      %v3381 = vpop.permute.xlu0 %3380
      %3382 = vrot.lane.b32.xlu0 %v2581, 110
      %v3383 = vpop.permute.xlu0 %3382
      %3384 = vrot.lane.b32.xlu0 %v2582, 110
      %v3385 = vpop.permute.xlu0 %3384
      %3386 = vrot.lane.b32.xlu0 %v2583, 110
      %v3387 = vpop.permute.xlu0 %3386
      %3388 = vrot.lane.b32.xlu0 %v2584, 110
      %v3389 = vpop.permute.xlu0 %3388
      %3390 = vrot.lane.b32.xlu0 %v2585, 110
      %v3391 = vpop.permute.xlu0 %3390
      %3392 = vrot.lane.b32.xlu0 %v2586, 110
      %v3393 = vpop.permute.xlu0 %3392
      %3394 = vrot.lane.b32.xlu0 %v2587, 110
      %v3395 = vpop.permute.xlu0 %3394
      %3396 = vrot.lane.b32.xlu0 %v2588, 110
      %v3397 = vpop.permute.xlu0 %3396
      %3398 = vrot.lane.b32.xlu0 %v2589, 110
      %v3399 = vpop.permute.xlu0 %3398
      %v3400 = vsel %vm867, %v3377, %v3379
      %v3401 = vsel %vm867, %v3379, %v3381
      %v3402 = vsel %vm867, %v3383, %v3385
      %v3403 = vsel %vm867, %v3385, %v3387
      %v3404 = vsel %vm867, %v3389, %v3391
      %v3405 = vsel %vm867, %v3391, %v3393
      %v3406 = vsel %vm867, %v3395, %v3397
      %v3407 = vsel %vm867, %v3397, %v3399
      %3416 = vrot.lane.b32.xlu0 %v2578, 50
      %v3417 = vpop.permute.xlu0 %3416
      %3418 = vrot.lane.b32.xlu0 %v2581, 50
      %v3419 = vpop.permute.xlu0 %3418
      %3420 = vrot.lane.b32.xlu0 %v2584, 50
      %v3421 = vpop.permute.xlu0 %3420
      %3422 = vrot.lane.b32.xlu0 %v2587, 50
      %v3423 = vpop.permute.xlu0 %3422
      %v3426 = vsel %vm872, %v3381, %v3417
      %v3430 = vsel %vm872, %v3387, %v3419
      %v3434 = vsel %vm872, %v3393, %v3421
      %v3438 = vsel %vm872, %v3399, %v3423
      %3440 = vrot.lane.b32.xlu0 %v2578, 109
      %v3441 = vpop.permute.xlu0 %3440
      %3442 = vrot.lane.b32.xlu0 %v2579, 109
      %v3443 = vpop.permute.xlu0 %3442
      %3444 = vrot.lane.b32.xlu0 %v2580, 109
      %v3445 = vpop.permute.xlu0 %3444
      %3446 = vrot.lane.b32.xlu0 %v2581, 109
      %v3447 = vpop.permute.xlu0 %3446
      %3448 = vrot.lane.b32.xlu0 %v2582, 109
      %v3449 = vpop.permute.xlu0 %3448
      %3450 = vrot.lane.b32.xlu0 %v2583, 109
      %v3451 = vpop.permute.xlu0 %3450
      %3452 = vrot.lane.b32.xlu0 %v2584, 109
      %v3453 = vpop.permute.xlu0 %3452
      %3454 = vrot.lane.b32.xlu0 %v2585, 109
      %v3455 = vpop.permute.xlu0 %3454
      %3456 = vrot.lane.b32.xlu0 %v2586, 109
      %v3457 = vpop.permute.xlu0 %3456
      %3458 = vrot.lane.b32.xlu0 %v2587, 109
      %v3459 = vpop.permute.xlu0 %3458
      %3460 = vrot.lane.b32.xlu0 %v2588, 109
      %v3461 = vpop.permute.xlu0 %3460
      %3462 = vrot.lane.b32.xlu0 %v2589, 109
      %v3463 = vpop.permute.xlu0 %3462
      %v3464 = vsel %vm882, %v3441, %v3443
      %v3465 = vsel %vm882, %v3443, %v3445
      %v3466 = vsel %vm882, %v3447, %v3449
      %v3467 = vsel %vm882, %v3449, %v3451
      %v3468 = vsel %vm882, %v3453, %v3455
      %v3469 = vsel %vm882, %v3455, %v3457
      %v3470 = vsel %vm882, %v3459, %v3461
      %v3471 = vsel %vm882, %v3461, %v3463
      %3480 = vrot.lane.b32.xlu0 %v2578, 49
      %v3481 = vpop.permute.xlu0 %3480
      %3482 = vrot.lane.b32.xlu0 %v2581, 49
      %v3483 = vpop.permute.xlu0 %3482
      %3484 = vrot.lane.b32.xlu0 %v2584, 49
      %v3485 = vpop.permute.xlu0 %3484
      %3486 = vrot.lane.b32.xlu0 %v2587, 49
      %v3487 = vpop.permute.xlu0 %3486
      %v3490 = vsel %vm887, %v3445, %v3481
      %v3494 = vsel %vm887, %v3451, %v3483
      %v3498 = vsel %vm887, %v3457, %v3485
      %v3502 = vsel %vm887, %v3463, %v3487
      %s3504 = scalar_lea.vmem %s4, 320
      %v3505 = vld [vmem:[%s3504] sm:$0xff]
      %v3506 = vld [vmem:[%s3504 + $0x8] sm:$0xff]
      %v3507 = vld [vmem:[%s3504 + $0x10] sm:$0xff]
      %v3508 = vld [vmem:[%s3504 + $0x18] sm:$0xff]
      %v3509 = vld [vmem:[%s3504 + $0x20] sm:$0xff]
      %v3510 = vld [vmem:[%s3504 + $0x28] sm:$0xff]
      %v3511 = vld [vmem:[%s3504 + $0x30] sm:$0xff]
      %v3512 = vld [vmem:[%s3504 + $0x38] sm:$0xff]
      %v3521 = vunpack.c.l.b16 %v3505
      %v3522 = vunpack.c.h.b16 %v3505
      %v3523 = vunpack.c.l.b16 %v3506
      %v3524 = vunpack.c.h.b16 %v3506
      %v3525 = vunpack.c.l.b16 %v3507
      %v3526 = vunpack.c.h.b16 %v3507
      %v3527 = vunpack.c.l.b16 %v3508
      %v3528 = vunpack.c.h.b16 %v3508
      %v3529 = vunpack.c.l.b16 %v3509
      %v3530 = vunpack.c.h.b16 %v3509
      %v3531 = vunpack.c.l.b16 %v3510
      %v3532 = vunpack.c.h.b16 %v3510
      %v3533 = vunpack.c.l.b16 %v3511
      %v3534 = vunpack.c.h.b16 %v3511
      %v3535 = vunpack.c.l.b16 %v3512
      %v3536 = vunpack.c.h.b16 %v3512
      %v3537 = vpack.c.b16 %v3523, %v3521
      %v3538 = vpack.c.b16 %v3524, %v3522
      %v3539 = vpack.c.b16 %v3527, %v3525
      %v3540 = vpack.c.b16 %v3528, %v3526
      %v3541 = vpack.c.b16 %v3531, %v3529
      %v3542 = vpack.c.b16 %v3532, %v3530
      %v3543 = vpack.c.b16 %v3535, %v3533
      %v3544 = vpack.c.b16 %v3536, %v3534
      %v3550 = vsel %vm1685, %v3538, 0
      %v3553 = vsel %vm1685, %v3540, 0
      %v3556 = vsel %vm1685, %v3542, 0
      %v3559 = vsel %vm1685, %v3544, 0
      %3561 = vmatprep.subr.bf16.mxu0 %v3337
      %3562 = vmatpush1.bf16.msra.mxu0 %v3336
      %3563 = vmatprep.subr.bf16.mxu0 %v3339
      %3564 = vmatpush1.bf16.msra.mxu0 %v3338
      %3565 = vmatprep.subr.bf16.mxu0 %v3341
      %3566 = vmatpush1.bf16.msra.mxu0 %v3340
      %3567 = vmatprep.subr.bf16.mxu0 %v3343
      %3568 = vmatpush1.bf16.msra.mxu0 %v3342
      %3569 = vmatprep.subr.bf16.mxu0 %v3401
      %3570 = vmatpush1.bf16.msra.mxu0 %v3400
      %3571 = vmatprep.subr.bf16.mxu0 %v3403
      %3572 = vmatpush1.bf16.msra.mxu0 %v3402
      %3573 = vmatprep.subr.bf16.mxu0 %v3405
      %3574 = vmatpush1.bf16.msra.mxu0 %v3404
      %3575 = vmatprep.subr.bf16.mxu0 %v3407
      %3576 = vmatpush1.bf16.msra.mxu0 %v3406
      %3577 = vmatprep.subr.bf16.mxu0 %v3465
      %3578 = vmatpush1.bf16.msra.mxu0 %v3464
      %3579 = vmatprep.subr.bf16.mxu0 %v3467
      %3580 = vmatpush1.bf16.msra.mxu0 %v3466
      %3581 = vmatprep.subr.bf16.mxu0 %v3469
      %3582 = vmatpush1.bf16.msra.mxu0 %v3468
      %3583 = vmatprep.subr.bf16.mxu0 %v3471
      %3584 = vmatpush1.bf16.msra.mxu0 %v3470
      %3585 = vmatprep.subr.bf16.mxu0 0
      %3586 = vmatpush1.bf16.msra.mxu0 0
      %3587 = vmatprep.subr.bf16.mxu0 0
      %3588 = vmatpush1.bf16.msra.mxu0 0
      %3589 = vmatprep.subr.bf16.mxu0 0
      %3590 = vmatpush1.bf16.msra.mxu0 0
      %3591 = vmatprep.subr.bf16.mxu0 0
      %3592 = vmatpush1.bf16.msra.mxu0 0
      %3593 = vmatprep.mubr.bf16.mxu0 %v3550
      %3594 = vmatmul.mubr.bf16.gmra.mrb[0].mxu0 %v3537
      %v3595 = vpop.f32.mrb[0].mxu0
      %v3596 = vadd.f32 0.0, %v3595
      %v3597 = vpop.f32.mrb[0].mxu0
      %v3598 = vadd.f32 0.0, %v3597
      %v3599 = vpop.f32.mrb[0].mxu0
      %v3600 = vadd.f32 0.0, %v3599
      %v3601 = vpop.f32.mrb[0].mxu0
      %v3602 = vadd.f32 0.0, %v3601
      %3603 = vmatprep.mubr.bf16.mxu0 %v3553
      %3604 = vmatmul.mubr.bf16.gmra.mrb[0].mxu0 %v3539
      %v3605 = vpop.f32.mrb[0].mxu0
      %v3606 = vadd.f32 0.0, %v3605
      %v3607 = vpop.f32.mrb[0].mxu0
      %v3608 = vadd.f32 0.0, %v3607
      %v3609 = vpop.f32.mrb[0].mxu0
      %v3610 = vadd.f32 0.0, %v3609
      %v3611 = vpop.f32.mrb[0].mxu0
      %v3612 = vadd.f32 0.0, %v3611
      %3613 = vmatprep.mubr.bf16.mxu0 %v3556
      %3614 = vmatmul.mubr.bf16.gmra.mrb[0].mxu0 %v3541
      %v3615 = vpop.f32.mrb[0].mxu0
      %v3616 = vadd.f32 0.0, %v3615
      %v3617 = vpop.f32.mrb[0].mxu0
      %v3618 = vadd.f32 0.0, %v3617
      %v3619 = vpop.f32.mrb[0].mxu0
      %v3620 = vadd.f32 0.0, %v3619
      %v3621 = vpop.f32.mrb[0].mxu0
      %v3622 = vadd.f32 0.0, %v3621
      %3623 = vmatprep.mubr.bf16.mxu0 %v3559
      %3624 = vmatmul.mubr.bf16.gmra.mrb[0].mxu0 %v3543
      %v3625 = vpop.f32.mrb[0].mxu0
      %v3626 = vadd.f32 0.0, %v3625
      %v3627 = vpop.f32.mrb[0].mxu0
      %v3628 = vadd.f32 0.0, %v3627
      %v3629 = vpop.f32.mrb[0].mxu0
      %v3630 = vadd.f32 0.0, %v3629
      %v3631 = vpop.f32.mrb[0].mxu0
      %v3632 = vadd.f32 0.0, %v3631
      %3633 = vdwg.mxu0
      %3634 = vmatprep.subr.bf16.mxu0 0
      %3635 = vmatpush1.bf16.msra.mxu0 %v3362
      %3636 = vmatprep.subr.bf16.mxu0 0
      %3637 = vmatpush1.bf16.msra.mxu0 %v3366
      %3638 = vmatprep.subr.bf16.mxu0 0
      %3639 = vmatpush1.bf16.msra.mxu0 %v3370
      %3640 = vmatprep.subr.bf16.mxu0 0
      %3641 = vmatpush1.bf16.msra.mxu0 %v3374
      %3642 = vmatprep.subr.bf16.mxu0 0
      %3643 = vmatpush1.bf16.msra.mxu0 %v3426
      %3644 = vmatprep.subr.bf16.mxu0 0
      %3645 = vmatpush1.bf16.msra.mxu0 %v3430
      %3646 = vmatprep.subr.bf16.mxu0 0
      %3647 = vmatpush1.bf16.msra.mxu0 %v3434
      %3648 = vmatprep.subr.bf16.mxu0 0
      %3649 = vmatpush1.bf16.msra.mxu0 %v3438
      %3650 = vmatprep.subr.bf16.mxu0 0
      %3651 = vmatpush1.bf16.msra.mxu0 %v3490
      %3652 = vmatprep.subr.bf16.mxu0 0
      %3653 = vmatpush1.bf16.msra.mxu0 %v3494
      %3654 = vmatprep.subr.bf16.mxu0 0
      %3655 = vmatpush1.bf16.msra.mxu0 %v3498
      %3656 = vmatprep.subr.bf16.mxu0 0
      %3657 = vmatpush1.bf16.msra.mxu0 %v3502
      %3658 = vmatprep.subr.bf16.mxu0 0
      %3659 = vmatpush1.bf16.msra.mxu0 0
      %3660 = vmatprep.subr.bf16.mxu0 0
      %3661 = vmatpush1.bf16.msra.mxu0 0
      %3662 = vmatprep.subr.bf16.mxu0 0
      %3663 = vmatpush1.bf16.msra.mxu0 0
      %3664 = vmatprep.subr.bf16.mxu0 0
      %3665 = vmatpush1.bf16.msra.mxu0 0
      %3666 = vmatprep.mubr.bf16.mxu0 %v3550
      %3667 = vmatmul.mubr.bf16.gmra.mrb[0].mxu0 %v3537
      %v3668 = vpop.f32.mrb[0].mxu0
      %v3669 = vadd.f32 0.0, %v3668
      %v3670 = vpop.f32.mrb[0].mxu0
      %v3671 = vpop.f32.mrb[0].mxu0
      %v3672 = vadd.f32 0.0, %v3671
      %v3673 = vpop.f32.mrb[0].mxu0
      %3674 = vmatprep.mubr.bf16.mxu0 %v3553
      %3675 = vmatmul.mubr.bf16.gmra.mrb[0].mxu0 %v3539
      %v3676 = vpop.f32.mrb[0].mxu0
      %v3677 = vadd.f32 0.0, %v3676
      %v3678 = vpop.f32.mrb[0].mxu0
      %v3679 = vpop.f32.mrb[0].mxu0
      %v3680 = vadd.f32 0.0, %v3679
      %v3681 = vpop.f32.mrb[0].mxu0
      %3682 = vmatprep.mubr.bf16.mxu0 %v3556
      %3683 = vmatmul.mubr.bf16.gmra.mrb[0].mxu0 %v3541
      %v3684 = vpop.f32.mrb[0].mxu0
      %v3685 = vadd.f32 0.0, %v3684
      %v3686 = vpop.f32.mrb[0].mxu0
      %v3687 = vpop.f32.mrb[0].mxu0
      %v3688 = vadd.f32 0.0, %v3687
      %v3689 = vpop.f32.mrb[0].mxu0
      %3690 = vmatprep.mubr.bf16.mxu0 %v3559
      %3691 = vmatmul.mubr.bf16.gmra.mrb[0].mxu0 %v3543
      %v3692 = vpop.f32.mrb[0].mxu0
      %v3693 = vadd.f32 0.0, %v3692
      %v3694 = vpop.f32.mrb[0].mxu0
      %v3695 = vpop.f32.mrb[0].mxu0
      %v3696 = vadd.f32 0.0, %v3695
      %v3697 = vpop.f32.mrb[0].mxu0
      %3698 = vdwg.mxu0
      %v3699 = vadd.f32 %v3209, %v3596
      %v3700 = vadd.f32 %v3211, %v3598
      %v3701 = vadd.f32 %v3282, %v3669
      %v3702 = vadd.f32 %v3213, %v3600
      %v3703 = vadd.f32 %v3215, %v3602
      %v3704 = vadd.f32 %v3285, %v3672
      %v3705 = vadd.f32 %v3219, %v3606
      %v3706 = vadd.f32 %v3221, %v3608
      %v3707 = vadd.f32 %v3290, %v3677
      %v3708 = vadd.f32 %v3223, %v3610
      %v3709 = vadd.f32 %v3225, %v3612
      %v3710 = vadd.f32 %v3293, %v3680
      %v3711 = vadd.f32 %v3229, %v3616
      %v3712 = vadd.f32 %v3231, %v3618
      %v3713 = vadd.f32 %v3298, %v3685
      %v3714 = vadd.f32 %v3233, %v3620
      %v3715 = vadd.f32 %v3235, %v3622
      %v3716 = vadd.f32 %v3301, %v3688
      %v3717 = vadd.f32 %v3239, %v3626
      %v3718 = vadd.f32 %v3241, %v3628
      %v3719 = vadd.f32 %v3306, %v3693
      %v3720 = vadd.f32 %v3243, %v3630
      %v3721 = vadd.f32 %v3245, %v3632
      %v3722 = vadd.f32 %v3309, %v3696
      %s3723 = scalar_lea.vmem %s5, 64
      %v3724 = vld [vmem:[%s3723] sm:$0xff]
      %v3725 = vld [vmem:[%s3723 + $0x8] sm:$0xff]
      %v3726 = vld [vmem:[%s3723 + $0x10] sm:$0xff]
      %v3727 = vld [vmem:[%s3723 + $0x18] sm:$0xff]
      %v3728 = vld [vmem:[%s3723 + $0x20] sm:$0xff]
      %v3729 = vld [vmem:[%s3723 + $0x28] sm:$0xff]
      %v3730 = vld [vmem:[%s3723 + $0x30] sm:$0xff]
      %v3731 = vld [vmem:[%s3723 + $0x38] sm:$0xff]
      %3733 = vset.pattern.permute.xlu0 0
      %3734 = vperm.xlu0 %3733, %v3724
      %v3735 = vpop.permute.xlu0 %3734
      %3738 = vset.pattern.permute.xlu0 0
      %3739 = vperm.xlu0 %3738, %v3725
      %v3740 = vpop.permute.xlu0 %3739
      %3743 = vset.pattern.permute.xlu0 0
      %3744 = vperm.xlu0 %3743, %v3726
      %v3745 = vpop.permute.xlu0 %3744
      %3748 = vset.pattern.permute.xlu0 0
      %3749 = vperm.xlu0 %3748, %v3727
      %v3750 = vpop.permute.xlu0 %3749
      %3753 = vset.pattern.permute.xlu0 0
      %3754 = vperm.xlu0 %3753, %v3728
      %v3755 = vpop.permute.xlu0 %3754
      %3758 = vset.pattern.permute.xlu0 0
      %3759 = vperm.xlu0 %3758, %v3729
      %v3760 = vpop.permute.xlu0 %3759
      %3763 = vset.pattern.permute.xlu0 0
      %3764 = vperm.xlu0 %3763, %v3730
      %v3765 = vpop.permute.xlu0 %3764
      %3768 = vset.pattern.permute.xlu0 0
      %3769 = vperm.xlu0 %3768, %v3731
      %v3770 = vpop.permute.xlu0 %3769
      %v3772 = vadd.f32 %v3699, %v3735
      %v3773 = vadd.f32 %v3700, %v3735
      %v3774 = vadd.f32 %v3701, %v3735
      %v3775 = vadd.f32 %v3702, %v3740
      %v3776 = vadd.f32 %v3703, %v3740
      %v3777 = vadd.f32 %v3704, %v3740
      %v3778 = vadd.f32 %v3705, %v3745
      %v3779 = vadd.f32 %v3706, %v3745
      %v3780 = vadd.f32 %v3707, %v3745
      %v3781 = vadd.f32 %v3708, %v3750
      %v3782 = vadd.f32 %v3709, %v3750
      %v3783 = vadd.f32 %v3710, %v3750
      %v3784 = vadd.f32 %v3711, %v3755
      %v3785 = vadd.f32 %v3712, %v3755
      %v3786 = vadd.f32 %v3713, %v3755
      %v3787 = vadd.f32 %v3714, %v3760
      %v3788 = vadd.f32 %v3715, %v3760
      %v3789 = vadd.f32 %v3716, %v3760
      %v3790 = vadd.f32 %v3717, %v3765
      %v3791 = vadd.f32 %v3718, %v3765
      %v3792 = vadd.f32 %v3719, %v3765
      %v3793 = vadd.f32 %v3720, %v3770
      %v3794 = vadd.f32 %v3721, %v3770
      %v3795 = vadd.f32 %v3722, %v3770
      %v3796 = vmax.f32 %v3772, 0.0
      %v3797 = vmax.f32 %v3773, 0.0
      %v3798 = vmax.f32 %v3774, 0.0
      %v3799 = vmax.f32 %v3775, 0.0
      %v3800 = vmax.f32 %v3776, 0.0
      %v3801 = vmax.f32 %v3777, 0.0
      %v3802 = vmax.f32 %v3778, 0.0
      %v3803 = vmax.f32 %v3779, 0.0
      %v3804 = vmax.f32 %v3780, 0.0
      %v3805 = vmax.f32 %v3781, 0.0
      %v3806 = vmax.f32 %v3782, 0.0
      %v3807 = vmax.f32 %v3783, 0.0
      %v3808 = vmax.f32 %v3784, 0.0
      %v3809 = vmax.f32 %v3785, 0.0
      %v3810 = vmax.f32 %v3786, 0.0
      %v3811 = vmax.f32 %v3787, 0.0
      %v3812 = vmax.f32 %v3788, 0.0
      %v3813 = vmax.f32 %v3789, 0.0
      %v3814 = vmax.f32 %v3790, 0.0
      %v3815 = vmax.f32 %v3791, 0.0
      %v3816 = vmax.f32 %v3792, 0.0
      %v3817 = vmax.f32 %v3793, 0.0
      %v3818 = vmax.f32 %v3794, 0.0
      %v3819 = vmax.f32 %v3795, 0.0
      %v3820 = vmul.f32 %v3796, %v1227
      %v3821 = vmul.f32 %v3797, %v1231
      %v3822 = vmul.f32 %v3798, %v1235
      %v3823 = vmul.f32 %v3799, %v1227
      %v3824 = vmul.f32 %v3800, %v1231
      %v3825 = vmul.f32 %v3801, %v1235
      %v3826 = vmul.f32 %v3802, %v1227
      %v3827 = vmul.f32 %v3803, %v1231
      %v3828 = vmul.f32 %v3804, %v1235
      %v3829 = vmul.f32 %v3805, %v1227
      %v3830 = vmul.f32 %v3806, %v1231
      %v3831 = vmul.f32 %v3807, %v1235
      %v3832 = vmul.f32 %v3808, %v1227
      %v3833 = vmul.f32 %v3809, %v1231
      %v3834 = vmul.f32 %v3810, %v1235
      %v3835 = vmul.f32 %v3811, %v1227
      %v3836 = vmul.f32 %v3812, %v1231
      %v3837 = vmul.f32 %v3813, %v1235
      %v3838 = vmul.f32 %v3814, %v1227
      %v3839 = vmul.f32 %v3815, %v1231
      %v3840 = vmul.f32 %v3816, %v1235
      %v3841 = vmul.f32 %v3817, %v1227
      %v3842 = vmul.f32 %v3818, %v1231
      %v3843 = vmul.f32 %v3819, %v1235
      %v3844 = vpack.c.bf16 %v3823, %v3820
      %v3845 = vpack.c.bf16 %v3824, %v3821
      %v3846 = vpack.c.bf16 %v3825, %v3822
      %v3847 = vpack.c.bf16 %v3829, %v3826
      %v3848 = vpack.c.bf16 %v3830, %v3827
      %v3849 = vpack.c.bf16 %v3831, %v3828
      %v3850 = vpack.c.bf16 %v3835, %v3832
      %v3851 = vpack.c.bf16 %v3836, %v3833
      %v3852 = vpack.c.bf16 %v3837, %v3834
      %v3853 = vpack.c.bf16 %v3841, %v3838
      %v3854 = vpack.c.bf16 %v3842, %v3839
      %v3855 = vpack.c.bf16 %v3843, %v3840
      %3856 = vst [vmem:[#allocation2] sm:$0xff] %v3844
      %3857 = vst [vmem:[#allocation2 + $0x8] sm:$0xff] %v3845
      %3858 = vst.msk [vmem:[#allocation2 + $0x10] sm:$0xff] %vm1277, %v3846
      %3859 = vst [vmem:[#allocation2 + $0x18] sm:$0xff] %v3847
      %3860 = vst [vmem:[#allocation2 + $0x20] sm:$0xff] %v3848
      %3861 = vst.msk [vmem:[#allocation2 + $0x28] sm:$0xff] %vm1277, %v3849
      %3862 = vst [vmem:[#allocation2 + $0x30] sm:$0xff] %v3850
      %3863 = vst [vmem:[#allocation2 + $0x38] sm:$0xff] %v3851
      %3864 = vst.msk [vmem:[#allocation2 + $0x40] sm:$0xff] %vm1277, %v3852
      %3865 = vst [vmem:[#allocation2 + $0x48] sm:$0xff] %v3853
      %3866 = vst [vmem:[#allocation2 + $0x50] sm:$0xff] %v3854
      %3867 = vst.msk [vmem:[#allocation2 + $0x58] sm:$0xff] %vm1277, %v3855
      %v3868 = vld [vmem:[#allocation2] sm:$0xff]
      %v3869 = vld [vmem:[#allocation2 + $0x8] sm:$0xff]
      %v3870 = vld [vmem:[#allocation2 + $0x10] sm:$0xff]
      %v3871 = vld [vmem:[#allocation2 + $0x18] sm:$0xff]
      %v3872 = vld [vmem:[#allocation2 + $0x20] sm:$0xff]
      %v3873 = vld [vmem:[#allocation2 + $0x28] sm:$0xff]
      %v3874 = vld [vmem:[#allocation2 + $0x30] sm:$0xff]
      %v3875 = vld [vmem:[#allocation2 + $0x38] sm:$0xff]
      %v3876 = vld [vmem:[#allocation2 + $0x40] sm:$0xff]
      %v3877 = vld [vmem:[#allocation2 + $0x48] sm:$0xff]
      %v3878 = vld [vmem:[#allocation2 + $0x50] sm:$0xff]
      %v3879 = vld [vmem:[#allocation2 + $0x58] sm:$0xff]
      %3884 = vrot.lane.b32.xlu0 %v3870, 79
      %v3885 = vpop.permute.xlu0 %3884
      %3886 = vrot.lane.b32.xlu0 %v3873, 79
      %v3887 = vpop.permute.xlu0 %3886
      %3888 = vrot.lane.b32.xlu0 %v3876, 79
      %v3889 = vpop.permute.xlu0 %3888
      %3890 = vrot.lane.b32.xlu0 %v3879, 79
      %v3891 = vpop.permute.xlu0 %3890
      %3900 = vrot.lane.b32.xlu0 %v3868, 19
      %v3901 = vpop.permute.xlu0 %3900
      %3902 = vrot.lane.b32.xlu0 %v3869, 19
      %v3903 = vpop.permute.xlu0 %3902
      %3904 = vrot.lane.b32.xlu0 %v3870, 19
      %v3905 = vpop.permute.xlu0 %3904
      %3906 = vrot.lane.b32.xlu0 %v3871, 19
      %v3907 = vpop.permute.xlu0 %3906
      %3908 = vrot.lane.b32.xlu0 %v3872, 19
      %v3909 = vpop.permute.xlu0 %3908
      %3910 = vrot.lane.b32.xlu0 %v3873, 19
      %v3911 = vpop.permute.xlu0 %3910
      %3912 = vrot.lane.b32.xlu0 %v3874, 19
      %v3913 = vpop.permute.xlu0 %3912
      %3914 = vrot.lane.b32.xlu0 %v3875, 19
      %v3915 = vpop.permute.xlu0 %3914
      %3916 = vrot.lane.b32.xlu0 %v3876, 19
      %v3917 = vpop.permute.xlu0 %3916
      %3918 = vrot.lane.b32.xlu0 %v3877, 19
      %v3919 = vpop.permute.xlu0 %3918
      %3920 = vrot.lane.b32.xlu0 %v3878, 19
      %v3921 = vpop.permute.xlu0 %3920
      %3922 = vrot.lane.b32.xlu0 %v3879, 19
      %v3923 = vpop.permute.xlu0 %3922
      %v3924 = vsel %vm338, %v3901, %v3903
      %v3925 = vsel %vm338, %v3903, %v3905
      %v3926 = vsel %vm338, %v3907, %v3909
      %v3927 = vsel %vm338, %v3909, %v3911
      %v3928 = vsel %vm338, %v3913, %v3915
      %v3929 = vsel %vm338, %v3915, %v3917
      %v3930 = vsel %vm338, %v3919, %v3921
      %v3931 = vsel %vm338, %v3921, %v3923
      %v3942 = vsel %vm343, %v3885, %v3901
      %v3946 = vsel %vm343, %v3887, %v3907
      %v3950 = vsel %vm343, %v3889, %v3913
      %v3954 = vsel %vm343, %v3891, %v3919
      %3956 = vrot.lane.b32.xlu0 %v3870, 78
      %v3957 = vpop.permute.xlu0 %3956
      %3958 = vrot.lane.b32.xlu0 %v3873, 78
      %v3959 = vpop.permute.xlu0 %3958
      %3960 = vrot.lane.b32.xlu0 %v3876, 78
      %v3961 = vpop.permute.xlu0 %3960
      %3962 = vrot.lane.b32.xlu0 %v3879, 78
      %v3963 = vpop.permute.xlu0 %3962
      %3964 = vrot.lane.b32.xlu0 %v3868, 18
      %v3965 = vpop.permute.xlu0 %3964
      %3966 = vrot.lane.b32.xlu0 %v3869, 18
      %v3967 = vpop.permute.xlu0 %3966
      %3968 = vrot.lane.b32.xlu0 %v3870, 18
      %v3969 = vpop.permute.xlu0 %3968
      %3970 = vrot.lane.b32.xlu0 %v3871, 18
      %v3971 = vpop.permute.xlu0 %3970
      %3972 = vrot.lane.b32.xlu0 %v3872, 18
      %v3973 = vpop.permute.xlu0 %3972
      %3974 = vrot.lane.b32.xlu0 %v3873, 18
      %v3975 = vpop.permute.xlu0 %3974
      %3976 = vrot.lane.b32.xlu0 %v3874, 18
      %v3977 = vpop.permute.xlu0 %3976
      %3978 = vrot.lane.b32.xlu0 %v3875, 18
      %v3979 = vpop.permute.xlu0 %3978
      %3980 = vrot.lane.b32.xlu0 %v3876, 18
      %v3981 = vpop.permute.xlu0 %3980
      %3982 = vrot.lane.b32.xlu0 %v3877, 18
      %v3983 = vpop.permute.xlu0 %3982
      %3984 = vrot.lane.b32.xlu0 %v3878, 18
      %v3985 = vpop.permute.xlu0 %3984
      %3986 = vrot.lane.b32.xlu0 %v3879, 18
      %v3987 = vpop.permute.xlu0 %3986
      %v3988 = vsel %vm356, %v3965, %v3967
      %v3989 = vsel %vm356, %v3967, %v3969
      %v3990 = vsel %vm356, %v3971, %v3973
      %v3991 = vsel %vm356, %v3973, %v3975
      %v3992 = vsel %vm356, %v3977, %v3979
      %v3993 = vsel %vm356, %v3979, %v3981
      %v3994 = vsel %vm356, %v3983, %v3985
      %v3995 = vsel %vm356, %v3985, %v3987
      %v4006 = vsel %vm359, %v3957, %v3965
      %v4010 = vsel %vm359, %v3959, %v3971
      %v4014 = vsel %vm359, %v3961, %v3977
      %v4018 = vsel %vm359, %v3963, %v3983
      %4020 = vrot.lane.b32.xlu0 %v3870, 77
      %v4021 = vpop.permute.xlu0 %4020
      %4022 = vrot.lane.b32.xlu0 %v3873, 77
      %v4023 = vpop.permute.xlu0 %4022
      %4024 = vrot.lane.b32.xlu0 %v3876, 77
      %v4025 = vpop.permute.xlu0 %4024
      %4026 = vrot.lane.b32.xlu0 %v3879, 77
      %v4027 = vpop.permute.xlu0 %4026
      %4028 = vrot.lane.b32.xlu0 %v3868, 17
      %v4029 = vpop.permute.xlu0 %4028
      %4030 = vrot.lane.b32.xlu0 %v3869, 17
      %v4031 = vpop.permute.xlu0 %4030
      %4032 = vrot.lane.b32.xlu0 %v3870, 17
      %v4033 = vpop.permute.xlu0 %4032
      %4034 = vrot.lane.b32.xlu0 %v3871, 17
      %v4035 = vpop.permute.xlu0 %4034
      %4036 = vrot.lane.b32.xlu0 %v3872, 17
      %v4037 = vpop.permute.xlu0 %4036
      %4038 = vrot.lane.b32.xlu0 %v3873, 17
      %v4039 = vpop.permute.xlu0 %4038
      %4040 = vrot.lane.b32.xlu0 %v3874, 17
      %v4041 = vpop.permute.xlu0 %4040
      %4042 = vrot.lane.b32.xlu0 %v3875, 17
      %v4043 = vpop.permute.xlu0 %4042
      %4044 = vrot.lane.b32.xlu0 %v3876, 17
      %v4045 = vpop.permute.xlu0 %4044
      %4046 = vrot.lane.b32.xlu0 %v3877, 17
      %v4047 = vpop.permute.xlu0 %4046
      %4048 = vrot.lane.b32.xlu0 %v3878, 17
      %v4049 = vpop.permute.xlu0 %4048
      %4050 = vrot.lane.b32.xlu0 %v3879, 17
      %v4051 = vpop.permute.xlu0 %4050
      %v4052 = vsel %vm371, %v4029, %v4031
      %v4053 = vsel %vm371, %v4031, %v4033
      %v4054 = vsel %vm371, %v4035, %v4037
      %v4055 = vsel %vm371, %v4037, %v4039
      %v4056 = vsel %vm371, %v4041, %v4043
      %v4057 = vsel %vm371, %v4043, %v4045
      %v4058 = vsel %vm371, %v4047, %v4049
      %v4059 = vsel %vm371, %v4049, %v4051
      %v4070 = vsel %vm374, %v4021, %v4029
      %v4074 = vsel %vm374, %v4023, %v4035
      %v4078 = vsel %vm374, %v4025, %v4041
      %v4082 = vsel %vm374, %v4027, %v4047
      %s4084 = scalar_lea.vmem %s4, 384
      %v4085 = vld [vmem:[%s4084] sm:$0xff]
      %v4086 = vld [vmem:[%s4084 + $0x8] sm:$0xff]
      %v4087 = vld [vmem:[%s4084 + $0x10] sm:$0xff]
      %v4088 = vld [vmem:[%s4084 + $0x18] sm:$0xff]
      %v4089 = vld [vmem:[%s4084 + $0x20] sm:$0xff]
      %v4090 = vld [vmem:[%s4084 + $0x28] sm:$0xff]
      %v4091 = vld [vmem:[%s4084 + $0x30] sm:$0xff]
      %v4092 = vld [vmem:[%s4084 + $0x38] sm:$0xff]
      %4093 = vrot.lane.b32.xlu0 %v3870, 61
      %v4094 = vpop.permute.xlu0 %4093
      %4095 = vrot.lane.b32.xlu0 %v3873, 61
      %v4096 = vpop.permute.xlu0 %4095
      %4097 = vrot.lane.b32.xlu0 %v3876, 61
      %v4098 = vpop.permute.xlu0 %4097
      %4099 = vrot.lane.b32.xlu0 %v3879, 61
      %v4100 = vpop.permute.xlu0 %4099
      %4101 = vrot.lane.b32.xlu0 %v3868, 1
      %v4102 = vpop.permute.xlu0 %4101
      %4103 = vrot.lane.b32.xlu0 %v3869, 1
      %v4104 = vpop.permute.xlu0 %4103
      %4105 = vrot.lane.b32.xlu0 %v3870, 1
      %v4106 = vpop.permute.xlu0 %4105
      %4107 = vrot.lane.b32.xlu0 %v3871, 1
      %v4108 = vpop.permute.xlu0 %4107
      %4109 = vrot.lane.b32.xlu0 %v3872, 1
      %v4110 = vpop.permute.xlu0 %4109
      %4111 = vrot.lane.b32.xlu0 %v3873, 1
      %v4112 = vpop.permute.xlu0 %4111
      %4113 = vrot.lane.b32.xlu0 %v3874, 1
      %v4114 = vpop.permute.xlu0 %4113
      %4115 = vrot.lane.b32.xlu0 %v3875, 1
      %v4116 = vpop.permute.xlu0 %4115
      %4117 = vrot.lane.b32.xlu0 %v3876, 1
      %v4118 = vpop.permute.xlu0 %4117
      %4119 = vrot.lane.b32.xlu0 %v3877, 1
      %v4120 = vpop.permute.xlu0 %4119
      %4121 = vrot.lane.b32.xlu0 %v3878, 1
      %v4122 = vpop.permute.xlu0 %4121
      %4123 = vrot.lane.b32.xlu0 %v3879, 1
      %v4124 = vpop.permute.xlu0 %4123
      %v4125 = vsel %vm425, %v4102, %v4104
      %v4126 = vsel %vm425, %v4104, %v4106
      %v4127 = vsel %vm425, %v4108, %v4110
      %v4128 = vsel %vm425, %v4110, %v4112
      %v4129 = vsel %vm425, %v4114, %v4116
      %v4130 = vsel %vm425, %v4116, %v4118
      %v4131 = vsel %vm425, %v4120, %v4122
      %v4132 = vsel %vm425, %v4122, %v4124
      %v4143 = vsel %vm430, %v4094, %v4102
      %v4147 = vsel %vm430, %v4096, %v4108
      %v4151 = vsel %vm430, %v4098, %v4114
      %v4155 = vsel %vm430, %v4100, %v4120
      %4157 = vrot.lane.b32.xlu0 %v3868, 127
      %v4158 = vpop.permute.xlu0 %4157
      %4159 = vrot.lane.b32.xlu0 %v3869, 127
      %v4160 = vpop.permute.xlu0 %4159
      %4161 = vrot.lane.b32.xlu0 %v3870, 127
      %v4162 = vpop.permute.xlu0 %4161
      %4163 = vrot.lane.b32.xlu0 %v3871, 127
      %v4164 = vpop.permute.xlu0 %4163
      %4165 = vrot.lane.b32.xlu0 %v3872, 127
      %v4166 = vpop.permute.xlu0 %4165
      %4167 = vrot.lane.b32.xlu0 %v3873, 127
      %v4168 = vpop.permute.xlu0 %4167
      %4169 = vrot.lane.b32.xlu0 %v3874, 127
      %v4170 = vpop.permute.xlu0 %4169
      %4171 = vrot.lane.b32.xlu0 %v3875, 127
      %v4172 = vpop.permute.xlu0 %4171
      %4173 = vrot.lane.b32.xlu0 %v3876, 127
      %v4174 = vpop.permute.xlu0 %4173
      %4175 = vrot.lane.b32.xlu0 %v3877, 127
      %v4176 = vpop.permute.xlu0 %4175
      %4177 = vrot.lane.b32.xlu0 %v3878, 127
      %v4178 = vpop.permute.xlu0 %4177
      %4179 = vrot.lane.b32.xlu0 %v3879, 127
      %v4180 = vpop.permute.xlu0 %4179
      %v4181 = vsel %vm441, %v4158, %v4160
      %v4182 = vsel %vm441, %v4160, %v4162
      %v4183 = vsel %vm441, %v4164, %v4166
      %v4184 = vsel %vm441, %v4166, %v4168
      %v4185 = vsel %vm441, %v4170, %v4172
      %v4186 = vsel %vm441, %v4172, %v4174
      %v4187 = vsel %vm441, %v4176, %v4178
      %v4188 = vsel %vm441, %v4178, %v4180
      %4197 = vrot.lane.b32.xlu0 %v3868, 67
      %v4198 = vpop.permute.xlu0 %4197
      %4199 = vrot.lane.b32.xlu0 %v3871, 67
      %v4200 = vpop.permute.xlu0 %4199
      %4201 = vrot.lane.b32.xlu0 %v3874, 67
      %v4202 = vpop.permute.xlu0 %4201
      %4203 = vrot.lane.b32.xlu0 %v3877, 67
      %v4204 = vpop.permute.xlu0 %4203
      %v4207 = vsel %vm446, %v4162, %v4198
      %v4211 = vsel %vm446, %v4168, %v4200
      %v4215 = vsel %vm446, %v4174, %v4202
      %v4219 = vsel %vm446, %v4180, %v4204
      %s4221 = scalar_lea.vmem %s4, 448
      %v4222 = vld [vmem:[%s4221] sm:$0xff]
      %v4223 = vld [vmem:[%s4221 + $0x8] sm:$0xff]
      %v4224 = vld [vmem:[%s4221 + $0x10] sm:$0xff]
      %v4225 = vld [vmem:[%s4221 + $0x18] sm:$0xff]
      %v4226 = vld [vmem:[%s4221 + $0x20] sm:$0xff]
      %v4227 = vld [vmem:[%s4221 + $0x28] sm:$0xff]
      %v4228 = vld [vmem:[%s4221 + $0x30] sm:$0xff]
      %v4229 = vld [vmem:[%s4221 + $0x38] sm:$0xff]
      %v4238 = vunpack.c.l.b16 %v4222
      %v4239 = vunpack.c.h.b16 %v4222
      %v4240 = vunpack.c.l.b16 %v4223
      %v4241 = vunpack.c.h.b16 %v4223
      %v4242 = vunpack.c.l.b16 %v4224
      %v4243 = vunpack.c.h.b16 %v4224
      %v4244 = vunpack.c.l.b16 %v4225
      %v4245 = vunpack.c.h.b16 %v4225
      %v4246 = vunpack.c.l.b16 %v4226
      %v4247 = vunpack.c.h.b16 %v4226
      %v4248 = vunpack.c.l.b16 %v4227
      %v4249 = vunpack.c.h.b16 %v4227
      %v4250 = vunpack.c.l.b16 %v4228
      %v4251 = vunpack.c.h.b16 %v4228
      %v4252 = vunpack.c.l.b16 %v4229
      %v4253 = vunpack.c.h.b16 %v4229
      %v4254 = vpack.c.b16 %v4240, %v4238
      %v4255 = vpack.c.b16 %v4241, %v4239
      %v4256 = vpack.c.b16 %v4244, %v4242
      %v4257 = vpack.c.b16 %v4245, %v4243
      %v4258 = vpack.c.b16 %v4248, %v4246
      %v4259 = vpack.c.b16 %v4249, %v4247
      %v4260 = vpack.c.b16 %v4252, %v4250
      %v4261 = vpack.c.b16 %v4253, %v4251
      %v4267 = vsel %vm1685, %v4255, 0
      %v4270 = vsel %vm1685, %v4257, 0
      %v4273 = vsel %vm1685, %v4259, 0
      %v4276 = vsel %vm1685, %v4261, 0
      %4278 = vmatprep.subr.bf16.mxu0 %v4125
      %4279 = vmatpush1.bf16.msra.mxu0 %v4143
      %4280 = vmatprep.subr.bf16.mxu0 %v4127
      %4281 = vmatpush1.bf16.msra.mxu0 %v4147
      %4282 = vmatprep.subr.bf16.mxu0 %v4129
      %4283 = vmatpush1.bf16.msra.mxu0 %v4151
      %4284 = vmatprep.subr.bf16.mxu0 %v4131
      %4285 = vmatpush1.bf16.msra.mxu0 %v4155
      %4286 = vmatprep.subr.bf16.mxu0 %v3869
      %4287 = vmatpush1.bf16.msra.mxu0 %v3868
      %4288 = vmatprep.subr.bf16.mxu0 %v3872
      %4289 = vmatpush1.bf16.msra.mxu0 %v3871
      %4290 = vmatprep.subr.bf16.mxu0 %v3875
      %4291 = vmatpush1.bf16.msra.mxu0 %v3874
      %4292 = vmatprep.subr.bf16.mxu0 %v3878
      %4293 = vmatpush1.bf16.msra.mxu0 %v3877
      %4294 = vmatprep.subr.bf16.mxu0 %v4182
      %4295 = vmatpush1.bf16.msra.mxu0 %v4181
      %4296 = vmatprep.subr.bf16.mxu0 %v4184
      %4297 = vmatpush1.bf16.msra.mxu0 %v4183
      %4298 = vmatprep.subr.bf16.mxu0 %v4186
      %4299 = vmatpush1.bf16.msra.mxu0 %v4185
      %4300 = vmatprep.subr.bf16.mxu0 %v4188
      %4301 = vmatpush1.bf16.msra.mxu0 %v4187
      %4302 = vmatprep.subr.bf16.mxu0 0
      %4303 = vmatpush1.bf16.msra.mxu0 0
      %4304 = vmatprep.subr.bf16.mxu0 0
      %4305 = vmatpush1.bf16.msra.mxu0 0
      %4306 = vmatprep.subr.bf16.mxu0 0
      %4307 = vmatpush1.bf16.msra.mxu0 0
      %4308 = vmatprep.subr.bf16.mxu0 0
      %4309 = vmatpush1.bf16.msra.mxu0 0
      %4310 = vmatprep.mubr.bf16.mxu0 %v4267
      %4311 = vmatmul.mubr.bf16.gmra.mrb[0].mxu0 %v4254
      %v4312 = vpop.f32.mrb[0].mxu0
      %v4313 = vadd.f32 0.0, %v4312
      %v4314 = vpop.f32.mrb[0].mxu0
      %v4315 = vadd.f32 0.0, %v4314
      %v4316 = vpop.f32.mrb[0].mxu0
      %v4317 = vadd.f32 0.0, %v4316
      %v4318 = vpop.f32.mrb[0].mxu0
      %v4319 = vadd.f32 0.0, %v4318
      %4320 = vmatprep.mubr.bf16.mxu0 %v4270
      %4321 = vmatmul.mubr.bf16.gmra.mrb[0].mxu0 %v4256
      %v4322 = vpop.f32.mrb[0].mxu0
      %v4323 = vadd.f32 0.0, %v4322
      %v4324 = vpop.f32.mrb[0].mxu0
      %v4325 = vadd.f32 0.0, %v4324
      %v4326 = vpop.f32.mrb[0].mxu0
      %v4327 = vadd.f32 0.0, %v4326
      %v4328 = vpop.f32.mrb[0].mxu0
      %v4329 = vadd.f32 0.0, %v4328
      %4330 = vmatprep.mubr.bf16.mxu0 %v4273
      %4331 = vmatmul.mubr.bf16.gmra.mrb[0].mxu0 %v4258
      %v4332 = vpop.f32.mrb[0].mxu0
      %v4333 = vadd.f32 0.0, %v4332
      %v4334 = vpop.f32.mrb[0].mxu0
      %v4335 = vadd.f32 0.0, %v4334
      %v4336 = vpop.f32.mrb[0].mxu0
      %v4337 = vadd.f32 0.0, %v4336
      %v4338 = vpop.f32.mrb[0].mxu0
      %v4339 = vadd.f32 0.0, %v4338
      %4340 = vmatprep.mubr.bf16.mxu0 %v4276
      %4341 = vmatmul.mubr.bf16.gmra.mrb[0].mxu0 %v4260
      %v4342 = vpop.f32.mrb[0].mxu0
      %v4343 = vadd.f32 0.0, %v4342
      %v4344 = vpop.f32.mrb[0].mxu0
      %v4345 = vadd.f32 0.0, %v4344
      %v4346 = vpop.f32.mrb[0].mxu0
      %v4347 = vadd.f32 0.0, %v4346
      %v4348 = vpop.f32.mrb[0].mxu0
      %v4349 = vadd.f32 0.0, %v4348
      %4350 = vdwg.mxu0
      %4351 = vmatprep.subr.bf16.mxu0 0
      %4352 = vmatpush1.bf16.msra.mxu0 %v4126
      %4353 = vmatprep.subr.bf16.mxu0 0
      %4354 = vmatpush1.bf16.msra.mxu0 %v4128
      %4355 = vmatprep.subr.bf16.mxu0 0
      %4356 = vmatpush1.bf16.msra.mxu0 %v4130
      %4357 = vmatprep.subr.bf16.mxu0 0
      %4358 = vmatpush1.bf16.msra.mxu0 %v4132
      %4359 = vmatprep.subr.bf16.mxu0 0
      %4360 = vmatpush1.bf16.msra.mxu0 %v3870
      %4361 = vmatprep.subr.bf16.mxu0 0
      %4362 = vmatpush1.bf16.msra.mxu0 %v3873
      %4363 = vmatprep.subr.bf16.mxu0 0
      %4364 = vmatpush1.bf16.msra.mxu0 %v3876
      %4365 = vmatprep.subr.bf16.mxu0 0
      %4366 = vmatpush1.bf16.msra.mxu0 %v3879
      %4367 = vmatprep.subr.bf16.mxu0 0
      %4368 = vmatpush1.bf16.msra.mxu0 %v4207
      %4369 = vmatprep.subr.bf16.mxu0 0
      %4370 = vmatpush1.bf16.msra.mxu0 %v4211
      %4371 = vmatprep.subr.bf16.mxu0 0
      %4372 = vmatpush1.bf16.msra.mxu0 %v4215
      %4373 = vmatprep.subr.bf16.mxu0 0
      %4374 = vmatpush1.bf16.msra.mxu0 %v4219
      %4375 = vmatprep.subr.bf16.mxu0 0
      %4376 = vmatpush1.bf16.msra.mxu0 0
      %4377 = vmatprep.subr.bf16.mxu0 0
      %4378 = vmatpush1.bf16.msra.mxu0 0
      %4379 = vmatprep.subr.bf16.mxu0 0
      %4380 = vmatpush1.bf16.msra.mxu0 0
      %4381 = vmatprep.subr.bf16.mxu0 0
      %4382 = vmatpush1.bf16.msra.mxu0 0
      %4383 = vmatprep.mubr.bf16.mxu0 %v4267
      %4384 = vmatmul.mubr.bf16.gmra.mrb[0].mxu0 %v4254
      %v4385 = vpop.f32.mrb[0].mxu0
      %v4386 = vadd.f32 0.0, %v4385
      %v4387 = vpop.f32.mrb[0].mxu0
      %v4388 = vpop.f32.mrb[0].mxu0
      %v4389 = vadd.f32 0.0, %v4388
      %v4390 = vpop.f32.mrb[0].mxu0
      %4391 = vmatprep.mubr.bf16.mxu0 %v4270
      %4392 = vmatmul.mubr.bf16.gmra.mrb[0].mxu0 %v4256
      %v4393 = vpop.f32.mrb[0].mxu0
      %v4394 = vadd.f32 0.0, %v4393
      %v4395 = vpop.f32.mrb[0].mxu0
      %v4396 = vpop.f32.mrb[0].mxu0
      %v4397 = vadd.f32 0.0, %v4396
      %v4398 = vpop.f32.mrb[0].mxu0
      %4399 = vmatprep.mubr.bf16.mxu0 %v4273
      %4400 = vmatmul.mubr.bf16.gmra.mrb[0].mxu0 %v4258
      %v4401 = vpop.f32.mrb[0].mxu0
      %v4402 = vadd.f32 0.0, %v4401
      %v4403 = vpop.f32.mrb[0].mxu0
      %v4404 = vpop.f32.mrb[0].mxu0
      %v4405 = vadd.f32 0.0, %v4404
      %v4406 = vpop.f32.mrb[0].mxu0
      %4407 = vmatprep.mubr.bf16.mxu0 %v4276
      %4408 = vmatmul.mubr.bf16.gmra.mrb[0].mxu0 %v4260
      %v4409 = vpop.f32.mrb[0].mxu0
      %v4410 = vadd.f32 0.0, %v4409
      %v4411 = vpop.f32.mrb[0].mxu0
      %v4412 = vpop.f32.mrb[0].mxu0
      %v4413 = vadd.f32 0.0, %v4412
      %v4414 = vpop.f32.mrb[0].mxu0
      %4415 = vdwg.mxu0
      %v4424 = vunpack.c.l.b16 %v4085
      %v4425 = vunpack.c.h.b16 %v4085
      %v4426 = vunpack.c.l.b16 %v4086
      %v4427 = vunpack.c.h.b16 %v4086
      %v4428 = vunpack.c.l.b16 %v4087
      %v4429 = vunpack.c.h.b16 %v4087
      %v4430 = vunpack.c.l.b16 %v4088
      %v4431 = vunpack.c.h.b16 %v4088
      %v4432 = vunpack.c.l.b16 %v4089
      %v4433 = vunpack.c.h.b16 %v4089
      %v4434 = vunpack.c.l.b16 %v4090
      %v4435 = vunpack.c.h.b16 %v4090
      %v4436 = vunpack.c.l.b16 %v4091
      %v4437 = vunpack.c.h.b16 %v4091
      %v4438 = vunpack.c.l.b16 %v4092
      %v4439 = vunpack.c.h.b16 %v4092
      %v4440 = vpack.c.b16 %v4426, %v4424
      %v4441 = vpack.c.b16 %v4427, %v4425
      %v4442 = vpack.c.b16 %v4430, %v4428
      %v4443 = vpack.c.b16 %v4431, %v4429
      %v4444 = vpack.c.b16 %v4434, %v4432
      %v4445 = vpack.c.b16 %v4435, %v4433
      %v4446 = vpack.c.b16 %v4438, %v4436
      %v4447 = vpack.c.b16 %v4439, %v4437
      %v4453 = vsel %vm1685, %v4441, 0
      %v4456 = vsel %vm1685, %v4443, 0
      %v4459 = vsel %vm1685, %v4445, 0
      %v4462 = vsel %vm1685, %v4447, 0
      %4464 = vmatprep.subr.bf16.mxu0 %v3924
      %4465 = vmatpush1.bf16.msra.mxu0 %v3942
      %4466 = vmatprep.subr.bf16.mxu0 %v3926
      %4467 = vmatpush1.bf16.msra.mxu0 %v3946
      %4468 = vmatprep.subr.bf16.mxu0 %v3928
      %4469 = vmatpush1.bf16.msra.mxu0 %v3950
      %4470 = vmatprep.subr.bf16.mxu0 %v3930
      %4471 = vmatpush1.bf16.msra.mxu0 %v3954
      %4472 = vmatprep.subr.bf16.mxu0 %v3988
      %4473 = vmatpush1.bf16.msra.mxu0 %v4006
      %4474 = vmatprep.subr.bf16.mxu0 %v3990
      %4475 = vmatpush1.bf16.msra.mxu0 %v4010
      %4476 = vmatprep.subr.bf16.mxu0 %v3992
      %4477 = vmatpush1.bf16.msra.mxu0 %v4014
      %4478 = vmatprep.subr.bf16.mxu0 %v3994
      %4479 = vmatpush1.bf16.msra.mxu0 %v4018
      %4480 = vmatprep.subr.bf16.mxu0 %v4052
      %4481 = vmatpush1.bf16.msra.mxu0 %v4070
      %4482 = vmatprep.subr.bf16.mxu0 %v4054
      %4483 = vmatpush1.bf16.msra.mxu0 %v4074
      %4484 = vmatprep.subr.bf16.mxu0 %v4056
      %4485 = vmatpush1.bf16.msra.mxu0 %v4078
      %4486 = vmatprep.subr.bf16.mxu0 %v4058
      %4487 = vmatpush1.bf16.msra.mxu0 %v4082
      %4488 = vmatprep.subr.bf16.mxu0 0
      %4489 = vmatpush1.bf16.msra.mxu0 0
      %4490 = vmatprep.subr.bf16.mxu0 0
      %4491 = vmatpush1.bf16.msra.mxu0 0
      %4492 = vmatprep.subr.bf16.mxu0 0
      %4493 = vmatpush1.bf16.msra.mxu0 0
      %4494 = vmatprep.subr.bf16.mxu0 0
      %4495 = vmatpush1.bf16.msra.mxu0 0
      %4496 = vmatprep.mubr.bf16.mxu0 %v4453
      %4497 = vmatmul.mubr.bf16.gmra.mrb[0].mxu0 %v4440
      %v4498 = vpop.f32.mrb[0].mxu0
      %v4499 = vadd.f32 %v4313, %v4498
      %v4500 = vpop.f32.mrb[0].mxu0
      %v4501 = vadd.f32 %v4315, %v4500
      %v4502 = vpop.f32.mrb[0].mxu0
      %v4503 = vadd.f32 %v4317, %v4502
      %v4504 = vpop.f32.mrb[0].mxu0
      %v4505 = vadd.f32 %v4319, %v4504
      %4506 = vmatprep.mubr.bf16.mxu0 %v4456
      %4507 = vmatmul.mubr.bf16.gmra.mrb[0].mxu0 %v4442
      %v4508 = vpop.f32.mrb[0].mxu0
      %v4509 = vadd.f32 %v4323, %v4508
      %v4510 = vpop.f32.mrb[0].mxu0
      %v4511 = vadd.f32 %v4325, %v4510
      %v4512 = vpop.f32.mrb[0].mxu0
      %v4513 = vadd.f32 %v4327, %v4512
      %v4514 = vpop.f32.mrb[0].mxu0
      %v4515 = vadd.f32 %v4329, %v4514
      %4516 = vmatprep.mubr.bf16.mxu0 %v4459
      %4517 = vmatmul.mubr.bf16.gmra.mrb[0].mxu0 %v4444
      %v4518 = vpop.f32.mrb[0].mxu0
      %v4519 = vadd.f32 %v4333, %v4518
      %v4520 = vpop.f32.mrb[0].mxu0
      %v4521 = vadd.f32 %v4335, %v4520
      %v4522 = vpop.f32.mrb[0].mxu0
      %v4523 = vadd.f32 %v4337, %v4522
      %v4524 = vpop.f32.mrb[0].mxu0
      %v4525 = vadd.f32 %v4339, %v4524
      %4526 = vmatprep.mubr.bf16.mxu0 %v4462
      %4527 = vmatmul.mubr.bf16.gmra.mrb[0].mxu0 %v4446
      %v4528 = vpop.f32.mrb[0].mxu0
      %v4529 = vadd.f32 %v4343, %v4528
      %v4530 = vpop.f32.mrb[0].mxu0
      %v4531 = vadd.f32 %v4345, %v4530
      %v4532 = vpop.f32.mrb[0].mxu0
      %v4533 = vadd.f32 %v4347, %v4532
      %v4534 = vpop.f32.mrb[0].mxu0
      %v4535 = vadd.f32 %v4349, %v4534
      %4536 = vdwg.mxu0
      %4537 = vmatprep.subr.bf16.mxu0 0
      %4538 = vmatpush1.bf16.msra.mxu0 %v3925
      %4539 = vmatprep.subr.bf16.mxu0 0
      %4540 = vmatpush1.bf16.msra.mxu0 %v3927
      %4541 = vmatprep.subr.bf16.mxu0 0
      %4542 = vmatpush1.bf16.msra.mxu0 %v3929
      %4543 = vmatprep.subr.bf16.mxu0 0
      %4544 = vmatpush1.bf16.msra.mxu0 %v3931
      %4545 = vmatprep.subr.bf16.mxu0 0
      %4546 = vmatpush1.bf16.msra.mxu0 %v3989
      %4547 = vmatprep.subr.bf16.mxu0 0
      %4548 = vmatpush1.bf16.msra.mxu0 %v3991
      %4549 = vmatprep.subr.bf16.mxu0 0
      %4550 = vmatpush1.bf16.msra.mxu0 %v3993
      %4551 = vmatprep.subr.bf16.mxu0 0
      %4552 = vmatpush1.bf16.msra.mxu0 %v3995
      %4553 = vmatprep.subr.bf16.mxu0 0
      %4554 = vmatpush1.bf16.msra.mxu0 %v4053
      %4555 = vmatprep.subr.bf16.mxu0 0
      %4556 = vmatpush1.bf16.msra.mxu0 %v4055
      %4557 = vmatprep.subr.bf16.mxu0 0
      %4558 = vmatpush1.bf16.msra.mxu0 %v4057
      %4559 = vmatprep.subr.bf16.mxu0 0
      %4560 = vmatpush1.bf16.msra.mxu0 %v4059
      %4561 = vmatprep.subr.bf16.mxu0 0
      %4562 = vmatpush1.bf16.msra.mxu0 0
      %4563 = vmatprep.subr.bf16.mxu0 0
      %4564 = vmatpush1.bf16.msra.mxu0 0
      %4565 = vmatprep.subr.bf16.mxu0 0
      %4566 = vmatpush1.bf16.msra.mxu0 0
      %4567 = vmatprep.subr.bf16.mxu0 0
      %4568 = vmatpush1.bf16.msra.mxu0 0
      %4569 = vmatprep.mubr.bf16.mxu0 %v4453
      %4570 = vmatmul.mubr.bf16.gmra.mrb[0].mxu0 %v4440
      %v4571 = vpop.f32.mrb[0].mxu0
      %v4572 = vadd.f32 %v4386, %v4571
      %v4573 = vpop.f32.mrb[0].mxu0
      %v4574 = vpop.f32.mrb[0].mxu0
      %v4575 = vadd.f32 %v4389, %v4574
      %v4576 = vpop.f32.mrb[0].mxu0
      %4577 = vmatprep.mubr.bf16.mxu0 %v4456
      %4578 = vmatmul.mubr.bf16.gmra.mrb[0].mxu0 %v4442
      %v4579 = vpop.f32.mrb[0].mxu0
      %v4580 = vadd.f32 %v4394, %v4579
      %v4581 = vpop.f32.mrb[0].mxu0
      %v4582 = vpop.f32.mrb[0].mxu0
      %v4583 = vadd.f32 %v4397, %v4582
      %v4584 = vpop.f32.mrb[0].mxu0
      %4585 = vmatprep.mubr.bf16.mxu0 %v4459
      %4586 = vmatmul.mubr.bf16.gmra.mrb[0].mxu0 %v4444
      %v4587 = vpop.f32.mrb[0].mxu0
      %v4588 = vadd.f32 %v4402, %v4587
      %v4589 = vpop.f32.mrb[0].mxu0
      %v4590 = vpop.f32.mrb[0].mxu0
      %v4591 = vadd.f32 %v4405, %v4590
      %v4592 = vpop.f32.mrb[0].mxu0
      %4593 = vmatprep.mubr.bf16.mxu0 %v4462
      %4594 = vmatmul.mubr.bf16.gmra.mrb[0].mxu0 %v4446
      %v4595 = vpop.f32.mrb[0].mxu0
      %v4596 = vadd.f32 %v4410, %v4595
      %v4597 = vpop.f32.mrb[0].mxu0
      %v4598 = vpop.f32.mrb[0].mxu0
      %v4599 = vadd.f32 %v4413, %v4598
      %v4600 = vpop.f32.mrb[0].mxu0
      %4601 = vdwg.mxu0
      %4602 = vrot.lane.b32.xlu0 %v3868, 111
      %v4603 = vpop.permute.xlu0 %4602
      %4604 = vrot.lane.b32.xlu0 %v3869, 111
      %v4605 = vpop.permute.xlu0 %4604
      %4606 = vrot.lane.b32.xlu0 %v3870, 111
      %v4607 = vpop.permute.xlu0 %4606
      %4608 = vrot.lane.b32.xlu0 %v3871, 111
      %v4609 = vpop.permute.xlu0 %4608
      %4610 = vrot.lane.b32.xlu0 %v3872, 111
      %v4611 = vpop.permute.xlu0 %4610
      %4612 = vrot.lane.b32.xlu0 %v3873, 111
      %v4613 = vpop.permute.xlu0 %4612
      %4614 = vrot.lane.b32.xlu0 %v3874, 111
      %v4615 = vpop.permute.xlu0 %4614
      %4616 = vrot.lane.b32.xlu0 %v3875, 111
      %v4617 = vpop.permute.xlu0 %4616
      %4618 = vrot.lane.b32.xlu0 %v3876, 111
      %v4619 = vpop.permute.xlu0 %4618
      %4620 = vrot.lane.b32.xlu0 %v3877, 111
      %v4621 = vpop.permute.xlu0 %4620
      %4622 = vrot.lane.b32.xlu0 %v3878, 111
      %v4623 = vpop.permute.xlu0 %4622
      %4624 = vrot.lane.b32.xlu0 %v3879, 111
      %v4625 = vpop.permute.xlu0 %4624
      %v4626 = vsel %vm849, %v4603, %v4605
      %v4627 = vsel %vm849, %v4605, %v4607
      %v4628 = vsel %vm849, %v4609, %v4611
      %v4629 = vsel %vm849, %v4611, %v4613
      %v4630 = vsel %vm849, %v4615, %v4617
      %v4631 = vsel %vm849, %v4617, %v4619
      %v4632 = vsel %vm849, %v4621, %v4623
      %v4633 = vsel %vm849, %v4623, %v4625
      %4642 = vrot.lane.b32.xlu0 %v3868, 51
      %v4643 = vpop.permute.xlu0 %4642
      %4644 = vrot.lane.b32.xlu0 %v3871, 51
      %v4645 = vpop.permute.xlu0 %4644
      %4646 = vrot.lane.b32.xlu0 %v3874, 51
      %v4647 = vpop.permute.xlu0 %4646
      %4648 = vrot.lane.b32.xlu0 %v3877, 51
      %v4649 = vpop.permute.xlu0 %4648
      %v4652 = vsel %vm856, %v4607, %v4643
      %v4656 = vsel %vm856, %v4613, %v4645
      %v4660 = vsel %vm856, %v4619, %v4647
      %v4664 = vsel %vm856, %v4625, %v4649
      %4666 = vrot.lane.b32.xlu0 %v3868, 110
      %v4667 = vpop.permute.xlu0 %4666
      %4668 = vrot.lane.b32.xlu0 %v3869, 110
      %v4669 = vpop.permute.xlu0 %4668
      %4670 = vrot.lane.b32.xlu0 %v3870, 110
      %v4671 = vpop.permute.xlu0 %4670
      %4672 = vrot.lane.b32.xlu0 %v3871, 110
      %v4673 = vpop.permute.xlu0 %4672
      %4674 = vrot.lane.b32.xlu0 %v3872, 110
      %v4675 = vpop.permute.xlu0 %4674
      %4676 = vrot.lane.b32.xlu0 %v3873, 110
      %v4677 = vpop.permute.xlu0 %4676
      %4678 = vrot.lane.b32.xlu0 %v3874, 110
      %v4679 = vpop.permute.xlu0 %4678
      %4680 = vrot.lane.b32.xlu0 %v3875, 110
      %v4681 = vpop.permute.xlu0 %4680
      %4682 = vrot.lane.b32.xlu0 %v3876, 110
      %v4683 = vpop.permute.xlu0 %4682
      %4684 = vrot.lane.b32.xlu0 %v3877, 110
      %v4685 = vpop.permute.xlu0 %4684
      %4686 = vrot.lane.b32.xlu0 %v3878, 110
      %v4687 = vpop.permute.xlu0 %4686
      %4688 = vrot.lane.b32.xlu0 %v3879, 110
      %v4689 = vpop.permute.xlu0 %4688
      %v4690 = vsel %vm867, %v4667, %v4669
      %v4691 = vsel %vm867, %v4669, %v4671
      %v4692 = vsel %vm867, %v4673, %v4675
      %v4693 = vsel %vm867, %v4675, %v4677
      %v4694 = vsel %vm867, %v4679, %v4681
      %v4695 = vsel %vm867, %v4681, %v4683
      %v4696 = vsel %vm867, %v4685, %v4687
      %v4697 = vsel %vm867, %v4687, %v4689
      %4706 = vrot.lane.b32.xlu0 %v3868, 50
      %v4707 = vpop.permute.xlu0 %4706
      %4708 = vrot.lane.b32.xlu0 %v3871, 50
      %v4709 = vpop.permute.xlu0 %4708
      %4710 = vrot.lane.b32.xlu0 %v3874, 50
      %v4711 = vpop.permute.xlu0 %4710
      %4712 = vrot.lane.b32.xlu0 %v3877, 50
      %v4713 = vpop.permute.xlu0 %4712
      %v4716 = vsel %vm872, %v4671, %v4707
      %v4720 = vsel %vm872, %v4677, %v4709
      %v4724 = vsel %vm872, %v4683, %v4711
      %v4728 = vsel %vm872, %v4689, %v4713
      %4730 = vrot.lane.b32.xlu0 %v3868, 109
      %v4731 = vpop.permute.xlu0 %4730
      %4732 = vrot.lane.b32.xlu0 %v3869, 109
      %v4733 = vpop.permute.xlu0 %4732
      %4734 = vrot.lane.b32.xlu0 %v3870, 109
      %v4735 = vpop.permute.xlu0 %4734
      %4736 = vrot.lane.b32.xlu0 %v3871, 109
      %v4737 = vpop.permute.xlu0 %4736
      %4738 = vrot.lane.b32.xlu0 %v3872, 109
      %v4739 = vpop.permute.xlu0 %4738
      %4740 = vrot.lane.b32.xlu0 %v3873, 109
      %v4741 = vpop.permute.xlu0 %4740
      %4742 = vrot.lane.b32.xlu0 %v3874, 109
      %v4743 = vpop.permute.xlu0 %4742
      %4744 = vrot.lane.b32.xlu0 %v3875, 109
      %v4745 = vpop.permute.xlu0 %4744
      %4746 = vrot.lane.b32.xlu0 %v3876, 109
      %v4747 = vpop.permute.xlu0 %4746
      %4748 = vrot.lane.b32.xlu0 %v3877, 109
      %v4749 = vpop.permute.xlu0 %4748
      %4750 = vrot.lane.b32.xlu0 %v3878, 109
      %v4751 = vpop.permute.xlu0 %4750
      %4752 = vrot.lane.b32.xlu0 %v3879, 109
      %v4753 = vpop.permute.xlu0 %4752
      %v4754 = vsel %vm882, %v4731, %v4733
      %v4755 = vsel %vm882, %v4733, %v4735
      %v4756 = vsel %vm882, %v4737, %v4739
      %v4757 = vsel %vm882, %v4739, %v4741
      %v4758 = vsel %vm882, %v4743, %v4745
      %v4759 = vsel %vm882, %v4745, %v4747
      %v4760 = vsel %vm882, %v4749, %v4751
      %v4761 = vsel %vm882, %v4751, %v4753
      %4770 = vrot.lane.b32.xlu0 %v3868, 49
      %v4771 = vpop.permute.xlu0 %4770
      %4772 = vrot.lane.b32.xlu0 %v3871, 49
      %v4773 = vpop.permute.xlu0 %4772
      %4774 = vrot.lane.b32.xlu0 %v3874, 49
      %v4775 = vpop.permute.xlu0 %4774
      %4776 = vrot.lane.b32.xlu0 %v3877, 49
      %v4777 = vpop.permute.xlu0 %4776
      %v4780 = vsel %vm887, %v4735, %v4771
      %v4784 = vsel %vm887, %v4741, %v4773
      %v4788 = vsel %vm887, %v4747, %v4775
      %v4792 = vsel %vm887, %v4753, %v4777
      %s4794 = scalar_lea.vmem %s4, 512
      %v4795 = vld [vmem:[%s4794] sm:$0xff]
      %v4796 = vld [vmem:[%s4794 + $0x8] sm:$0xff]
      %v4797 = vld [vmem:[%s4794 + $0x10] sm:$0xff]
      %v4798 = vld [vmem:[%s4794 + $0x18] sm:$0xff]
      %v4799 = vld [vmem:[%s4794 + $0x20] sm:$0xff]
      %v4800 = vld [vmem:[%s4794 + $0x28] sm:$0xff]
      %v4801 = vld [vmem:[%s4794 + $0x30] sm:$0xff]
      %v4802 = vld [vmem:[%s4794 + $0x38] sm:$0xff]
      %v4811 = vunpack.c.l.b16 %v4795
      %v4812 = vunpack.c.h.b16 %v4795
      %v4813 = vunpack.c.l.b16 %v4796
      %v4814 = vunpack.c.h.b16 %v4796
      %v4815 = vunpack.c.l.b16 %v4797
      %v4816 = vunpack.c.h.b16 %v4797
      %v4817 = vunpack.c.l.b16 %v4798
      %v4818 = vunpack.c.h.b16 %v4798
      %v4819 = vunpack.c.l.b16 %v4799
      %v4820 = vunpack.c.h.b16 %v4799
      %v4821 = vunpack.c.l.b16 %v4800
      %v4822 = vunpack.c.h.b16 %v4800
      %v4823 = vunpack.c.l.b16 %v4801
      %v4824 = vunpack.c.h.b16 %v4801
      %v4825 = vunpack.c.l.b16 %v4802
      %v4826 = vunpack.c.h.b16 %v4802
      %v4827 = vpack.c.b16 %v4813, %v4811
      %v4828 = vpack.c.b16 %v4814, %v4812
      %v4829 = vpack.c.b16 %v4817, %v4815
      %v4830 = vpack.c.b16 %v4818, %v4816
      %v4831 = vpack.c.b16 %v4821, %v4819
      %v4832 = vpack.c.b16 %v4822, %v4820
      %v4833 = vpack.c.b16 %v4825, %v4823
      %v4834 = vpack.c.b16 %v4826, %v4824
      %v4840 = vsel %vm1685, %v4828, 0
      %v4843 = vsel %vm1685, %v4830, 0
      %v4846 = vsel %vm1685, %v4832, 0
      %v4849 = vsel %vm1685, %v4834, 0
      %4851 = vmatprep.subr.bf16.mxu0 %v4627
      %4852 = vmatpush1.bf16.msra.mxu0 %v4626
      %4853 = vmatprep.subr.bf16.mxu0 %v4629
      %4854 = vmatpush1.bf16.msra.mxu0 %v4628
      %4855 = vmatprep.subr.bf16.mxu0 %v4631
      %4856 = vmatpush1.bf16.msra.mxu0 %v4630
      %4857 = vmatprep.subr.bf16.mxu0 %v4633
      %4858 = vmatpush1.bf16.msra.mxu0 %v4632
      %4859 = vmatprep.subr.bf16.mxu0 %v4691
      %4860 = vmatpush1.bf16.msra.mxu0 %v4690
      %4861 = vmatprep.subr.bf16.mxu0 %v4693
      %4862 = vmatpush1.bf16.msra.mxu0 %v4692
      %4863 = vmatprep.subr.bf16.mxu0 %v4695
      %4864 = vmatpush1.bf16.msra.mxu0 %v4694
      %4865 = vmatprep.subr.bf16.mxu0 %v4697
      %4866 = vmatpush1.bf16.msra.mxu0 %v4696
      %4867 = vmatprep.subr.bf16.mxu0 %v4755
      %4868 = vmatpush1.bf16.msra.mxu0 %v4754
      %4869 = vmatprep.subr.bf16.mxu0 %v4757
      %4870 = vmatpush1.bf16.msra.mxu0 %v4756
      %4871 = vmatprep.subr.bf16.mxu0 %v4759
      %4872 = vmatpush1.bf16.msra.mxu0 %v4758
      %4873 = vmatprep.subr.bf16.mxu0 %v4761
      %4874 = vmatpush1.bf16.msra.mxu0 %v4760
      %4875 = vmatprep.subr.bf16.mxu0 0
      %4876 = vmatpush1.bf16.msra.mxu0 0
      %4877 = vmatprep.subr.bf16.mxu0 0
      %4878 = vmatpush1.bf16.msra.mxu0 0
      %4879 = vmatprep.subr.bf16.mxu0 0
      %4880 = vmatpush1.bf16.msra.mxu0 0
      %4881 = vmatprep.subr.bf16.mxu0 0
      %4882 = vmatpush1.bf16.msra.mxu0 0
      %4883 = vmatprep.mubr.bf16.mxu0 %v4840
      %4884 = vmatmul.mubr.bf16.gmra.mrb[0].mxu0 %v4827
      %v4885 = vpop.f32.mrb[0].mxu0
      %v4886 = vadd.f32 0.0, %v4885
      %v4887 = vpop.f32.mrb[0].mxu0
      %v4888 = vadd.f32 0.0, %v4887
      %v4889 = vpop.f32.mrb[0].mxu0
      %v4890 = vadd.f32 0.0, %v4889
      %v4891 = vpop.f32.mrb[0].mxu0
      %v4892 = vadd.f32 0.0, %v4891
      %4893 = vmatprep.mubr.bf16.mxu0 %v4843
      %4894 = vmatmul.mubr.bf16.gmra.mrb[0].mxu0 %v4829
      %v4895 = vpop.f32.mrb[0].mxu0
      %v4896 = vadd.f32 0.0, %v4895
      %v4897 = vpop.f32.mrb[0].mxu0
      %v4898 = vadd.f32 0.0, %v4897
      %v4899 = vpop.f32.mrb[0].mxu0
      %v4900 = vadd.f32 0.0, %v4899
      %v4901 = vpop.f32.mrb[0].mxu0
      %v4902 = vadd.f32 0.0, %v4901
      %4903 = vmatprep.mubr.bf16.mxu0 %v4846
      %4904 = vmatmul.mubr.bf16.gmra.mrb[0].mxu0 %v4831
      %v4905 = vpop.f32.mrb[0].mxu0
      %v4906 = vadd.f32 0.0, %v4905
      %v4907 = vpop.f32.mrb[0].mxu0
      %v4908 = vadd.f32 0.0, %v4907
      %v4909 = vpop.f32.mrb[0].mxu0
      %v4910 = vadd.f32 0.0, %v4909
      %v4911 = vpop.f32.mrb[0].mxu0
      %v4912 = vadd.f32 0.0, %v4911
      %4913 = vmatprep.mubr.bf16.mxu0 %v4849
      %4914 = vmatmul.mubr.bf16.gmra.mrb[0].mxu0 %v4833
      %v4915 = vpop.f32.mrb[0].mxu0
      %v4916 = vadd.f32 0.0, %v4915
      %v4917 = vpop.f32.mrb[0].mxu0
      %v4918 = vadd.f32 0.0, %v4917
      %v4919 = vpop.f32.mrb[0].mxu0
      %v4920 = vadd.f32 0.0, %v4919
      %v4921 = vpop.f32.mrb[0].mxu0
      %v4922 = vadd.f32 0.0, %v4921
      %4923 = vdwg.mxu0
      %4924 = vmatprep.subr.bf16.mxu0 0
      %4925 = vmatpush1.bf16.msra.mxu0 %v4652
      %4926 = vmatprep.subr.bf16.mxu0 0
      %4927 = vmatpush1.bf16.msra.mxu0 %v4656
      %4928 = vmatprep.subr.bf16.mxu0 0
      %4929 = vmatpush1.bf16.msra.mxu0 %v4660
      %4930 = vmatprep.subr.bf16.mxu0 0
      %4931 = vmatpush1.bf16.msra.mxu0 %v4664
      %4932 = vmatprep.subr.bf16.mxu0 0
      %4933 = vmatpush1.bf16.msra.mxu0 %v4716
      %4934 = vmatprep.subr.bf16.mxu0 0
      %4935 = vmatpush1.bf16.msra.mxu0 %v4720
      %4936 = vmatprep.subr.bf16.mxu0 0
      %4937 = vmatpush1.bf16.msra.mxu0 %v4724
      %4938 = vmatprep.subr.bf16.mxu0 0
      %4939 = vmatpush1.bf16.msra.mxu0 %v4728
      %4940 = vmatprep.subr.bf16.mxu0 0
      %4941 = vmatpush1.bf16.msra.mxu0 %v4780
      %4942 = vmatprep.subr.bf16.mxu0 0
      %4943 = vmatpush1.bf16.msra.mxu0 %v4784
      %4944 = vmatprep.subr.bf16.mxu0 0
      %4945 = vmatpush1.bf16.msra.mxu0 %v4788
      %4946 = vmatprep.subr.bf16.mxu0 0
      %4947 = vmatpush1.bf16.msra.mxu0 %v4792
      %4948 = vmatprep.subr.bf16.mxu0 0
      %4949 = vmatpush1.bf16.msra.mxu0 0
      %4950 = vmatprep.subr.bf16.mxu0 0
      %4951 = vmatpush1.bf16.msra.mxu0 0
      %4952 = vmatprep.subr.bf16.mxu0 0
      %4953 = vmatpush1.bf16.msra.mxu0 0
      %4954 = vmatprep.subr.bf16.mxu0 0
      %4955 = vmatpush1.bf16.msra.mxu0 0
      %4956 = vmatprep.mubr.bf16.mxu0 %v4840
      %4957 = vmatmul.mubr.bf16.gmra.mrb[0].mxu0 %v4827
      %v4958 = vpop.f32.mrb[0].mxu0
      %v4959 = vadd.f32 0.0, %v4958
      %v4960 = vpop.f32.mrb[0].mxu0
      %v4961 = vpop.f32.mrb[0].mxu0
      %v4962 = vadd.f32 0.0, %v4961
      %v4963 = vpop.f32.mrb[0].mxu0
      %4964 = vmatprep.mubr.bf16.mxu0 %v4843
      %4965 = vmatmul.mubr.bf16.gmra.mrb[0].mxu0 %v4829
      %v4966 = vpop.f32.mrb[0].mxu0
      %v4967 = vadd.f32 0.0, %v4966
      %v4968 = vpop.f32.mrb[0].mxu0
      %v4969 = vpop.f32.mrb[0].mxu0
      %v4970 = vadd.f32 0.0, %v4969
      %v4971 = vpop.f32.mrb[0].mxu0
      %4972 = vmatprep.mubr.bf16.mxu0 %v4846
      %4973 = vmatmul.mubr.bf16.gmra.mrb[0].mxu0 %v4831
      %v4974 = vpop.f32.mrb[0].mxu0
      %v4975 = vadd.f32 0.0, %v4974
      %v4976 = vpop.f32.mrb[0].mxu0
      %v4977 = vpop.f32.mrb[0].mxu0
      %v4978 = vadd.f32 0.0, %v4977
      %v4979 = vpop.f32.mrb[0].mxu0
      %4980 = vmatprep.mubr.bf16.mxu0 %v4849
      %4981 = vmatmul.mubr.bf16.gmra.mrb[0].mxu0 %v4833
      %v4982 = vpop.f32.mrb[0].mxu0
      %v4983 = vadd.f32 0.0, %v4982
      %v4984 = vpop.f32.mrb[0].mxu0
      %v4985 = vpop.f32.mrb[0].mxu0
      %v4986 = vadd.f32 0.0, %v4985
      %v4987 = vpop.f32.mrb[0].mxu0
      %4988 = vdwg.mxu0
      %v4989 = vadd.f32 %v4499, %v4886
      %v4990 = vadd.f32 %v4501, %v4888
      %v4991 = vadd.f32 %v4572, %v4959
      %v4992 = vadd.f32 %v4503, %v4890
      %v4993 = vadd.f32 %v4505, %v4892
      %v4994 = vadd.f32 %v4575, %v4962
      %v4995 = vadd.f32 %v4509, %v4896
      %v4996 = vadd.f32 %v4511, %v4898
      %v4997 = vadd.f32 %v4580, %v4967
      %v4998 = vadd.f32 %v4513, %v4900
      %v4999 = vadd.f32 %v4515, %v4902
      %v5000 = vadd.f32 %v4583, %v4970
      %v5001 = vadd.f32 %v4519, %v4906
      %v5002 = vadd.f32 %v4521, %v4908
      %v5003 = vadd.f32 %v4588, %v4975
      %v5004 = vadd.f32 %v4523, %v4910
      %v5005 = vadd.f32 %v4525, %v4912
      %v5006 = vadd.f32 %v4591, %v4978
      %v5007 = vadd.f32 %v4529, %v4916
      %v5008 = vadd.f32 %v4531, %v4918
      %v5009 = vadd.f32 %v4596, %v4983
      %v5010 = vadd.f32 %v4533, %v4920
      %v5011 = vadd.f32 %v4535, %v4922
      %v5012 = vadd.f32 %v4599, %v4986
      %s5013 = scalar_lea.vmem %s5, 128
      %v5014 = vld [vmem:[%s5013] sm:$0xff]
      %v5015 = vld [vmem:[%s5013 + $0x8] sm:$0xff]
      %v5016 = vld [vmem:[%s5013 + $0x10] sm:$0xff]
      %v5017 = vld [vmem:[%s5013 + $0x18] sm:$0xff]
      %v5018 = vld [vmem:[%s5013 + $0x20] sm:$0xff]
      %v5019 = vld [vmem:[%s5013 + $0x28] sm:$0xff]
      %v5020 = vld [vmem:[%s5013 + $0x30] sm:$0xff]
      %v5021 = vld [vmem:[%s5013 + $0x38] sm:$0xff]
      %5023 = vset.pattern.permute.xlu0 0
      %5024 = vperm.xlu0 %5023, %v5014
      %v5025 = vpop.permute.xlu0 %5024
      %5028 = vset.pattern.permute.xlu0 0
      %5029 = vperm.xlu0 %5028, %v5015
      %v5030 = vpop.permute.xlu0 %5029
      %5033 = vset.pattern.permute.xlu0 0
      %5034 = vperm.xlu0 %5033, %v5016
      %v5035 = vpop.permute.xlu0 %5034
      %5038 = vset.pattern.permute.xlu0 0
      %5039 = vperm.xlu0 %5038, %v5017
      %v5040 = vpop.permute.xlu0 %5039
      %5043 = vset.pattern.permute.xlu0 0
      %5044 = vperm.xlu0 %5043, %v5018
      %v5045 = vpop.permute.xlu0 %5044
      %5048 = vset.pattern.permute.xlu0 0
      %5049 = vperm.xlu0 %5048, %v5019
      %v5050 = vpop.permute.xlu0 %5049
      %5053 = vset.pattern.permute.xlu0 0
      %5054 = vperm.xlu0 %5053, %v5020
      %v5055 = vpop.permute.xlu0 %5054
      %5058 = vset.pattern.permute.xlu0 0
      %5059 = vperm.xlu0 %5058, %v5021
      %v5060 = vpop.permute.xlu0 %5059
      %v5062 = vadd.f32 %v4989, %v5025
      %v5063 = vadd.f32 %v4990, %v5025
      %v5064 = vadd.f32 %v4991, %v5025
      %v5065 = vadd.f32 %v4992, %v5030
      %v5066 = vadd.f32 %v4993, %v5030
      %v5067 = vadd.f32 %v4994, %v5030
      %v5068 = vadd.f32 %v4995, %v5035
      %v5069 = vadd.f32 %v4996, %v5035
      %v5070 = vadd.f32 %v4997, %v5035
      %v5071 = vadd.f32 %v4998, %v5040
      %v5072 = vadd.f32 %v4999, %v5040
      %v5073 = vadd.f32 %v5000, %v5040
      %v5074 = vadd.f32 %v5001, %v5045
      %v5075 = vadd.f32 %v5002, %v5045
      %v5076 = vadd.f32 %v5003, %v5045
      %v5077 = vadd.f32 %v5004, %v5050
      %v5078 = vadd.f32 %v5005, %v5050
      %v5079 = vadd.f32 %v5006, %v5050
      %v5080 = vadd.f32 %v5007, %v5055
      %v5081 = vadd.f32 %v5008, %v5055
      %v5082 = vadd.f32 %v5009, %v5055
      %v5083 = vadd.f32 %v5010, %v5060
      %v5084 = vadd.f32 %v5011, %v5060
      %v5085 = vadd.f32 %v5012, %v5060
      %v5086 = vmax.f32 %v5062, 0.0
      %v5087 = vmax.f32 %v5063, 0.0
      %v5088 = vmax.f32 %v5064, 0.0
      %v5089 = vmax.f32 %v5065, 0.0
      %v5090 = vmax.f32 %v5066, 0.0
      %v5091 = vmax.f32 %v5067, 0.0
      %v5092 = vmax.f32 %v5068, 0.0
      %v5093 = vmax.f32 %v5069, 0.0
      %v5094 = vmax.f32 %v5070, 0.0
      %v5095 = vmax.f32 %v5071, 0.0
      %v5096 = vmax.f32 %v5072, 0.0
      %v5097 = vmax.f32 %v5073, 0.0
      %v5098 = vmax.f32 %v5074, 0.0
      %v5099 = vmax.f32 %v5075, 0.0
      %v5100 = vmax.f32 %v5076, 0.0
      %v5101 = vmax.f32 %v5077, 0.0
      %v5102 = vmax.f32 %v5078, 0.0
      %v5103 = vmax.f32 %v5079, 0.0
      %v5104 = vmax.f32 %v5080, 0.0
      %v5105 = vmax.f32 %v5081, 0.0
      %v5106 = vmax.f32 %v5082, 0.0
      %v5107 = vmax.f32 %v5083, 0.0
      %v5108 = vmax.f32 %v5084, 0.0
      %v5109 = vmax.f32 %v5085, 0.0
      %v5110 = vmul.f32 %v5086, %v1227
      %v5111 = vmul.f32 %v5087, %v1231
      %v5112 = vmul.f32 %v5088, %v1235
      %v5113 = vmul.f32 %v5089, %v1227
      %v5114 = vmul.f32 %v5090, %v1231
      %v5115 = vmul.f32 %v5091, %v1235
      %v5116 = vmul.f32 %v5092, %v1227
      %v5117 = vmul.f32 %v5093, %v1231
      %v5118 = vmul.f32 %v5094, %v1235
      %v5119 = vmul.f32 %v5095, %v1227
      %v5120 = vmul.f32 %v5096, %v1231
      %v5121 = vmul.f32 %v5097, %v1235
      %v5122 = vmul.f32 %v5098, %v1227
      %v5123 = vmul.f32 %v5099, %v1231
      %v5124 = vmul.f32 %v5100, %v1235
      %v5125 = vmul.f32 %v5101, %v1227
      %v5126 = vmul.f32 %v5102, %v1231
      %v5127 = vmul.f32 %v5103, %v1235
      %v5128 = vmul.f32 %v5104, %v1227
      %v5129 = vmul.f32 %v5105, %v1231
      %v5130 = vmul.f32 %v5106, %v1235
      %v5131 = vmul.f32 %v5107, %v1227
      %v5132 = vmul.f32 %v5108, %v1231
      %v5133 = vmul.f32 %v5109, %v1235
      %v5134 = vpack.c.bf16 %v5113, %v5110
      %v5135 = vpack.c.bf16 %v5114, %v5111
      %v5136 = vpack.c.bf16 %v5115, %v5112
      %v5137 = vpack.c.bf16 %v5119, %v5116
      %v5138 = vpack.c.bf16 %v5120, %v5117
      %v5139 = vpack.c.bf16 %v5121, %v5118
      %v5140 = vpack.c.bf16 %v5125, %v5122
      %v5141 = vpack.c.bf16 %v5126, %v5123
      %v5142 = vpack.c.bf16 %v5127, %v5124
      %v5143 = vpack.c.bf16 %v5131, %v5128
      %v5144 = vpack.c.bf16 %v5132, %v5129
      %v5145 = vpack.c.bf16 %v5133, %v5130
      %5146 = vst [vmem:[%s2565] sm:$0xff] %v5134
      %5147 = vst [vmem:[%s2565 + $0x8] sm:$0xff] %v5135
      %5148 = vst.msk [vmem:[%s2565 + $0x10] sm:$0xff] %vm1277, %v5136
      %5149 = vst [vmem:[%s2565 + $0x18] sm:$0xff] %v5137
      %5150 = vst [vmem:[%s2565 + $0x20] sm:$0xff] %v5138
      %5151 = vst.msk [vmem:[%s2565 + $0x28] sm:$0xff] %vm1277, %v5139
      %5152 = vst [vmem:[%s2565 + $0x30] sm:$0xff] %v5140
      %5153 = vst [vmem:[%s2565 + $0x38] sm:$0xff] %v5141
      %5154 = vst.msk [vmem:[%s2565 + $0x40] sm:$0xff] %vm1277, %v5142
      %5155 = vst [vmem:[%s2565 + $0x48] sm:$0xff] %v5143
      %5156 = vst [vmem:[%s2565 + $0x50] sm:$0xff] %v5144
      %5157 = vst.msk [vmem:[%s2565 + $0x58] sm:$0xff] %vm1277, %v5145
      %v5158 = vld [vmem:[%s2565] sm:$0xff]
      %v5159 = vld [vmem:[%s2565 + $0x8] sm:$0xff]
      %v5160 = vld [vmem:[%s2565 + $0x10] sm:$0xff]
      %v5161 = vld [vmem:[%s2565 + $0x18] sm:$0xff]
      %v5162 = vld [vmem:[%s2565 + $0x20] sm:$0xff]
      %v5163 = vld [vmem:[%s2565 + $0x28] sm:$0xff]
      %v5164 = vld [vmem:[%s2565 + $0x30] sm:$0xff]
      %v5165 = vld [vmem:[%s2565 + $0x38] sm:$0xff]
      %v5166 = vld [vmem:[%s2565 + $0x40] sm:$0xff]
      %v5167 = vld [vmem:[%s2565 + $0x48] sm:$0xff]
      %v5168 = vld [vmem:[%s2565 + $0x50] sm:$0xff]
      %v5169 = vld [vmem:[%s2565 + $0x58] sm:$0xff]
      %5174 = vrot.lane.b32.xlu0 %v5160, 79
      %v5175 = vpop.permute.xlu0 %5174
      %5176 = vrot.lane.b32.xlu0 %v5163, 79
      %v5177 = vpop.permute.xlu0 %5176
      %5178 = vrot.lane.b32.xlu0 %v5166, 79
      %v5179 = vpop.permute.xlu0 %5178
      %5180 = vrot.lane.b32.xlu0 %v5169, 79
      %v5181 = vpop.permute.xlu0 %5180
      %5190 = vrot.lane.b32.xlu0 %v5158, 19
      %v5191 = vpop.permute.xlu0 %5190
      %5192 = vrot.lane.b32.xlu0 %v5159, 19
      %v5193 = vpop.permute.xlu0 %5192
      %5194 = vrot.lane.b32.xlu0 %v5160, 19
      %v5195 = vpop.permute.xlu0 %5194
      %5196 = vrot.lane.b32.xlu0 %v5161, 19
      %v5197 = vpop.permute.xlu0 %5196
      %5198 = vrot.lane.b32.xlu0 %v5162, 19
      %v5199 = vpop.permute.xlu0 %5198
      %5200 = vrot.lane.b32.xlu0 %v5163, 19
      %v5201 = vpop.permute.xlu0 %5200
      %5202 = vrot.lane.b32.xlu0 %v5164, 19
      %v5203 = vpop.permute.xlu0 %5202
      %5204 = vrot.lane.b32.xlu0 %v5165, 19
      %v5205 = vpop.permute.xlu0 %5204
      %5206 = vrot.lane.b32.xlu0 %v5166, 19
      %v5207 = vpop.permute.xlu0 %5206
      %5208 = vrot.lane.b32.xlu0 %v5167, 19
      %v5209 = vpop.permute.xlu0 %5208
      %5210 = vrot.lane.b32.xlu0 %v5168, 19
      %v5211 = vpop.permute.xlu0 %5210
      %5212 = vrot.lane.b32.xlu0 %v5169, 19
      %v5213 = vpop.permute.xlu0 %5212
      %v5214 = vsel %vm338, %v5191, %v5193
      %v5215 = vsel %vm338, %v5193, %v5195
      %v5216 = vsel %vm338, %v5197, %v5199
      %v5217 = vsel %vm338, %v5199, %v5201
      %v5218 = vsel %vm338, %v5203, %v5205
      %v5219 = vsel %vm338, %v5205, %v5207
      %v5220 = vsel %vm338, %v5209, %v5211
      %v5221 = vsel %vm338, %v5211, %v5213
      %v5232 = vsel %vm343, %v5175, %v5191
      %v5236 = vsel %vm343, %v5177, %v5197
      %v5240 = vsel %vm343, %v5179, %v5203
      %v5244 = vsel %vm343, %v5181, %v5209
      %5246 = vrot.lane.b32.xlu0 %v5160, 78
      %v5247 = vpop.permute.xlu0 %5246
      %5248 = vrot.lane.b32.xlu0 %v5163, 78
      %v5249 = vpop.permute.xlu0 %5248
      %5250 = vrot.lane.b32.xlu0 %v5166, 78
      %v5251 = vpop.permute.xlu0 %5250
      %5252 = vrot.lane.b32.xlu0 %v5169, 78
      %v5253 = vpop.permute.xlu0 %5252
      %5254 = vrot.lane.b32.xlu0 %v5158, 18
      %v5255 = vpop.permute.xlu0 %5254
      %5256 = vrot.lane.b32.xlu0 %v5159, 18
      %v5257 = vpop.permute.xlu0 %5256
      %5258 = vrot.lane.b32.xlu0 %v5160, 18
      %v5259 = vpop.permute.xlu0 %5258
      %5260 = vrot.lane.b32.xlu0 %v5161, 18
      %v5261 = vpop.permute.xlu0 %5260
      %5262 = vrot.lane.b32.xlu0 %v5162, 18
      %v5263 = vpop.permute.xlu0 %5262
      %5264 = vrot.lane.b32.xlu0 %v5163, 18
      %v5265 = vpop.permute.xlu0 %5264
      %5266 = vrot.lane.b32.xlu0 %v5164, 18
      %v5267 = vpop.permute.xlu0 %5266
      %5268 = vrot.lane.b32.xlu0 %v5165, 18
      %v5269 = vpop.permute.xlu0 %5268
      %5270 = vrot.lane.b32.xlu0 %v5166, 18
      %v5271 = vpop.permute.xlu0 %5270
      %5272 = vrot.lane.b32.xlu0 %v5167, 18
      %v5273 = vpop.permute.xlu0 %5272
      %5274 = vrot.lane.b32.xlu0 %v5168, 18
      %v5275 = vpop.permute.xlu0 %5274
      %5276 = vrot.lane.b32.xlu0 %v5169, 18
      %v5277 = vpop.permute.xlu0 %5276
      %v5278 = vsel %vm356, %v5255, %v5257
      %v5279 = vsel %vm356, %v5257, %v5259
      %v5280 = vsel %vm356, %v5261, %v5263
      %v5281 = vsel %vm356, %v5263, %v5265
      %v5282 = vsel %vm356, %v5267, %v5269
      %v5283 = vsel %vm356, %v5269, %v5271
      %v5284 = vsel %vm356, %v5273, %v5275
      %v5285 = vsel %vm356, %v5275, %v5277
      %v5296 = vsel %vm359, %v5247, %v5255
      %v5300 = vsel %vm359, %v5249, %v5261
      %v5304 = vsel %vm359, %v5251, %v5267
      %v5308 = vsel %vm359, %v5253, %v5273
      %5310 = vrot.lane.b32.xlu0 %v5160, 77
      %v5311 = vpop.permute.xlu0 %5310
      %5312 = vrot.lane.b32.xlu0 %v5163, 77
      %v5313 = vpop.permute.xlu0 %5312
      %5314 = vrot.lane.b32.xlu0 %v5166, 77
      %v5315 = vpop.permute.xlu0 %5314
      %5316 = vrot.lane.b32.xlu0 %v5169, 77
      %v5317 = vpop.permute.xlu0 %5316
      %5318 = vrot.lane.b32.xlu0 %v5158, 17
      %v5319 = vpop.permute.xlu0 %5318
      %5320 = vrot.lane.b32.xlu0 %v5159, 17
      %v5321 = vpop.permute.xlu0 %5320
      %5322 = vrot.lane.b32.xlu0 %v5160, 17
      %v5323 = vpop.permute.xlu0 %5322
      %5324 = vrot.lane.b32.xlu0 %v5161, 17
      %v5325 = vpop.permute.xlu0 %5324
      %5326 = vrot.lane.b32.xlu0 %v5162, 17
      %v5327 = vpop.permute.xlu0 %5326
      %5328 = vrot.lane.b32.xlu0 %v5163, 17
      %v5329 = vpop.permute.xlu0 %5328
      %5330 = vrot.lane.b32.xlu0 %v5164, 17
      %v5331 = vpop.permute.xlu0 %5330
      %5332 = vrot.lane.b32.xlu0 %v5165, 17
      %v5333 = vpop.permute.xlu0 %5332
      %5334 = vrot.lane.b32.xlu0 %v5166, 17
      %v5335 = vpop.permute.xlu0 %5334
      %5336 = vrot.lane.b32.xlu0 %v5167, 17
      %v5337 = vpop.permute.xlu0 %5336
      %5338 = vrot.lane.b32.xlu0 %v5168, 17
      %v5339 = vpop.permute.xlu0 %5338
      %5340 = vrot.lane.b32.xlu0 %v5169, 17
      %v5341 = vpop.permute.xlu0 %5340
      %v5342 = vsel %vm371, %v5319, %v5321
      %v5343 = vsel %vm371, %v5321, %v5323
      %v5344 = vsel %vm371, %v5325, %v5327
      %v5345 = vsel %vm371, %v5327, %v5329
      %v5346 = vsel %vm371, %v5331, %v5333
      %v5347 = vsel %vm371, %v5333, %v5335
      %v5348 = vsel %vm371, %v5337, %v5339
      %v5349 = vsel %vm371, %v5339, %v5341
      %v5360 = vsel %vm374, %v5311, %v5319
      %v5364 = vsel %vm374, %v5313, %v5325
      %v5368 = vsel %vm374, %v5315, %v5331
      %v5372 = vsel %vm374, %v5317, %v5337
      %v5374 = vld [vmem:[%s6] sm:$0x3]
      %5375 = vrot.lane.b32.xlu0 %v5160, 61
      %v5376 = vpop.permute.xlu0 %5375
      %5377 = vrot.lane.b32.xlu0 %v5163, 61
      %v5378 = vpop.permute.xlu0 %5377
      %5379 = vrot.lane.b32.xlu0 %v5166, 61
      %v5380 = vpop.permute.xlu0 %5379
      %5381 = vrot.lane.b32.xlu0 %v5169, 61
      %v5382 = vpop.permute.xlu0 %5381
      %5383 = vrot.lane.b32.xlu0 %v5158, 1
      %v5384 = vpop.permute.xlu0 %5383
      %5385 = vrot.lane.b32.xlu0 %v5159, 1
      %v5386 = vpop.permute.xlu0 %5385
      %5387 = vrot.lane.b32.xlu0 %v5160, 1
      %v5388 = vpop.permute.xlu0 %5387
      %5389 = vrot.lane.b32.xlu0 %v5161, 1
      %v5390 = vpop.permute.xlu0 %5389
      %5391 = vrot.lane.b32.xlu0 %v5162, 1
      %v5392 = vpop.permute.xlu0 %5391
      %5393 = vrot.lane.b32.xlu0 %v5163, 1
      %v5394 = vpop.permute.xlu0 %5393
      %5395 = vrot.lane.b32.xlu0 %v5164, 1
      %v5396 = vpop.permute.xlu0 %5395
      %5397 = vrot.lane.b32.xlu0 %v5165, 1
      %v5398 = vpop.permute.xlu0 %5397
      %5399 = vrot.lane.b32.xlu0 %v5166, 1
      %v5400 = vpop.permute.xlu0 %5399
      %5401 = vrot.lane.b32.xlu0 %v5167, 1
      %v5402 = vpop.permute.xlu0 %5401
      %5403 = vrot.lane.b32.xlu0 %v5168, 1
      %v5404 = vpop.permute.xlu0 %5403
      %5405 = vrot.lane.b32.xlu0 %v5169, 1
      %v5406 = vpop.permute.xlu0 %5405
      %v5407 = vsel %vm425, %v5384, %v5386
      %v5408 = vsel %vm425, %v5386, %v5388
      %v5409 = vsel %vm425, %v5390, %v5392
      %v5410 = vsel %vm425, %v5392, %v5394
      %v5411 = vsel %vm425, %v5396, %v5398
      %v5412 = vsel %vm425, %v5398, %v5400
      %v5413 = vsel %vm425, %v5402, %v5404
      %v5414 = vsel %vm425, %v5404, %v5406
      %v5425 = vsel %vm430, %v5376, %v5384
      %v5429 = vsel %vm430, %v5378, %v5390
      %v5433 = vsel %vm430, %v5380, %v5396
      %v5437 = vsel %vm430, %v5382, %v5402
      %5439 = vrot.lane.b32.xlu0 %v5158, 127
      %v5440 = vpop.permute.xlu0 %5439
      %5441 = vrot.lane.b32.xlu0 %v5159, 127
      %v5442 = vpop.permute.xlu0 %5441
      %5443 = vrot.lane.b32.xlu0 %v5160, 127
      %v5444 = vpop.permute.xlu0 %5443
      %5445 = vrot.lane.b32.xlu0 %v5161, 127
      %v5446 = vpop.permute.xlu0 %5445
      %5447 = vrot.lane.b32.xlu0 %v5162, 127
      %v5448 = vpop.permute.xlu0 %5447
      %5449 = vrot.lane.b32.xlu0 %v5163, 127
      %v5450 = vpop.permute.xlu0 %5449
      %5451 = vrot.lane.b32.xlu0 %v5164, 127
      %v5452 = vpop.permute.xlu0 %5451
      %5453 = vrot.lane.b32.xlu0 %v5165, 127
      %v5454 = vpop.permute.xlu0 %5453
      %5455 = vrot.lane.b32.xlu0 %v5166, 127
      %v5456 = vpop.permute.xlu0 %5455
      %5457 = vrot.lane.b32.xlu0 %v5167, 127
      %v5458 = vpop.permute.xlu0 %5457
      %5459 = vrot.lane.b32.xlu0 %v5168, 127
      %v5460 = vpop.permute.xlu0 %5459
      %5461 = vrot.lane.b32.xlu0 %v5169, 127
      %v5462 = vpop.permute.xlu0 %5461
      %v5463 = vsel %vm441, %v5440, %v5442
      %v5464 = vsel %vm441, %v5442, %v5444
      %v5465 = vsel %vm441, %v5446, %v5448
      %v5466 = vsel %vm441, %v5448, %v5450
      %v5467 = vsel %vm441, %v5452, %v5454
      %v5468 = vsel %vm441, %v5454, %v5456
      %v5469 = vsel %vm441, %v5458, %v5460
      %v5470 = vsel %vm441, %v5460, %v5462
      %5479 = vrot.lane.b32.xlu0 %v5158, 67
      %v5480 = vpop.permute.xlu0 %5479
      %5481 = vrot.lane.b32.xlu0 %v5161, 67
      %v5482 = vpop.permute.xlu0 %5481
      %5483 = vrot.lane.b32.xlu0 %v5164, 67
      %v5484 = vpop.permute.xlu0 %5483
      %5485 = vrot.lane.b32.xlu0 %v5167, 67
      %v5486 = vpop.permute.xlu0 %5485
      %v5489 = vsel %vm446, %v5444, %v5480
      %v5493 = vsel %vm446, %v5450, %v5482
      %v5497 = vsel %vm446, %v5456, %v5484
      %v5501 = vsel %vm446, %v5462, %v5486
      %s5503 = scalar_lea.vmem %s6, 2
      %v5504 = vld [vmem:[%s5503] sm:$0x3]
      %v5507 = vunpack.c.l.s4 1966171168
      %v5508 = vunpack.c.0.s8 %v5507
      %v5509 = vlaneseq
      %v5510 = vshrl.u32 %v5509, 7
      %v5511 = vsub.s32 %v5508, %v5510
      %v5512 = vrot.slane %v5504, %v5511
      %v5513 = vcombine.high %v5512, %v5512
      %v5515 = vunpack.c.l.s4 1966171168
      %v5516 = vunpack.c.0.s8 %v5515
      %v5517 = vlaneseq
      %v5518 = vshrl.u32 %v5517, 7
      %v5519 = vsub.s32 %v5516, %v5518
      %v5520 = vrot.slane %v5512, %v5519
      %v5522 = vunpack.c.l.s4 1966171168
      %v5523 = vunpack.c.0.s8 %v5522
      %v5524 = vlaneseq
      %v5525 = vshrl.u32 %v5524, 7
      %v5526 = vsub.s32 %v5523, %v5525
      %v5527 = vrot.slane %v5513, %v5526
      %v5530 = vsel %vm1685, %v5527, 0
      %5532 = vmatprep.subr.bf16.mxu0 %v5407
      %5533 = vmatpush1.bf16.msra.mxu0 %v5425
      %5534 = vmatprep.subr.bf16.mxu0 %v5409
      %5535 = vmatpush1.bf16.msra.mxu0 %v5429
      %5536 = vmatprep.subr.bf16.mxu0 %v5411
      %5537 = vmatpush1.bf16.msra.mxu0 %v5433
      %5538 = vmatprep.subr.bf16.mxu0 %v5413
      %5539 = vmatpush1.bf16.msra.mxu0 %v5437
      %5540 = vmatprep.subr.bf16.mxu0 %v5159
      %5541 = vmatpush1.bf16.msra.mxu0 %v5158
      %5542 = vmatprep.subr.bf16.mxu0 %v5162
      %5543 = vmatpush1.bf16.msra.mxu0 %v5161
      %5544 = vmatprep.subr.bf16.mxu0 %v5165
      %5545 = vmatpush1.bf16.msra.mxu0 %v5164
      %5546 = vmatprep.subr.bf16.mxu0 %v5168
      %5547 = vmatpush1.bf16.msra.mxu0 %v5167
      %5548 = vmatprep.subr.bf16.mxu0 %v5464
      %5549 = vmatpush1.bf16.msra.mxu0 %v5463
      %5550 = vmatprep.subr.bf16.mxu0 %v5466
      %5551 = vmatpush1.bf16.msra.mxu0 %v5465
      %5552 = vmatprep.subr.bf16.mxu0 %v5468
      %5553 = vmatpush1.bf16.msra.mxu0 %v5467
      %5554 = vmatprep.subr.bf16.mxu0 %v5470
      %5555 = vmatpush1.bf16.msra.mxu0 %v5469
      %5556 = vmatprep.subr.bf16.mxu0 0
      %5557 = vmatpush1.bf16.msra.mxu0 0
      %5558 = vmatprep.subr.bf16.mxu0 0
      %5559 = vmatpush1.bf16.msra.mxu0 0
      %5560 = vmatprep.subr.bf16.mxu0 0
      %5561 = vmatpush1.bf16.msra.mxu0 0
      %5562 = vmatprep.subr.bf16.mxu0 0
      %5563 = vmatpush1.bf16.msra.mxu0 0
      %5564 = vmatprep.mubr.bf16.mxu0 %v5530
      %5565 = vmatmul.mubr.bf16.gmra.mrb[0].mxu0 %v5520
      %v5566 = vpop.f32.mrb[0].mxu0
      %v5567 = vadd.f32 0.0, %v5566
      %v5568 = vpop.f32.mrb[0].mxu0
      %v5569 = vadd.f32 0.0, %v5568
      %v5570 = vpop.f32.mrb[0].mxu0
      %v5571 = vpop.f32.mrb[0].mxu0
      %5572 = vdwg.mxu0
      %5573 = vmatprep.subr.bf16.mxu0 0
      %5574 = vmatpush1.bf16.msra.mxu0 %v5408
      %5575 = vmatprep.subr.bf16.mxu0 0
      %5576 = vmatpush1.bf16.msra.mxu0 %v5410
      %5577 = vmatprep.subr.bf16.mxu0 0
      %5578 = vmatpush1.bf16.msra.mxu0 %v5412
      %5579 = vmatprep.subr.bf16.mxu0 0
      %5580 = vmatpush1.bf16.msra.mxu0 %v5414
      %5581 = vmatprep.subr.bf16.mxu0 0
      %5582 = vmatpush1.bf16.msra.mxu0 %v5160
      %5583 = vmatprep.subr.bf16.mxu0 0
      %5584 = vmatpush1.bf16.msra.mxu0 %v5163
      %5585 = vmatprep.subr.bf16.mxu0 0
      %5586 = vmatpush1.bf16.msra.mxu0 %v5166
      %5587 = vmatprep.subr.bf16.mxu0 0
      %5588 = vmatpush1.bf16.msra.mxu0 %v5169
      %5589 = vmatprep.subr.bf16.mxu0 0
      %5590 = vmatpush1.bf16.msra.mxu0 %v5489
      %5591 = vmatprep.subr.bf16.mxu0 0
      %5592 = vmatpush1.bf16.msra.mxu0 %v5493
      %5593 = vmatprep.subr.bf16.mxu0 0
      %5594 = vmatpush1.bf16.msra.mxu0 %v5497
      %5595 = vmatprep.subr.bf16.mxu0 0
      %5596 = vmatpush1.bf16.msra.mxu0 %v5501
      %5597 = vmatprep.subr.bf16.mxu0 0
      %5598 = vmatpush1.bf16.msra.mxu0 0
      %5599 = vmatprep.subr.bf16.mxu0 0
      %5600 = vmatpush1.bf16.msra.mxu0 0
      %5601 = vmatprep.subr.bf16.mxu0 0
      %5602 = vmatpush1.bf16.msra.mxu0 0
      %5603 = vmatprep.subr.bf16.mxu0 0
      %5604 = vmatpush1.bf16.msra.mxu0 0
      %5605 = vmatprep.mubr.bf16.mxu0 %v5530
      %5606 = vmatmul.mubr.bf16.gmra.mrb[0].mxu0 %v5520
      %v5607 = vpop.f32.mrb[0].mxu0
      %v5608 = vadd.f32 0.0, %v5607
      %v5609 = vpop.f32.mrb[0].mxu0
      %v5610 = vpop.f32.mrb[0].mxu0
      %v5611 = vpop.f32.mrb[0].mxu0
      %5612 = vdwg.mxu0
      %v5615 = vunpack.c.l.s4 1966171168
      %v5616 = vunpack.c.0.s8 %v5615
      %v5617 = vlaneseq
      %v5618 = vshrl.u32 %v5617, 7
      %v5619 = vsub.s32 %v5616, %v5618
      %v5620 = vrot.slane %v5374, %v5619
      %v5621 = vcombine.high %v5620, %v5620
      %v5623 = vunpack.c.l.s4 1966171168
      %v5624 = vunpack.c.0.s8 %v5623
      %v5625 = vlaneseq
      %v5626 = vshrl.u32 %v5625, 7
      %v5627 = vsub.s32 %v5624, %v5626
      %v5628 = vrot.slane %v5620, %v5627
      %v5630 = vunpack.c.l.s4 1966171168
      %v5631 = vunpack.c.0.s8 %v5630
      %v5632 = vlaneseq
      %v5633 = vshrl.u32 %v5632, 7
      %v5634 = vsub.s32 %v5631, %v5633
      %v5635 = vrot.slane %v5621, %v5634
      %v5638 = vsel %vm1685, %v5635, 0
      %5640 = vmatprep.subr.bf16.mxu0 %v5214
      %5641 = vmatpush1.bf16.msra.mxu0 %v5232
      %5642 = vmatprep.subr.bf16.mxu0 %v5216
      %5643 = vmatpush1.bf16.msra.mxu0 %v5236
      %5644 = vmatprep.subr.bf16.mxu0 %v5218
      %5645 = vmatpush1.bf16.msra.mxu0 %v5240
      %5646 = vmatprep.subr.bf16.mxu0 %v5220
      %5647 = vmatpush1.bf16.msra.mxu0 %v5244
      %5648 = vmatprep.subr.bf16.mxu0 %v5278
      %5649 = vmatpush1.bf16.msra.mxu0 %v5296
      %5650 = vmatprep.subr.bf16.mxu0 %v5280
      %5651 = vmatpush1.bf16.msra.mxu0 %v5300
      %5652 = vmatprep.subr.bf16.mxu0 %v5282
      %5653 = vmatpush1.bf16.msra.mxu0 %v5304
      %5654 = vmatprep.subr.bf16.mxu0 %v5284
      %5655 = vmatpush1.bf16.msra.mxu0 %v5308
      %5656 = vmatprep.subr.bf16.mxu0 %v5342
      %5657 = vmatpush1.bf16.msra.mxu0 %v5360
      %5658 = vmatprep.subr.bf16.mxu0 %v5344
      %5659 = vmatpush1.bf16.msra.mxu0 %v5364
      %5660 = vmatprep.subr.bf16.mxu0 %v5346
      %5661 = vmatpush1.bf16.msra.mxu0 %v5368
      %5662 = vmatprep.subr.bf16.mxu0 %v5348
      %5663 = vmatpush1.bf16.msra.mxu0 %v5372
      %5664 = vmatprep.subr.bf16.mxu0 0
      %5665 = vmatpush1.bf16.msra.mxu0 0
      %5666 = vmatprep.subr.bf16.mxu0 0
      %5667 = vmatpush1.bf16.msra.mxu0 0
      %5668 = vmatprep.subr.bf16.mxu0 0
      %5669 = vmatpush1.bf16.msra.mxu0 0
      %5670 = vmatprep.subr.bf16.mxu0 0
      %5671 = vmatpush1.bf16.msra.mxu0 0
      %5672 = vmatprep.mubr.bf16.mxu0 %v5638
      %5673 = vmatmul.mubr.bf16.gmra.mrb[0].mxu0 %v5628
      %v5674 = vpop.f32.mrb[0].mxu0
      %v5675 = vadd.f32 %v5567, %v5674
      %v5676 = vpop.f32.mrb[0].mxu0
      %v5677 = vadd.f32 %v5569, %v5676
      %v5678 = vpop.f32.mrb[0].mxu0
      %v5679 = vpop.f32.mrb[0].mxu0
      %5680 = vdwg.mxu0
      %5681 = vmatprep.subr.bf16.mxu0 0
      %5682 = vmatpush1.bf16.msra.mxu0 %v5215
      %5683 = vmatprep.subr.bf16.mxu0 0
      %5684 = vmatpush1.bf16.msra.mxu0 %v5217
      %5685 = vmatprep.subr.bf16.mxu0 0
      %5686 = vmatpush1.bf16.msra.mxu0 %v5219
      %5687 = vmatprep.subr.bf16.mxu0 0
      %5688 = vmatpush1.bf16.msra.mxu0 %v5221
      %5689 = vmatprep.subr.bf16.mxu0 0
      %5690 = vmatpush1.bf16.msra.mxu0 %v5279
      %5691 = vmatprep.subr.bf16.mxu0 0
      %5692 = vmatpush1.bf16.msra.mxu0 %v5281
      %5693 = vmatprep.subr.bf16.mxu0 0
      %5694 = vmatpush1.bf16.msra.mxu0 %v5283
      %5695 = vmatprep.subr.bf16.mxu0 0
      %5696 = vmatpush1.bf16.msra.mxu0 %v5285
      %5697 = vmatprep.subr.bf16.mxu0 0
      %5698 = vmatpush1.bf16.msra.mxu0 %v5343
      %5699 = vmatprep.subr.bf16.mxu0 0
      %5700 = vmatpush1.bf16.msra.mxu0 %v5345
      %5701 = vmatprep.subr.bf16.mxu0 0
      %5702 = vmatpush1.bf16.msra.mxu0 %v5347
      %5703 = vmatprep.subr.bf16.mxu0 0
      %5704 = vmatpush1.bf16.msra.mxu0 %v5349
      %5705 = vmatprep.subr.bf16.mxu0 0
      %5706 = vmatpush1.bf16.msra.mxu0 0
      %5707 = vmatprep.subr.bf16.mxu0 0
      %5708 = vmatpush1.bf16.msra.mxu0 0
      %5709 = vmatprep.subr.bf16.mxu0 0
      %5710 = vmatpush1.bf16.msra.mxu0 0
      %5711 = vmatprep.subr.bf16.mxu0 0
      %5712 = vmatpush1.bf16.msra.mxu0 0
      %5713 = vmatprep.mubr.bf16.mxu0 %v5638
      %5714 = vmatmul.mubr.bf16.gmra.mrb[0].mxu0 %v5628
      %v5715 = vpop.f32.mrb[0].mxu0
      %v5716 = vadd.f32 %v5608, %v5715
      %v5717 = vpop.f32.mrb[0].mxu0
      %v5718 = vpop.f32.mrb[0].mxu0
      %v5719 = vpop.f32.mrb[0].mxu0
      %5720 = vdwg.mxu0
      %5721 = vrot.lane.b32.xlu0 %v5158, 111
      %v5722 = vpop.permute.xlu0 %5721
      %5723 = vrot.lane.b32.xlu0 %v5159, 111
      %v5724 = vpop.permute.xlu0 %5723
      %5725 = vrot.lane.b32.xlu0 %v5160, 111
      %v5726 = vpop.permute.xlu0 %5725
      %5727 = vrot.lane.b32.xlu0 %v5161, 111
      %v5728 = vpop.permute.xlu0 %5727
      %5729 = vrot.lane.b32.xlu0 %v5162, 111
      %v5730 = vpop.permute.xlu0 %5729
      %5731 = vrot.lane.b32.xlu0 %v5163, 111
      %v5732 = vpop.permute.xlu0 %5731
      %5733 = vrot.lane.b32.xlu0 %v5164, 111
      %v5734 = vpop.permute.xlu0 %5733
      %5735 = vrot.lane.b32.xlu0 %v5165, 111
      %v5736 = vpop.permute.xlu0 %5735
      %5737 = vrot.lane.b32.xlu0 %v5166, 111
      %v5738 = vpop.permute.xlu0 %5737
      %5739 = vrot.lane.b32.xlu0 %v5167, 111
      %v5740 = vpop.permute.xlu0 %5739
      %5741 = vrot.lane.b32.xlu0 %v5168, 111
      %v5742 = vpop.permute.xlu0 %5741
      %5743 = vrot.lane.b32.xlu0 %v5169, 111
      %v5744 = vpop.permute.xlu0 %5743
      %v5745 = vsel %vm849, %v5722, %v5724
      %v5746 = vsel %vm849, %v5724, %v5726
      %v5747 = vsel %vm849, %v5728, %v5730
      %v5748 = vsel %vm849, %v5730, %v5732
      %v5749 = vsel %vm849, %v5734, %v5736
      %v5750 = vsel %vm849, %v5736, %v5738
      %v5751 = vsel %vm849, %v5740, %v5742
      %v5752 = vsel %vm849, %v5742, %v5744
      %5761 = vrot.lane.b32.xlu0 %v5158, 51
      %v5762 = vpop.permute.xlu0 %5761
      %5763 = vrot.lane.b32.xlu0 %v5161, 51
      %v5764 = vpop.permute.xlu0 %5763
      %5765 = vrot.lane.b32.xlu0 %v5164, 51
      %v5766 = vpop.permute.xlu0 %5765
      %5767 = vrot.lane.b32.xlu0 %v5167, 51
      %v5768 = vpop.permute.xlu0 %5767
      %v5771 = vsel %vm856, %v5726, %v5762
      %v5775 = vsel %vm856, %v5732, %v5764
      %v5779 = vsel %vm856, %v5738, %v5766
      %v5783 = vsel %vm856, %v5744, %v5768
      %5785 = vrot.lane.b32.xlu0 %v5158, 110
      %v5786 = vpop.permute.xlu0 %5785
      %5787 = vrot.lane.b32.xlu0 %v5159, 110
      %v5788 = vpop.permute.xlu0 %5787
      %5789 = vrot.lane.b32.xlu0 %v5160, 110
      %v5790 = vpop.permute.xlu0 %5789
      %5791 = vrot.lane.b32.xlu0 %v5161, 110
      %v5792 = vpop.permute.xlu0 %5791
      %5793 = vrot.lane.b32.xlu0 %v5162, 110
      %v5794 = vpop.permute.xlu0 %5793
      %5795 = vrot.lane.b32.xlu0 %v5163, 110
      %v5796 = vpop.permute.xlu0 %5795
      %5797 = vrot.lane.b32.xlu0 %v5164, 110
      %v5798 = vpop.permute.xlu0 %5797
      %5799 = vrot.lane.b32.xlu0 %v5165, 110
      %v5800 = vpop.permute.xlu0 %5799
      %5801 = vrot.lane.b32.xlu0 %v5166, 110
      %v5802 = vpop.permute.xlu0 %5801
      %5803 = vrot.lane.b32.xlu0 %v5167, 110
      %v5804 = vpop.permute.xlu0 %5803
      %5805 = vrot.lane.b32.xlu0 %v5168, 110
      %v5806 = vpop.permute.xlu0 %5805
      %5807 = vrot.lane.b32.xlu0 %v5169, 110
      %v5808 = vpop.permute.xlu0 %5807
      %v5809 = vsel %vm867, %v5786, %v5788
      %v5810 = vsel %vm867, %v5788, %v5790
      %v5811 = vsel %vm867, %v5792, %v5794
      %v5812 = vsel %vm867, %v5794, %v5796
      %v5813 = vsel %vm867, %v5798, %v5800
      %v5814 = vsel %vm867, %v5800, %v5802
      %v5815 = vsel %vm867, %v5804, %v5806
      %v5816 = vsel %vm867, %v5806, %v5808
      %5825 = vrot.lane.b32.xlu0 %v5158, 50
      %v5826 = vpop.permute.xlu0 %5825
      %5827 = vrot.lane.b32.xlu0 %v5161, 50
      %v5828 = vpop.permute.xlu0 %5827
      %5829 = vrot.lane.b32.xlu0 %v5164, 50
      %v5830 = vpop.permute.xlu0 %5829
      %5831 = vrot.lane.b32.xlu0 %v5167, 50
      %v5832 = vpop.permute.xlu0 %5831
      %v5835 = vsel %vm872, %v5790, %v5826
      %v5839 = vsel %vm872, %v5796, %v5828
      %v5843 = vsel %vm872, %v5802, %v5830
      %v5847 = vsel %vm872, %v5808, %v5832
      %5849 = vrot.lane.b32.xlu0 %v5158, 109
      %v5850 = vpop.permute.xlu0 %5849
      %5851 = vrot.lane.b32.xlu0 %v5159, 109
      %v5852 = vpop.permute.xlu0 %5851
      %5853 = vrot.lane.b32.xlu0 %v5160, 109
      %v5854 = vpop.permute.xlu0 %5853
      %5855 = vrot.lane.b32.xlu0 %v5161, 109
      %v5856 = vpop.permute.xlu0 %5855
      %5857 = vrot.lane.b32.xlu0 %v5162, 109
      %v5858 = vpop.permute.xlu0 %5857
      %5859 = vrot.lane.b32.xlu0 %v5163, 109
      %v5860 = vpop.permute.xlu0 %5859
      %5861 = vrot.lane.b32.xlu0 %v5164, 109
      %v5862 = vpop.permute.xlu0 %5861
      %5863 = vrot.lane.b32.xlu0 %v5165, 109
      %v5864 = vpop.permute.xlu0 %5863
      %5865 = vrot.lane.b32.xlu0 %v5166, 109
      %v5866 = vpop.permute.xlu0 %5865
      %5867 = vrot.lane.b32.xlu0 %v5167, 109
      %v5868 = vpop.permute.xlu0 %5867
      %5869 = vrot.lane.b32.xlu0 %v5168, 109
      %v5870 = vpop.permute.xlu0 %5869
      %5871 = vrot.lane.b32.xlu0 %v5169, 109
      %v5872 = vpop.permute.xlu0 %5871
      %v5873 = vsel %vm882, %v5850, %v5852
      %v5874 = vsel %vm882, %v5852, %v5854
      %v5875 = vsel %vm882, %v5856, %v5858
      %v5876 = vsel %vm882, %v5858, %v5860
      %v5877 = vsel %vm882, %v5862, %v5864
      %v5878 = vsel %vm882, %v5864, %v5866
      %v5879 = vsel %vm882, %v5868, %v5870
      %v5880 = vsel %vm882, %v5870, %v5872
      %5889 = vrot.lane.b32.xlu0 %v5158, 49
      %v5890 = vpop.permute.xlu0 %5889
      %5891 = vrot.lane.b32.xlu0 %v5161, 49
      %v5892 = vpop.permute.xlu0 %5891
      %5893 = vrot.lane.b32.xlu0 %v5164, 49
      %v5894 = vpop.permute.xlu0 %5893
      %5895 = vrot.lane.b32.xlu0 %v5167, 49
      %v5896 = vpop.permute.xlu0 %5895
      %v5899 = vsel %vm887, %v5854, %v5890
      %v5903 = vsel %vm887, %v5860, %v5892
      %v5907 = vsel %vm887, %v5866, %v5894
      %v5911 = vsel %vm887, %v5872, %v5896
      %s5913 = scalar_lea.vmem %s6, 4
      %v5914 = vld [vmem:[%s5913] sm:$0x3]
      %v5917 = vunpack.c.l.s4 1966171168
      %v5918 = vunpack.c.0.s8 %v5917
      %v5919 = vlaneseq
      %v5920 = vshrl.u32 %v5919, 7
      %v5921 = vsub.s32 %v5918, %v5920
      %v5922 = vrot.slane %v5914, %v5921
      %v5923 = vcombine.high %v5922, %v5922
      %v5925 = vunpack.c.l.s4 1966171168
      %v5926 = vunpack.c.0.s8 %v5925
      %v5927 = vlaneseq
      %v5928 = vshrl.u32 %v5927, 7
      %v5929 = vsub.s32 %v5926, %v5928
      %v5930 = vrot.slane %v5922, %v5929
      %v5932 = vunpack.c.l.s4 1966171168
      %v5933 = vunpack.c.0.s8 %v5932
      %v5934 = vlaneseq
      %v5935 = vshrl.u32 %v5934, 7
      %v5936 = vsub.s32 %v5933, %v5935
      %v5937 = vrot.slane %v5923, %v5936
      %v5940 = vsel %vm1685, %v5937, 0
      %5942 = vmatprep.subr.bf16.mxu0 %v5746
      %5943 = vmatpush1.bf16.msra.mxu0 %v5745
      %5944 = vmatprep.subr.bf16.mxu0 %v5748
      %5945 = vmatpush1.bf16.msra.mxu0 %v5747
      %5946 = vmatprep.subr.bf16.mxu0 %v5750
      %5947 = vmatpush1.bf16.msra.mxu0 %v5749
      %5948 = vmatprep.subr.bf16.mxu0 %v5752
      %5949 = vmatpush1.bf16.msra.mxu0 %v5751
      %5950 = vmatprep.subr.bf16.mxu0 %v5810
      %5951 = vmatpush1.bf16.msra.mxu0 %v5809
      %5952 = vmatprep.subr.bf16.mxu0 %v5812
      %5953 = vmatpush1.bf16.msra.mxu0 %v5811
      %5954 = vmatprep.subr.bf16.mxu0 %v5814
      %5955 = vmatpush1.bf16.msra.mxu0 %v5813
      %5956 = vmatprep.subr.bf16.mxu0 %v5816
      %5957 = vmatpush1.bf16.msra.mxu0 %v5815
      %5958 = vmatprep.subr.bf16.mxu0 %v5874
      %5959 = vmatpush1.bf16.msra.mxu0 %v5873
      %5960 = vmatprep.subr.bf16.mxu0 %v5876
      %5961 = vmatpush1.bf16.msra.mxu0 %v5875
      %5962 = vmatprep.subr.bf16.mxu0 %v5878
      %5963 = vmatpush1.bf16.msra.mxu0 %v5877
      %5964 = vmatprep.subr.bf16.mxu0 %v5880
      %5965 = vmatpush1.bf16.msra.mxu0 %v5879
      %5966 = vmatprep.subr.bf16.mxu0 0
      %5967 = vmatpush1.bf16.msra.mxu0 0
      %5968 = vmatprep.subr.bf16.mxu0 0
      %5969 = vmatpush1.bf16.msra.mxu0 0
      %5970 = vmatprep.subr.bf16.mxu0 0
      %5971 = vmatpush1.bf16.msra.mxu0 0
      %5972 = vmatprep.subr.bf16.mxu0 0
      %5973 = vmatpush1.bf16.msra.mxu0 0
      %5974 = vmatprep.mubr.bf16.mxu0 %v5940
      %5975 = vmatmul.mubr.bf16.gmra.mrb[0].mxu0 %v5930
      %v5976 = vpop.f32.mrb[0].mxu0
      %v5977 = vadd.f32 0.0, %v5976
      %v5978 = vpop.f32.mrb[0].mxu0
      %v5979 = vadd.f32 0.0, %v5978
      %v5980 = vpop.f32.mrb[0].mxu0
      %v5981 = vpop.f32.mrb[0].mxu0
      %5982 = vdwg.mxu0
      %5983 = vmatprep.subr.bf16.mxu0 0
      %5984 = vmatpush1.bf16.msra.mxu0 %v5771
      %5985 = vmatprep.subr.bf16.mxu0 0
      %5986 = vmatpush1.bf16.msra.mxu0 %v5775
      %5987 = vmatprep.subr.bf16.mxu0 0
      %5988 = vmatpush1.bf16.msra.mxu0 %v5779
      %5989 = vmatprep.subr.bf16.mxu0 0
      %5990 = vmatpush1.bf16.msra.mxu0 %v5783
      %5991 = vmatprep.subr.bf16.mxu0 0
      %5992 = vmatpush1.bf16.msra.mxu0 %v5835
      %5993 = vmatprep.subr.bf16.mxu0 0
      %5994 = vmatpush1.bf16.msra.mxu0 %v5839
      %5995 = vmatprep.subr.bf16.mxu0 0
      %5996 = vmatpush1.bf16.msra.mxu0 %v5843
      %5997 = vmatprep.subr.bf16.mxu0 0
      %5998 = vmatpush1.bf16.msra.mxu0 %v5847
      %5999 = vmatprep.subr.bf16.mxu0 0
      %6000 = vmatpush1.bf16.msra.mxu0 %v5899
      %6001 = vmatprep.subr.bf16.mxu0 0
      %6002 = vmatpush1.bf16.msra.mxu0 %v5903
      %6003 = vmatprep.subr.bf16.mxu0 0
      %6004 = vmatpush1.bf16.msra.mxu0 %v5907
      %6005 = vmatprep.subr.bf16.mxu0 0
      %6006 = vmatpush1.bf16.msra.mxu0 %v5911
      %6007 = vmatprep.subr.bf16.mxu0 0
      %6008 = vmatpush1.bf16.msra.mxu0 0
      %6009 = vmatprep.subr.bf16.mxu0 0
      %6010 = vmatpush1.bf16.msra.mxu0 0
      %6011 = vmatprep.subr.bf16.mxu0 0
      %6012 = vmatpush1.bf16.msra.mxu0 0
      %6013 = vmatprep.subr.bf16.mxu0 0
      %6014 = vmatpush1.bf16.msra.mxu0 0
      %6015 = vmatprep.mubr.bf16.mxu0 %v5940
      %6016 = vmatmul.mubr.bf16.gmra.mrb[0].mxu0 %v5930
      %v6017 = vpop.f32.mrb[0].mxu0
      %v6018 = vadd.f32 0.0, %v6017
      %v6019 = vpop.f32.mrb[0].mxu0
      %v6020 = vpop.f32.mrb[0].mxu0
      %v6021 = vpop.f32.mrb[0].mxu0
      %6022 = vdwg.mxu0
      %v6023 = vadd.f32 %v5675, %v5977
      %v6024 = vadd.f32 %v5677, %v5979
      %v6025 = vadd.f32 %v5716, %v6018
      %v6026 = vld [vmem:[#allocation3] sm:$0x1]
      %6028 = vset.pattern.permute.xlu0 0
      %6029 = vperm.xlu0 %6028, %v6026
      %v6030 = vpop.permute.xlu0 %6029
      %v6032 = vlaneseq
      %v6033 = vshrl.u32 %v6032, 7
      %v6034 = vsub.s32 0, %v6033
      %v6035 = vrot.slane %v6030, %v6034
      %v6036 = vadd.f32 %v6023, %v6035
      %v6037 = vadd.f32 %v6024, %v6035
      %v6038 = vadd.f32 %v6025, %v6035
      %v6039 = vld [vmem:[%s298] sm:$0x7]
      %v6040 = vunpack.c.l.bf16 %v6039
      %v6044 = vcombine.low %v6036, %v6037
      %v6046 = vunpack.c.l.s4 1983009808
      %v6047 = vunpack.c.0.s8 %v6046
      %v6048 = vlaneseq
      %v6049 = vshrl.u32 %v6048, 7
      %v6050 = vsub.s32 %v6047, %v6049
      %v6051 = vrot.slane %v6044, %v6050
      %v6053 = vunpack.c.l.s4 1983009808
      %v6054 = vunpack.c.0.s8 %v6053
      %v6055 = vlaneseq
      %v6056 = vshrl.u32 %v6055, 7
      %v6057 = vsub.s32 %v6054, %v6056
      %v6058 = vrot.slane %v6038, %v6057
      %v6059 = vcombine.low %v6051, %v6058
      %v6061 = vsub.f32 %v6040, %v6059
      %v6064 = vunpack.c.l.s4 1966171168
      %v6065 = vunpack.c.0.s8 %v6064
      %v6066 = vlaneseq
      %v6067 = vshrl.u32 %v6066, 7
      %v6068 = vsub.s32 %v6065, %v6067
      %v6069 = vrot.slane %v6061, %v6068
      %v6071 = vlaneseq
      %vm6072 = vcmp.ge.s32.totalorder %v6071, 0
      %vm6073 = vcmp.lt.s32.totalorder %v6071, 324
      %vm6074 = vmand %vm6072, %vm6073
      %6075 = vst.msk [vmem:[%s302] sm:$0x7] %vm6074, %v6069
      %p6076 = scmp.lt.s32.totalorder %s21, 1
      %s6077 = scalar_select %p6076, %s21, 1
      %s6078 = smul.addr %s6077, 3
      %s6079 = scalar_lea.vmem %s8, %s6078
      // Predicated region
      $region53: #{dncnn_forward.1} parent=51 // pred_check
        %p6080 = pneg %p212
      $region54: #{dncnn_forward.1} parent=51 // pred_check_branch
        %6082 = sbr.rel (%p6080) target = $region56
      $region55: #{dncnn_forward.1} parent=51 // pred_region
        _
      $region56: #{dncnn_forward.1} parent=51 // pred_fallthru
        _
    $region52: #{dncnn_forward.1} parent=5 // pred_fallthru
      _
    %p6083 = scmp.le.s32.totalorder 2, %s16
    // Predicated region
    $region57: #{dncnn_forward.1} parent=5 // pred_check
      %p6084 = pneg %p6083
    $region58: #{dncnn_forward.1} parent=5 // pred_check_branch
      %6086 = sbr.rel (%p6084) target = $region60
    $region59: #{dncnn_forward.1} parent=5 // pred_region
      %s6087 = ssub.s32 %s16, 2
      // Predicated region
      $region61: #{dncnn_forward.1} parent=59 // pred_check
        %p6088 = pneg %p218
      $region62: #{dncnn_forward.1} parent=59 // pred_check_branch
        %6090 = sbr.rel (%p6088) target = $region64
      $region63: #{dncnn_forward.1} parent=59 // pred_region
        %p6091 = scmp.lt.s32.totalorder %s22, 1
        %s6092 = scalar_select %p6091, %s22, 1
        %s6093 = smul.addr %s6092, 3
        %s6094 = scalar_lea.vmem %s8, %s6093
      $region64: #{dncnn_forward.1} parent=59 // pred_fallthru
        _
    $region60: #{dncnn_forward.1} parent=5 // pred_fallthru
      _
  $region6: #{dncnn_forward.1} parent=0 // loop_footer
    %s20 = sadd.s32 1, %s16
  $region7: #{dncnn_forward.1} parent=0 // loop_footer_branch
    %15 = sbr.rel target = $region3
  $region8: #{dncnn_forward.1} parent=0 // loop_exit
    _

</llo_original>
